<compile_context>
chip_gen: v7x
topology: tpu7x:2x2x1
jax: 0.10.0
libtpu: 0.0.40
codegen_flags: <defaults>
</compile_context>

<pallas_src>
import functools
import numpy as np
import jax
import jax.numpy as jnp
from jax.experimental import pallas as pl
from jax.experimental.pallas import tpu as pltpu

# ----------------------------------------------------------------------------
# Synthetic Generator hyper-parameters (small but structurally faithful)
# ----------------------------------------------------------------------------
LATENT_SIZE  = 8
CAPACITY     = 8
DATA_SIZE    = 1
RATIOS       = (2, 2)
LOUD_STRIDE  = 1          # TODO(synk): loud_stride > 1 (strided loud conv + flattened repeat_interleave) not wired up.
USE_NOISE    = True
NOISE_RATIOS = (2, 2)
NOISE_BANDS  = 3          # needs 2*(NOISE_BANDS-1) <= prod(NOISE_RATIOS)
# padding_mode = "centered"

assert all(r == 1 or r % 2 == 0 for r in RATIOS)
assert LOUD_STRIDE == 1
assert (not USE_NOISE) or NOISE_RATIOS[0] in (1, 2)     # head fusion needs left pad == 1
assert (not USE_NOISE) or 2 * (NOISE_BANDS - 1) <= int(np.prod(NOISE_RATIOS))


def get_padding(kernel_size, stride=1, dilation=1):
    """cached_conv.get_padding, mode='centered' (extra sample on the left)."""
    if kernel_size == 1:
        return (0, 0)
    p = (kernel_size - 1) * dilation + 1 - stride
    return (p - p // 2, p // 2)


# ============================================================================
# In-kernel helpers (operate on VMEM/vreg-resident values)
# ============================================================================

def _leaky(x):
    return jnp.where(x > 0, x, 0.2 * x)


def _mod_sigmoid(x):
    # rave.core.mod_sigmoid: 2*sigmoid(x)**2.3 + 1e-7, via stable log-sigmoid.
    log_sig = jnp.minimum(x, 0.0) - jnp.log(1.0 + jnp.exp(-jnp.abs(x)))
    return 2.0 * jnp.exp(2.3 * log_sig) + 1e-7


def _kconv(x, l_in, w_flat, *, K, dilation=1, pad=(0, 0), fold):
    """Dilated Conv1d on a batch-folded (C_in, fold*l_in) bf16 value as ONE im2col
    MXU matmul.  Zero padding is applied per sample while building the im2col
    columns (no intermediate padded copy).  Returns f32 (C_out, fold*l_out)."""
    c_in = x.shape[0]
    l_out = l_in + pad[0] + pad[1] - (K - 1) * dilation
    sample_cols = []
    for b in range(fold):
        xb = x[:, b * l_in:(b + 1) * l_in]
        taps = []
        for k in range(K):
            start = k * dilation - pad[0]            # window start, in x coordinates
            stop = start + l_out
            pieces = []
            if start < 0:
                pieces.append(jnp.zeros((c_in, -start), x.dtype))
            lo, hi = max(start, 0), min(stop, l_in)
            if hi > lo:
                pieces.append(xb[:, lo:hi])
            if stop > l_in:
                pieces.append(jnp.zeros((c_in, stop - l_in), x.dtype))
            taps.append(pieces[0] if len(pieces) == 1
                        else jnp.concatenate(pieces, axis=1))
        sample_cols.append(jnp.concatenate(taps, axis=0))        # (K*C_in, l_out)
    cols = sample_cols[0] if fold == 1 else jnp.concatenate(sample_cols, axis=1)
    return jnp.dot(w_flat, cols.astype(jnp.bfloat16),
                   preferred_element_type=jnp.float32)


# ============================================================================
# The single fused Generator kernel (one grid step == BATCH_FOLD samples)
# ============================================================================

def _generator_kernel(x_ref, *refs):
    bf = jnp.bfloat16
    fold = x_ref.shape[0]
    it = iter(refs)
    w_in = next(it)
    scales = []
    for r in RATIOS:
        if r > 1:
            scales.append((next(it), next(it), next(it)))   # (phase_w, interleave, res_w)
        else:
            scales.append((next(it), None, next(it)))        # (conv_w, None, res_w)
    head_w = next(it)
    if USE_NOISE:
        sel0 = next(it) if NOISE_RATIOS[0] > 1 else None
        nz_layers = []
        for ri in NOISE_RATIOS[1:]:
            wi = next(it)
            si = next(it) if ri > 1 else None
            nz_layers.append((wi, si, ri))
        nz_bias = [next(it) for _ in NOISE_RATIOS]
    wl_ref = next(it)
    amp_ref = next(it) if USE_NOISE else None

    # --- self.net: Conv1d(7) -> [UpsampleLayer + ResidualStack] per ratio ---
    L = x_ref.shape[2]
    h = x_ref[0] if fold == 1 else jnp.concatenate(
        [x_ref[j] for j in range(fold)], axis=1)
    h = _kconv(h.astype(bf), L, w_in[...], K=7, pad=get_padding(7),
               fold=fold).astype(bf)
    for (up_w, inter, res_w), r in zip(scales, RATIOS):
        c = res_w.shape[1]
        # UpsampleLayer: LeakyReLU(0.2) -> ConvT(2r, stride r) | Conv1d(3)
        h = _leaky(h)
        if r > 1:
            # fused polyphase ConvTranspose1d: one K=3 matmul for all r phases,
            # then r precomputed 0/1 interleave matmuls (VMEM-resident constants).
            y = _kconv(h, L, up_w[...], K=3, pad=(1, 1), fold=fold).astype(bf)
            acc = jnp.dot(y[0:c], inter[0], preferred_element_type=jnp.float32)
            for q in range(1, r):
                acc = acc + jnp.dot(y[q * c:(q + 1) * c], inter[q],
                                    preferred_element_type=jnp.float32)
            h = acc.astype(bf)
            L = r * L
        else:
            h = _kconv(h, L, up_w[...], K=3, pad=get_padding(3),
                       fold=fold).astype(bf)
        # ResidualStack: 3x (lrelu -> dilated conv -> lrelu -> conv) + skip
        for j in range(3):
            d = 3 ** j
            t = _kconv(_leaky(h), L, res_w[2 * j], K=3, dilation=d,
                       pad=get_padding(3, dilation=d), fold=fold)
            u = _kconv(_leaky(t).astype(bf), L, res_w[2 * j + 1], K=3,
                       pad=get_padding(3), fold=fold)
            h = h + u.astype(bf)

    # --- fused synth head: wave | loud | noise0 in ONE K=7 conv ---
    # (AlignBranches has zero relative delay in centered mode.)
    y = _kconv(h, L, head_w[...], K=7, pad=get_padding(7), fold=fold)
    wave = y[:DATA_SIZE]
    loud = y[DATA_SIZE:DATA_SIZE + 1]
    # tanh(waveform) * mod_sigmoid(loudness), fused; lane-dense store.
    wl_ref[0] = (jnp.tanh(wave) * _mod_sigmoid(loud)).astype(wl_ref.dtype)

    if USE_NOISE:
        ch0 = head_w.shape[0] - DATA_SIZE - 1
        nz = y[DATA_SIZE + 1:DATA_SIZE + 1 + ch0]
        if sel0 is not None:                      # strided noise conv 0 (stride r0)
            nz = jnp.dot(nz.astype(bf), sel0[...],
                         preferred_element_type=jnp.float32)
            l = sel0.shape[1] // fold
        else:
            l = L
        nz = nz + nz_bias[0][...]
        for i, (wi, si, ri) in enumerate(nz_layers):
            nz = _leaky(nz).astype(bf)
            yz = _kconv(nz, l, wi[...], K=3, pad=get_padding(3, ri), fold=fold)
            if si is not None:
                yz = jnp.dot(yz.astype(bf), si[...],
                             preferred_element_type=jnp.float32)
                l = si.shape[1] // fold
            else:
                l = l + sum(get_padding(3, ri)) - 2
            nz = yz + nz_bias[i + 1][...]
        # amp = mod_sigmoid(net(x) - 5); FFT tail runs outside the kernel
        amp_ref[0] = _mod_sigmoid(nz - 5.0).astype(amp_ref.dtype)


# ============================================================================
# Host-side weight packing (im2col / fused-polyphase / fused-head layouts, bf16)
# ============================================================================

def _im2col_w(w):
    """(C_out, C_in, K) -> (C_out, K*C_in) with column layout k*C_in + c."""
    c_out, c_in, K = w.shape
    return jnp.transpose(w, (0, 2, 1)).reshape(c_out, K * c_in)


def _fused_phase_w(w_ct, s):
    """torch ConvTranspose1d weight (C_in, C_out, 2s), stride s, pad s//2 ->
    (s*C_out, 3*C_in): all s polyphase 2-tap filters stacked phase-major along
    C_out, expressed over the taps [x[t-1], x[t], x[t+1]]."""
    c_in, c_out, K = w_ct.shape
    assert K == 2 * s and s % 2 == 0
    w = jnp.transpose(w_ct, (1, 0, 2))                     # (C_out, C_in, 2s)
    half = s // 2
    zero = jnp.zeros((c_out, c_in), w.dtype)
    rows = []
    for q in range(s):
        if q < half:   # y[s*t+q] = W[q+3s/2] x[t-1] + W[q+s/2] x[t]
            taps = jnp.stack([w[:, :, q + half + s], w[:, :, q + half], zero], axis=2)
        else:          # y[s*t+q] = W[q+s/2]  x[t]   + W[q-s/2] x[t+1]
            taps = jnp.stack([zero, w[:, :, q + half], w[:, :, q + half - s]], axis=2)
        rows.append(_im2col_w(taps))                       # (C_out, 3*C_in)
    return jnp.concatenate(rows, axis=0)


def _head_w(params):
    """Fuse wave_gen (K=7), loud_gen (K=3) and noise-net conv0 (K=3) into one K=7
    weight by embedding the K=3 taps at positions 2..4 (same centered alignment)."""
    wave = params["wave"]                                  # (DATA_SIZE, C, 7)
    c = wave.shape[1]

    def embed3(w3):
        z = jnp.zeros((w3.shape[0], c, 2), w3.dtype)
        return jnp.concatenate([z, w3, z], axis=2)

    rows = [wave, embed3(params["loud"])]
    if USE_NOISE:
        rows.append(embed3(params["noise0_w"]))
    return _im2col_w(jnp.concatenate(rows, axis=0))


def _interleave_mats(l, s, fold):
    """(s, fold*l, fold*s*l) bf16 0/1 matrices: phase q of a (C, fold*l) value lands
    on output columns s*t+q, block-diagonal over the folded samples."""
    mats = []
    for q in range(s):
        p = np.zeros((l, s * l), np.float32)
        p[np.arange(l), s * np.arange(l) + q] = 1.0
        mats.append(np.kron(np.eye(fold, dtype=np.float32), p))
    return jnp.asarray(np.stack(mats, axis=0), dtype=jnp.bfloat16)


def _select_mat(l_in, idx, fold):
    """(fold*l_in, fold*len(idx)) bf16 0/1 column-selection matrix (block-diag)."""
    p = np.zeros((l_in, len(idx)), np.float32)
    p[np.asarray(idx), np.arange(len(idx))] = 1.0
    return jnp.asarray(np.kron(np.eye(fold, dtype=np.float32), p),
                       dtype=jnp.bfloat16)


def _noise_out_len(l):
    for r in NOISE_RATIOS:
        pl_, pr_ = get_padding(3, r)
        lf = l + pl_ + pr_ - 2
        l = len(range(0, lf, r)) if r > 1 else lf
    return l


def _pack_inputs(params, L0, fold):
    wdt = jnp.bfloat16
    ws = [_im2col_w(params["conv_in"]).astype(wdt)]
    L = L0
    for i, r in enumerate(RATIOS):
        if r > 1:
            ws.append(_fused_phase_w(params[f"up{i}"], r).astype(wdt))
            ws.append(_interleave_mats(L, r, fold))
            L = L * r
        else:
            ws.append(_im2col_w(params[f"up{i}"]).astype(wdt))
        res = [_im2col_w(params[f"res{i}_{j}_{ab}"])
               for j in range(3) for ab in ("a", "b")]
        ws.append(jnp.stack(res, axis=0).astype(wdt))      # (6, C, 3C)
    ws.append(_head_w(params).astype(wdt))
    if USE_NOISE:
        l = L
        r0 = NOISE_RATIOS[0]
        pl0, pr0 = get_padding(3, r0)
        if r0 > 1:
            assert pl0 == 1                                 # head embedding uses left pad 1
            idx = list(range(0, l + pl0 + pr0 - 2, r0))
            ws.append(_select_mat(l, idx, fold))
            l = len(idx)
        for i in range(1, len(NOISE_RATIOS)):
            ri = NOISE_RATIOS[i]
            pli, pri = get_padding(3, ri)
            assert pli >= 0 and pri >= 0   # TODO(synk): negative (crop) padding for large noise ratios
            ws.append(_im2col_w(params[f"noise{i}_w"]).astype(wdt))
            lfull = l + pli + pri - 2
            if ri > 1:
                idx = list(range(0, lfull, ri))
                ws.append(_select_mat(lfull, idx, fold))
                l = len(idx)
            else:
                l = lfull
        for i in range(len(NOISE_RATIOS)):
            ws.append(params[f"noise{i}_b"].reshape(-1, 1).astype(jnp.float32))
    return ws


# ============================================================================
# NoiseGenerator FFT tail (tiny; plain JAX)
# ============================================================================
# TODO(synk): rfft/irfft used by amp_to_impulse_response / fft_convolve have no
# Pallas TPU primitive; this small tail (and the final `+ noise` add) stays in JAX.

def amp_to_impulse_response(amp, target_size):
    ir = jnp.fft.irfft(amp, axis=-1)
    filter_size = ir.shape[-1]
    ir = jnp.roll(ir, filter_size // 2, axis=-1)
    n = jnp.arange(filter_size, dtype=jnp.float32)
    win = 0.5 * (1.0 - jnp.cos(2.0 * jnp.pi * n / filter_size))    # hann (periodic)
    ir = ir * win
    ir = jnp.pad(ir, [(0, 0)] * (ir.ndim - 1) + [(0, int(target_size) - filter_size)])
    ir = jnp.roll(ir, -filter_size // 2, axis=-1)
    return ir


def fft_convolve(signal, kernel):
    T = signal.shape[-1]
    signal = jnp.pad(signal, [(0, 0)] * (signal.ndim - 1) + [(0, T)])
    kernel = jnp.pad(kernel, [(0, 0)] * (kernel.ndim - 1) + [(T, 0)])
    out = jnp.fft.irfft(jnp.fft.rfft(signal) * jnp.fft.rfft(kernel))
    return out[..., out.shape[-1] // 2:]


def _noise_fft_tail(amp, key):
    """amp: (B, data_size*noise_bands, L_down) == mod_sigmoid(noise_net(h) - 5)."""
    B, _, l_down = amp.shape
    amp = jnp.transpose(amp, (0, 2, 1)).reshape(B, l_down, DATA_SIZE, NOISE_BANDS)
    target_size = int(np.prod(NOISE_RATIOS))
    ir = amp_to_impulse_response(amp, target_size)
    noise = jax.random.uniform(key, ir.shape, jnp.float32) * 2.0 - 1.0
    out = fft_convolve(noise, ir)                            # (B, L_down, D, T)
    out = jnp.transpose(out, (0, 2, 1, 3)).reshape(B, DATA_SIZE, -1)
    return out


# ============================================================================
# Parameters (deterministic synthetic init; weight_norm g*v/||v|| is a
# reparametrization, so its effective weight is initialized directly)
# ============================================================================

def init_params(key):
    counter = [0]

    def nk():
        counter[0] += 1
        return jax.random.fold_in(key, counter[0])

    def conv_w(c_out, c_in, k):
        return 0.2 * jax.random.normal(nk(), (c_out, c_in, k), jnp.float32)

    p = {}
    n_ratios = len(RATIOS)
    p["conv_in"] = conv_w(2 ** n_ratios * CAPACITY, LATENT_SIZE, 7)
    out_dim = 2 ** n_ratios * CAPACITY
    for i, r in enumerate(RATIOS):
        in_dim = 2 ** (n_ratios - i) * CAPACITY
        out_dim = 2 ** (n_ratios - i - 1) * CAPACITY
        if r > 1:
            # ConvTranspose1d weight layout: (in, out, 2*r)
            p[f"up{i}"] = 0.2 * jax.random.normal(
                nk(), (in_dim, out_dim, 2 * r), jnp.float32)
        else:
            p[f"up{i}"] = conv_w(out_dim, in_dim, 3)
        for j in range(3):
            p[f"res{i}_{j}_a"] = conv_w(out_dim, out_dim, 3)
            p[f"res{i}_{j}_b"] = conv_w(out_dim, out_dim, 3)
    p["wave"] = conv_w(DATA_SIZE, out_dim, 7)
    p["loud"] = conv_w(1, out_dim, 2 * LOUD_STRIDE + 1)
    if USE_NOISE:
        ch = [out_dim] * len(NOISE_RATIOS) + [DATA_SIZE * NOISE_BANDS]
        for i in range(len(NOISE_RATIOS)):
            p[f"noise{i}_w"] = conv_w(ch[i + 1], ch[i], 3)
            p[f"noise{i}_b"] = 0.1 * jax.random.normal(nk(), (ch[i + 1],), jnp.float32)
    return p


# ============================================================================
# Forward pass
# ============================================================================

def generator_forward(params, x, noise_key, add_noise=True, batch_fold=None):
    B, _, L0 = x.shape
    if batch_fold is None:
        # keep >= 2 grid steps so v7x's two TensorCores both get a step, while
        # folding the rest of the batch into the MXU lane axis (v5e/v6e fill).
        batch_fold = B // 2 if (B % 2 == 0 and B >= 2) else 1
    assert B % batch_fold == 0
    nblk = B // batch_fold

    weights = _pack_inputs(params, L0, batch_fold)
    L_out = L0 * int(np.prod(RATIOS))
    ch_nz = DATA_SIZE * NOISE_BANDS
    l_nz = _noise_out_len(L_out)

    out_shapes = [jax.ShapeDtypeStruct((nblk, DATA_SIZE, batch_fold * L_out),
                                       jnp.float32)]
    out_specs = [pl.BlockSpec((1, DATA_SIZE, batch_fold * L_out),
                              lambda b: (b, 0, 0))]
    if USE_NOISE:
        out_shapes.append(jax.ShapeDtypeStruct((nblk, ch_nz, batch_fold * l_nz),
                                               jnp.float32))
        out_specs.append(pl.BlockSpec((1, ch_nz, batch_fold * l_nz),
                                      lambda b: (b, 0, 0)))

    def _wspec(w):
        nd = w.ndim
        return pl.BlockSpec(w.shape, lambda b, _nd=nd: (0,) * _nd)

    in_specs = [pl.BlockSpec((batch_fold, LATENT_SIZE, L0), lambda b: (b, 0, 0))]
    in_specs += [_wspec(w) for w in weights]

    outs = pl.pallas_call(
        _generator_kernel,
        out_shape=out_shapes,
        grid=(nblk,),
        in_specs=in_specs,
        out_specs=out_specs,
        compiler_params=pltpu.CompilerParams(
            dimension_semantics=("parallel",),          # 2 steps -> v7x's 2 TCs
            vmem_limit_bytes=32 * 1024 * 1024),
        # TODO(synk): at production RAVE sizes, tile L inside the kernel with
        # pltpu.emit_pipeline and replace the interleave matmuls with strided
        # stores to keep v7x's 64 MiB VMEM budget.
    )(x.astype(jnp.float32), *weights)

    def unfold(o, per_len):
        c = o.shape[1]
        return (o.reshape(nblk, c, batch_fold, per_len)
                 .transpose(0, 2, 1, 3).reshape(B, c, per_len))

    wl = unfold(outs[0], L_out)                     # tanh(wave) * mod_sigmoid(loud)
    if add_noise and USE_NOISE:
        amp = unfold(outs[1], l_nz)
        noise = _noise_fft_tail(amp, noise_key)
        return wl + noise
    return wl


# ============================================================================
# Demo
# ============================================================================

if __name__ == "__main__":
    key = jax.random.PRNGKey(0)
    pkey, xkey, nkey = jax.random.split(key, 3)

    params = init_params(pkey)
    B, L0 = 4, 16
    x = jax.random.normal(xkey, (B, LATENT_SIZE, L0), jnp.float32)

    fwd = jax.jit(functools.partial(generator_forward, add_noise=True))
    y = fwd(params, x, nkey)
    jax.block_until_ready(y)

    expected_len = L0 * int(np.prod(RATIOS))
    assert y.shape == (B, DATA_SIZE, expected_len), y.shape
    assert bool(jnp.all(jnp.isfinite(y)))
    print("KERNEL_OK")
</pallas_src>

<mosaic_0001>
module attributes {stable_mosaic.version = 11 : i64} {
  func.func @_generator_kernel(%arg0: i32, %arg1: memref<2x8x16xf32, #tpu.memory_space<vmem>>, %arg2: memref<32x56xbf16, #tpu.memory_space<vmem>>, %arg3: memref<32x96xbf16, #tpu.memory_space<vmem>>, %arg4: memref<2x32x64xbf16, #tpu.memory_space<vmem>>, %arg5: memref<6x16x48xbf16, #tpu.memory_space<vmem>>, %arg6: memref<16x48xbf16, #tpu.memory_space<vmem>>, %arg7: memref<2x64x128xbf16, #tpu.memory_space<vmem>>, %arg8: memref<6x8x24xbf16, #tpu.memory_space<vmem>>, %arg9: memref<10x56xbf16, #tpu.memory_space<vmem>>, %arg10: memref<128x64xbf16, #tpu.memory_space<vmem>>, %arg11: memref<3x24xbf16, #tpu.memory_space<vmem>>, %arg12: memref<62x32xbf16, #tpu.memory_space<vmem>>, %arg13: memref<8x1xf32, #tpu.memory_space<vmem>>, %arg14: memref<3x1xf32, #tpu.memory_space<vmem>>, %arg15: memref<1x1x128xf32, #tpu.memory_space<vmem>>, %arg16: memref<1x3x32xf32, #tpu.memory_space<vmem>>) attributes {dimension_semantics = [#tpu.dimension_semantics<parallel>], iteration_bounds = array<i64: 2>, scalar_prefetch = 0 : i64, scratch_operands = 0 : i64, tpu.core_type = #tpu.core_type<tc>, window_params = [{transform_indices = @transform_0, window_bounds = array<i64: 2, 8, 16>}, {pipeline_mode = #tpu.pipeline_mode<synchronous>, transform_indices = @transform_1, window_bounds = array<i64: 32, 56>}, {pipeline_mode = #tpu.pipeline_mode<synchronous>, transform_indices = @transform_2, window_bounds = array<i64: 32, 96>}, {pipeline_mode = #tpu.pipeline_mode<synchronous>, transform_indices = @transform_3, window_bounds = array<i64: 2, 32, 64>}, {pipeline_mode = #tpu.pipeline_mode<synchronous>, transform_indices = @transform_4, window_bounds = array<i64: 6, 16, 48>}, {pipeline_mode = #tpu.pipeline_mode<synchronous>, transform_indices = @transform_5, window_bounds = array<i64: 16, 48>}, {pipeline_mode = #tpu.pipeline_mode<synchronous>, transform_indices = @transform_6, window_bounds = array<i64: 2, 64, 128>}, {pipeline_mode = #tpu.pipeline_mode<synchronous>, transform_indices = @transform_7, window_bounds = array<i64: 6, 8, 24>}, {pipeline_mode = #tpu.pipeline_mode<synchronous>, transform_indices = @transform_8, window_bounds = array<i64: 10, 56>}, {pipeline_mode = #tpu.pipeline_mode<synchronous>, transform_indices = @transform_9, window_bounds = array<i64: 128, 64>}, {pipeline_mode = #tpu.pipeline_mode<synchronous>, transform_indices = @transform_10, window_bounds = array<i64: 3, 24>}, {pipeline_mode = #tpu.pipeline_mode<synchronous>, transform_indices = @transform_11, window_bounds = array<i64: 62, 32>}, {pipeline_mode = #tpu.pipeline_mode<synchronous>, transform_indices = @transform_12, window_bounds = array<i64: 8, 1>}, {pipeline_mode = #tpu.pipeline_mode<synchronous>, transform_indices = @transform_13, window_bounds = array<i64: 3, 1>}, {transform_indices = @transform_14, window_bounds = array<i64: 1, 1, 128>}, {transform_indices = @transform_15, window_bounds = array<i64: 1, 3, 32>}]} {
    %c0 = arith.constant 0 : index
    %c0_0 = arith.constant 0 : index
    %c0_1 = arith.constant 0 : index
    %0 = vector.load %arg1[%c0, %c0_0, %c0_1] : memref<2x8x16xf32, #tpu.memory_space<vmem>>, vector<1x8x16xf32>
    %1 = vector.shape_cast %0 : vector<1x8x16xf32> to vector<8x16xf32>
    %c1 = arith.constant 1 : index
    %c0_2 = arith.constant 0 : index
    %c0_3 = arith.constant 0 : index
    %2 = vector.load %arg1[%c1, %c0_2, %c0_3] : memref<2x8x16xf32, #tpu.memory_space<vmem>>, vector<1x8x16xf32>
    %3 = vector.shape_cast %2 : vector<1x8x16xf32> to vector<8x16xf32>
    %4 = tpu.concatenate %1, %3 in 1 : vector<8x16xf32>, vector<8x16xf32> -> vector<8x32xf32>
    %5 = arith.truncf %4 : vector<8x32xf32> to vector<8x32xbf16>
    %c0_4 = arith.constant 0 : index
    %c0_5 = arith.constant 0 : index
    %6 = vector.load %arg2[%c0_4, %c0_5] : memref<32x56xbf16, #tpu.memory_space<vmem>>, vector<32x56xbf16>
    %7 = vector.extract_strided_slice %5 {offsets = [0, 0], sizes = [8, 16], strides = [1, 1]} : vector<8x32xbf16> to vector<8x16xbf16>
    %cst = arith.constant 0.000000e+00 : bf16
    %8 = vector.broadcast %cst : bf16 to vector<8x3xbf16>
    %9 = vector.extract_strided_slice %7 {offsets = [0, 0], sizes = [8, 13], strides = [1, 1]} : vector<8x16xbf16> to vector<8x13xbf16>
    %10 = tpu.concatenate %8, %9 in 1 : vector<8x3xbf16>, vector<8x13xbf16> -> vector<8x16xbf16>
    %cst_6 = arith.constant 0.000000e+00 : bf16
    %11 = vector.broadcast %cst_6 : bf16 to vector<8x2xbf16>
    %12 = vector.extract_strided_slice %7 {offsets = [0, 0], sizes = [8, 14], strides = [1, 1]} : vector<8x16xbf16> to vector<8x14xbf16>
    %13 = tpu.concatenate %11, %12 in 1 : vector<8x2xbf16>, vector<8x14xbf16> -> vector<8x16xbf16>
    %cst_7 = arith.constant 0.000000e+00 : bf16
    %14 = vector.broadcast %cst_7 : bf16 to vector<8x1xbf16>
    %15 = vector.extract_strided_slice %7 {offsets = [0, 0], sizes = [8, 15], strides = [1, 1]} : vector<8x16xbf16> to vector<8x15xbf16>
    %16 = tpu.concatenate %14, %15 in 1 : vector<8x1xbf16>, vector<8x15xbf16> -> vector<8x16xbf16>
    %17 = vector.extract_strided_slice %7 {offsets = [0, 1], sizes = [8, 15], strides = [1, 1]} : vector<8x16xbf16> to vector<8x15xbf16>
    %cst_8 = arith.constant 0.000000e+00 : bf16
    %18 = vector.broadcast %cst_8 : bf16 to vector<8x1xbf16>
    %19 = tpu.concatenate %17, %18 in 1 : vector<8x15xbf16>, vector<8x1xbf16> -> vector<8x16xbf16>
    %20 = vector.extract_strided_slice %7 {offsets = [0, 2], sizes = [8, 14], strides = [1, 1]} : vector<8x16xbf16> to vector<8x14xbf16>
    %cst_9 = arith.constant 0.000000e+00 : bf16
    %21 = vector.broadcast %cst_9 : bf16 to vector<8x2xbf16>
    %22 = tpu.concatenate %20, %21 in 1 : vector<8x14xbf16>, vector<8x2xbf16> -> vector<8x16xbf16>
    %23 = vector.extract_strided_slice %7 {offsets = [0, 3], sizes = [8, 13], strides = [1, 1]} : vector<8x16xbf16> to vector<8x13xbf16>
    %cst_10 = arith.constant 0.000000e+00 : bf16
    %24 = vector.broadcast %cst_10 : bf16 to vector<8x3xbf16>
    %25 = tpu.concatenate %23, %24 in 1 : vector<8x13xbf16>, vector<8x3xbf16> -> vector<8x16xbf16>
    %26 = tpu.concatenate %10, %13, %16, %7, %19, %22, %25 in 0 : vector<8x16xbf16>, vector<8x16xbf16>, vector<8x16xbf16>, vector<8x16xbf16>, vector<8x16xbf16>, vector<8x16xbf16>, vector<8x16xbf16> -> vector<56x16xbf16>
    %27 = vector.extract_strided_slice %5 {offsets = [0, 16], sizes = [8, 16], strides = [1, 1]} : vector<8x32xbf16> to vector<8x16xbf16>
    %cst_11 = arith.constant 0.000000e+00 : bf16
    %28 = vector.broadcast %cst_11 : bf16 to vector<8x3xbf16>
    %29 = vector.extract_strided_slice %27 {offsets = [0, 0], sizes = [8, 13], strides = [1, 1]} : vector<8x16xbf16> to vector<8x13xbf16>
    %30 = tpu.concatenate %28, %29 in 1 : vector<8x3xbf16>, vector<8x13xbf16> -> vector<8x16xbf16>
    %cst_12 = arith.constant 0.000000e+00 : bf16
    %31 = vector.broadcast %cst_12 : bf16 to vector<8x2xbf16>
    %32 = vector.extract_strided_slice %27 {offsets = [0, 0], sizes = [8, 14], strides = [1, 1]} : vector<8x16xbf16> to vector<8x14xbf16>
    %33 = tpu.concatenate %31, %32 in 1 : vector<8x2xbf16>, vector<8x14xbf16> -> vector<8x16xbf16>
    %cst_13 = arith.constant 0.000000e+00 : bf16
    %34 = vector.broadcast %cst_13 : bf16 to vector<8x1xbf16>
    %35 = vector.extract_strided_slice %27 {offsets = [0, 0], sizes = [8, 15], strides = [1, 1]} : vector<8x16xbf16> to vector<8x15xbf16>
    %36 = tpu.concatenate %34, %35 in 1 : vector<8x1xbf16>, vector<8x15xbf16> -> vector<8x16xbf16>
    %37 = vector.extract_strided_slice %27 {offsets = [0, 1], sizes = [8, 15], strides = [1, 1]} : vector<8x16xbf16> to vector<8x15xbf16>
    %cst_14 = arith.constant 0.000000e+00 : bf16
    %38 = vector.broadcast %cst_14 : bf16 to vector<8x1xbf16>
    %39 = tpu.concatenate %37, %38 in 1 : vector<8x15xbf16>, vector<8x1xbf16> -> vector<8x16xbf16>
    %40 = vector.extract_strided_slice %27 {offsets = [0, 2], sizes = [8, 14], strides = [1, 1]} : vector<8x16xbf16> to vector<8x14xbf16>
    %cst_15 = arith.constant 0.000000e+00 : bf16
    %41 = vector.broadcast %cst_15 : bf16 to vector<8x2xbf16>
    %42 = tpu.concatenate %40, %41 in 1 : vector<8x14xbf16>, vector<8x2xbf16> -> vector<8x16xbf16>
    %43 = vector.extract_strided_slice %27 {offsets = [0, 3], sizes = [8, 13], strides = [1, 1]} : vector<8x16xbf16> to vector<8x13xbf16>
    %cst_16 = arith.constant 0.000000e+00 : bf16
    %44 = vector.broadcast %cst_16 : bf16 to vector<8x3xbf16>
    %45 = tpu.concatenate %43, %44 in 1 : vector<8x13xbf16>, vector<8x3xbf16> -> vector<8x16xbf16>
    %46 = tpu.concatenate %30, %33, %36, %27, %39, %42, %45 in 0 : vector<8x16xbf16>, vector<8x16xbf16>, vector<8x16xbf16>, vector<8x16xbf16>, vector<8x16xbf16>, vector<8x16xbf16>, vector<8x16xbf16> -> vector<56x16xbf16>
    %47 = tpu.concatenate %26, %46 in 1 : vector<56x16xbf16>, vector<56x16xbf16> -> vector<56x32xbf16>
    %cst_17 = arith.constant dense<0.000000e+00> : vector<32x32xf32>
    %48 = tpu.matmul %6, %47, %cst_17 {dimension_numbers = #tpu.dot_dimension_numbers<[1], [0], [0], [1], [0, 0, 1, 1], [], []>} : vector<32x56xbf16>, vector<56x32xbf16>, vector<32x32xf32> -> vector<32x32xf32>
    %49 = arith.truncf %48 : vector<32x32xf32> to vector<32x32xbf16>
    %cst_18 = arith.constant 0.000000e+00 : bf16
    %50 = vector.broadcast %cst_18 : bf16 to vector<32x32xbf16>
    %51 = arith.cmpf ogt, %49, %50 : vector<32x32xbf16>
    %cst_19 = arith.constant 2.001950e-01 : bf16
    %52 = vector.broadcast %cst_19 : bf16 to vector<32x32xbf16>
    %53 = arith.mulf %52, %49 : vector<32x32xbf16>
    %54 = arith.select %51, %49, %53 : vector<32x32xi1>, vector<32x32xbf16>
    %c0_20 = arith.constant 0 : index
    %c0_21 = arith.constant 0 : index
    %55 = vector.load %arg3[%c0_20, %c0_21] : memref<32x96xbf16, #tpu.memory_space<vmem>>, vector<32x96xbf16>
    %56 = vector.extract_strided_slice %54 {offsets = [0, 0], sizes = [32, 16], strides = [1, 1]} : vector<32x32xbf16> to vector<32x16xbf16>
    %cst_22 = arith.constant 0.000000e+00 : bf16
    %57 = vector.broadcast %cst_22 : bf16 to vector<32x1xbf16>
    %58 = vector.extract_strided_slice %56 {offsets = [0, 0], sizes = [32, 15], strides = [1, 1]} : vector<32x16xbf16> to vector<32x15xbf16>
    %59 = tpu.concatenate %57, %58 in 1 : vector<32x1xbf16>, vector<32x15xbf16> -> vector<32x16xbf16>
    %60 = vector.extract_strided_slice %56 {offsets = [0, 1], sizes = [32, 15], strides = [1, 1]} : vector<32x16xbf16> to vector<32x15xbf16>
    %cst_23 = arith.constant 0.000000e+00 : bf16
    %61 = vector.broadcast %cst_23 : bf16 to vector<32x1xbf16>
    %62 = tpu.concatenate %60, %61 in 1 : vector<32x15xbf16>, vector<32x1xbf16> -> vector<32x16xbf16>
    %63 = tpu.concatenate %59, %56, %62 in 0 : vector<32x16xbf16>, vector<32x16xbf16>, vector<32x16xbf16> -> vector<96x16xbf16>
    %64 = vector.extract_strided_slice %54 {offsets = [0, 16], sizes = [32, 16], strides = [1, 1]} : vector<32x32xbf16> to vector<32x16xbf16>
    %cst_24 = arith.constant 0.000000e+00 : bf16
    %65 = vector.broadcast %cst_24 : bf16 to vector<32x1xbf16>
    %66 = vector.extract_strided_slice %64 {offsets = [0, 0], sizes = [32, 15], strides = [1, 1]} : vector<32x16xbf16> to vector<32x15xbf16>
    %67 = tpu.concatenate %65, %66 in 1 : vector<32x1xbf16>, vector<32x15xbf16> -> vector<32x16xbf16>
    %68 = vector.extract_strided_slice %64 {offsets = [0, 1], sizes = [32, 15], strides = [1, 1]} : vector<32x16xbf16> to vector<32x15xbf16>
    %cst_25 = arith.constant 0.000000e+00 : bf16
    %69 = vector.broadcast %cst_25 : bf16 to vector<32x1xbf16>
    %70 = tpu.concatenate %68, %69 in 1 : vector<32x15xbf16>, vector<32x1xbf16> -> vector<32x16xbf16>
    %71 = tpu.concatenate %67, %64, %70 in 0 : vector<32x16xbf16>, vector<32x16xbf16>, vector<32x16xbf16> -> vector<96x16xbf16>
    %72 = tpu.concatenate %63, %71 in 1 : vector<96x16xbf16>, vector<96x16xbf16> -> vector<96x32xbf16>
    %cst_26 = arith.constant dense<0.000000e+00> : vector<32x32xf32>
    %73 = tpu.matmul %55, %72, %cst_26 {dimension_numbers = #tpu.dot_dimension_numbers<[1], [0], [0], [1], [0, 0, 1, 1], [], []>} : vector<32x96xbf16>, vector<96x32xbf16>, vector<32x32xf32> -> vector<32x32xf32>
    %74 = arith.truncf %73 : vector<32x32xf32> to vector<32x32xbf16>
    %75 = vector.extract_strided_slice %74 {offsets = [0, 0], sizes = [16, 32], strides = [1, 1]} : vector<32x32xbf16> to vector<16x32xbf16>
    %c0_27 = arith.constant 0 : index
    %c0_28 = arith.constant 0 : index
    %c0_29 = arith.constant 0 : index
    %76 = vector.load %arg4[%c0_27, %c0_28, %c0_29] : memref<2x32x64xbf16, #tpu.memory_space<vmem>>, vector<1x32x64xbf16>
    %77 = vector.shape_cast %76 : vector<1x32x64xbf16> to vector<32x64xbf16>
    %cst_30 = arith.constant dense<0.000000e+00> : vector<16x64xf32>
    %78 = tpu.matmul %75, %77, %cst_30 {dimension_numbers = #tpu.dot_dimension_numbers<[1], [0], [0], [1], [0, 0, 1, 1], [], []>} : vector<16x32xbf16>, vector<32x64xbf16>, vector<16x64xf32> -> vector<16x64xf32>
    %79 = vector.extract_strided_slice %74 {offsets = [16, 0], sizes = [16, 32], strides = [1, 1]} : vector<32x32xbf16> to vector<16x32xbf16>
    %c1_31 = arith.constant 1 : index
    %c0_32 = arith.constant 0 : index
    %c0_33 = arith.constant 0 : index
    %80 = vector.load %arg4[%c1_31, %c0_32, %c0_33] : memref<2x32x64xbf16, #tpu.memory_space<vmem>>, vector<1x32x64xbf16>
    %81 = vector.shape_cast %80 : vector<1x32x64xbf16> to vector<32x64xbf16>
    %cst_34 = arith.constant dense<0.000000e+00> : vector<16x64xf32>
    %82 = tpu.matmul %79, %81, %cst_34 {dimension_numbers = #tpu.dot_dimension_numbers<[1], [0], [0], [1], [0, 0, 1, 1], [], []>} : vector<16x32xbf16>, vector<32x64xbf16>, vector<16x64xf32> -> vector<16x64xf32>
    %83 = arith.addf %78, %82 : vector<16x64xf32>
    %84 = arith.truncf %83 : vector<16x64xf32> to vector<16x64xbf16>
    %cst_35 = arith.constant 0.000000e+00 : bf16
    %85 = vector.broadcast %cst_35 : bf16 to vector<16x64xbf16>
    %86 = arith.cmpf ogt, %84, %85 : vector<16x64xbf16>
    %cst_36 = arith.constant 2.001950e-01 : bf16
    %87 = vector.broadcast %cst_36 : bf16 to vector<16x64xbf16>
    %88 = arith.mulf %87, %84 : vector<16x64xbf16>
    %89 = arith.select %86, %84, %88 : vector<16x64xi1>, vector<16x64xbf16>
    %c0_37 = arith.constant 0 : index
    %c0_38 = arith.constant 0 : index
    %c0_39 = arith.constant 0 : index
    %90 = vector.load %arg5[%c0_37, %c0_38, %c0_39] : memref<6x16x48xbf16, #tpu.memory_space<vmem>>, vector<1x16x48xbf16>
    %91 = vector.shape_cast %90 : vector<1x16x48xbf16> to vector<16x48xbf16>
    %92 = vector.extract_strided_slice %89 {offsets = [0, 0], sizes = [16, 32], strides = [1, 1]} : vector<16x64xbf16> to vector<16x32xbf16>
    %cst_40 = arith.constant 0.000000e+00 : bf16
    %93 = vector.broadcast %cst_40 : bf16 to vector<16x1xbf16>
    %94 = vector.extract_strided_slice %92 {offsets = [0, 0], sizes = [16, 31], strides = [1, 1]} : vector<16x32xbf16> to vector<16x31xbf16>
    %95 = tpu.concatenate %93, %94 in 1 : vector<16x1xbf16>, vector<16x31xbf16> -> vector<16x32xbf16>
    %96 = vector.extract_strided_slice %92 {offsets = [0, 1], sizes = [16, 31], strides = [1, 1]} : vector<16x32xbf16> to vector<16x31xbf16>
    %cst_41 = arith.constant 0.000000e+00 : bf16
    %97 = vector.broadcast %cst_41 : bf16 to vector<16x1xbf16>
    %98 = tpu.concatenate %96, %97 in 1 : vector<16x31xbf16>, vector<16x1xbf16> -> vector<16x32xbf16>
    %99 = tpu.concatenate %95, %92, %98 in 0 : vector<16x32xbf16>, vector<16x32xbf16>, vector<16x32xbf16> -> vector<48x32xbf16>
    %100 = vector.extract_strided_slice %89 {offsets = [0, 32], sizes = [16, 32], strides = [1, 1]} : vector<16x64xbf16> to vector<16x32xbf16>
    %cst_42 = arith.constant 0.000000e+00 : bf16
    %101 = vector.broadcast %cst_42 : bf16 to vector<16x1xbf16>
    %102 = vector.extract_strided_slice %100 {offsets = [0, 0], sizes = [16, 31], strides = [1, 1]} : vector<16x32xbf16> to vector<16x31xbf16>
    %103 = tpu.concatenate %101, %102 in 1 : vector<16x1xbf16>, vector<16x31xbf16> -> vector<16x32xbf16>
    %104 = vector.extract_strided_slice %100 {offsets = [0, 1], sizes = [16, 31], strides = [1, 1]} : vector<16x32xbf16> to vector<16x31xbf16>
    %cst_43 = arith.constant 0.000000e+00 : bf16
    %105 = vector.broadcast %cst_43 : bf16 to vector<16x1xbf16>
    %106 = tpu.concatenate %104, %105 in 1 : vector<16x31xbf16>, vector<16x1xbf16> -> vector<16x32xbf16>
    %107 = tpu.concatenate %103, %100, %106 in 0 : vector<16x32xbf16>, vector<16x32xbf16>, vector<16x32xbf16> -> vector<48x32xbf16>
    %108 = tpu.concatenate %99, %107 in 1 : vector<48x32xbf16>, vector<48x32xbf16> -> vector<48x64xbf16>
    %cst_44 = arith.constant dense<0.000000e+00> : vector<16x64xf32>
    %109 = tpu.matmul %91, %108, %cst_44 {dimension_numbers = #tpu.dot_dimension_numbers<[1], [0], [0], [1], [0, 0, 1, 1], [], []>} : vector<16x48xbf16>, vector<48x64xbf16>, vector<16x64xf32> -> vector<16x64xf32>
    %cst_45 = arith.constant 0.000000e+00 : f32
    %110 = vector.broadcast %cst_45 : f32 to vector<16x64xf32>
    %111 = arith.cmpf ogt, %109, %110 : vector<16x64xf32>
    %cst_46 = arith.constant 2.000000e-01 : f32
    %112 = vector.broadcast %cst_46 : f32 to vector<16x64xf32>
    %113 = arith.mulf %112, %109 : vector<16x64xf32>
    %114 = arith.select %111, %109, %113 : vector<16x64xi1>, vector<16x64xf32>
    %115 = arith.truncf %114 : vector<16x64xf32> to vector<16x64xbf16>
    %c1_47 = arith.constant 1 : index
    %c0_48 = arith.constant 0 : index
    %c0_49 = arith.constant 0 : index
    %116 = vector.load %arg5[%c1_47, %c0_48, %c0_49] : memref<6x16x48xbf16, #tpu.memory_space<vmem>>, vector<1x16x48xbf16>
    %117 = vector.shape_cast %116 : vector<1x16x48xbf16> to vector<16x48xbf16>
    %118 = vector.extract_strided_slice %115 {offsets = [0, 0], sizes = [16, 32], strides = [1, 1]} : vector<16x64xbf16> to vector<16x32xbf16>
    %cst_50 = arith.constant 0.000000e+00 : bf16
    %119 = vector.broadcast %cst_50 : bf16 to vector<16x1xbf16>
    %120 = vector.extract_strided_slice %118 {offsets = [0, 0], sizes = [16, 31], strides = [1, 1]} : vector<16x32xbf16> to vector<16x31xbf16>
    %121 = tpu.concatenate %119, %120 in 1 : vector<16x1xbf16>, vector<16x31xbf16> -> vector<16x32xbf16>
    %122 = vector.extract_strided_slice %118 {offsets = [0, 1], sizes = [16, 31], strides = [1, 1]} : vector<16x32xbf16> to vector<16x31xbf16>
    %cst_51 = arith.constant 0.000000e+00 : bf16
    %123 = vector.broadcast %cst_51 : bf16 to vector<16x1xbf16>
    %124 = tpu.concatenate %122, %123 in 1 : vector<16x31xbf16>, vector<16x1xbf16> -> vector<16x32xbf16>
    %125 = tpu.concatenate %121, %118, %124 in 0 : vector<16x32xbf16>, vector<16x32xbf16>, vector<16x32xbf16> -> vector<48x32xbf16>
    %126 = vector.extract_strided_slice %115 {offsets = [0, 32], sizes = [16, 32], strides = [1, 1]} : vector<16x64xbf16> to vector<16x32xbf16>
    %cst_52 = arith.constant 0.000000e+00 : bf16
    %127 = vector.broadcast %cst_52 : bf16 to vector<16x1xbf16>
    %128 = vector.extract_strided_slice %126 {offsets = [0, 0], sizes = [16, 31], strides = [1, 1]} : vector<16x32xbf16> to vector<16x31xbf16>
    %129 = tpu.concatenate %127, %128 in 1 : vector<16x1xbf16>, vector<16x31xbf16> -> vector<16x32xbf16>
    %130 = vector.extract_strided_slice %126 {offsets = [0, 1], sizes = [16, 31], strides = [1, 1]} : vector<16x32xbf16> to vector<16x31xbf16>
    %cst_53 = arith.constant 0.000000e+00 : bf16
    %131 = vector.broadcast %cst_53 : bf16 to vector<16x1xbf16>
    %132 = tpu.concatenate %130, %131 in 1 : vector<16x31xbf16>, vector<16x1xbf16> -> vector<16x32xbf16>
    %133 = tpu.concatenate %129, %126, %132 in 0 : vector<16x32xbf16>, vector<16x32xbf16>, vector<16x32xbf16> -> vector<48x32xbf16>
    %134 = tpu.concatenate %125, %133 in 1 : vector<48x32xbf16>, vector<48x32xbf16> -> vector<48x64xbf16>
    %cst_54 = arith.constant dense<0.000000e+00> : vector<16x64xf32>
    %135 = tpu.matmul %117, %134, %cst_54 {dimension_numbers = #tpu.dot_dimension_numbers<[1], [0], [0], [1], [0, 0, 1, 1], [], []>} : vector<16x48xbf16>, vector<48x64xbf16>, vector<16x64xf32> -> vector<16x64xf32>
    %136 = arith.truncf %135 : vector<16x64xf32> to vector<16x64xbf16>
    %137 = arith.addf %84, %136 : vector<16x64xbf16>
    %cst_55 = arith.constant 0.000000e+00 : bf16
    %138 = vector.broadcast %cst_55 : bf16 to vector<16x64xbf16>
    %139 = arith.cmpf ogt, %137, %138 : vector<16x64xbf16>
    %cst_56 = arith.constant 2.001950e-01 : bf16
    %140 = vector.broadcast %cst_56 : bf16 to vector<16x64xbf16>
    %141 = arith.mulf %140, %137 : vector<16x64xbf16>
    %142 = arith.select %139, %137, %141 : vector<16x64xi1>, vector<16x64xbf16>
    %c2 = arith.constant 2 : index
    %c0_57 = arith.constant 0 : index
    %c0_58 = arith.constant 0 : index
    %143 = vector.load %arg5[%c2, %c0_57, %c0_58] : memref<6x16x48xbf16, #tpu.memory_space<vmem>>, vector<1x16x48xbf16>
    %144 = vector.shape_cast %143 : vector<1x16x48xbf16> to vector<16x48xbf16>
    %145 = vector.extract_strided_slice %142 {offsets = [0, 0], sizes = [16, 32], strides = [1, 1]} : vector<16x64xbf16> to vector<16x32xbf16>
    %cst_59 = arith.constant 0.000000e+00 : bf16
    %146 = vector.broadcast %cst_59 : bf16 to vector<16x3xbf16>
    %147 = vector.extract_strided_slice %145 {offsets = [0, 0], sizes = [16, 29], strides = [1, 1]} : vector<16x32xbf16> to vector<16x29xbf16>
    %148 = tpu.concatenate %146, %147 in 1 : vector<16x3xbf16>, vector<16x29xbf16> -> vector<16x32xbf16>
    %149 = vector.extract_strided_slice %145 {offsets = [0, 3], sizes = [16, 29], strides = [1, 1]} : vector<16x32xbf16> to vector<16x29xbf16>
    %cst_60 = arith.constant 0.000000e+00 : bf16
    %150 = vector.broadcast %cst_60 : bf16 to vector<16x3xbf16>
    %151 = tpu.concatenate %149, %150 in 1 : vector<16x29xbf16>, vector<16x3xbf16> -> vector<16x32xbf16>
    %152 = tpu.concatenate %148, %145, %151 in 0 : vector<16x32xbf16>, vector<16x32xbf16>, vector<16x32xbf16> -> vector<48x32xbf16>
    %153 = vector.extract_strided_slice %142 {offsets = [0, 32], sizes = [16, 32], strides = [1, 1]} : vector<16x64xbf16> to vector<16x32xbf16>
    %cst_61 = arith.constant 0.000000e+00 : bf16
    %154 = vector.broadcast %cst_61 : bf16 to vector<16x3xbf16>
    %155 = vector.extract_strided_slice %153 {offsets = [0, 0], sizes = [16, 29], strides = [1, 1]} : vector<16x32xbf16> to vector<16x29xbf16>
    %156 = tpu.concatenate %154, %155 in 1 : vector<16x3xbf16>, vector<16x29xbf16> -> vector<16x32xbf16>
    %157 = vector.extract_strided_slice %153 {offsets = [0, 3], sizes = [16, 29], strides = [1, 1]} : vector<16x32xbf16> to vector<16x29xbf16>
    %cst_62 = arith.constant 0.000000e+00 : bf16
    %158 = vector.broadcast %cst_62 : bf16 to vector<16x3xbf16>
    %159 = tpu.concatenate %157, %158 in 1 : vector<16x29xbf16>, vector<16x3xbf16> -> vector<16x32xbf16>
    %160 = tpu.concatenate %156, %153, %159 in 0 : vector<16x32xbf16>, vector<16x32xbf16>, vector<16x32xbf16> -> vector<48x32xbf16>
    %161 = tpu.concatenate %152, %160 in 1 : vector<48x32xbf16>, vector<48x32xbf16> -> vector<48x64xbf16>
    %cst_63 = arith.constant dense<0.000000e+00> : vector<16x64xf32>
    %162 = tpu.matmul %144, %161, %cst_63 {dimension_numbers = #tpu.dot_dimension_numbers<[1], [0], [0], [1], [0, 0, 1, 1], [], []>} : vector<16x48xbf16>, vector<48x64xbf16>, vector<16x64xf32> -> vector<16x64xf32>
    %cst_64 = arith.constant 0.000000e+00 : f32
    %163 = vector.broadcast %cst_64 : f32 to vector<16x64xf32>
    %164 = arith.cmpf ogt, %162, %163 : vector<16x64xf32>
    %cst_65 = arith.constant 2.000000e-01 : f32
    %165 = vector.broadcast %cst_65 : f32 to vector<16x64xf32>
    %166 = arith.mulf %165, %162 : vector<16x64xf32>
    %167 = arith.select %164, %162, %166 : vector<16x64xi1>, vector<16x64xf32>
    %168 = arith.truncf %167 : vector<16x64xf32> to vector<16x64xbf16>
    %c3 = arith.constant 3 : index
    %c0_66 = arith.constant 0 : index
    %c0_67 = arith.constant 0 : index
    %169 = vector.load %arg5[%c3, %c0_66, %c0_67] : memref<6x16x48xbf16, #tpu.memory_space<vmem>>, vector<1x16x48xbf16>
    %170 = vector.shape_cast %169 : vector<1x16x48xbf16> to vector<16x48xbf16>
    %171 = vector.extract_strided_slice %168 {offsets = [0, 0], sizes = [16, 32], strides = [1, 1]} : vector<16x64xbf16> to vector<16x32xbf16>
    %cst_68 = arith.constant 0.000000e+00 : bf16
    %172 = vector.broadcast %cst_68 : bf16 to vector<16x1xbf16>
    %173 = vector.extract_strided_slice %171 {offsets = [0, 0], sizes = [16, 31], strides = [1, 1]} : vector<16x32xbf16> to vector<16x31xbf16>
    %174 = tpu.concatenate %172, %173 in 1 : vector<16x1xbf16>, vector<16x31xbf16> -> vector<16x32xbf16>
    %175 = vector.extract_strided_slice %171 {offsets = [0, 1], sizes = [16, 31], strides = [1, 1]} : vector<16x32xbf16> to vector<16x31xbf16>
    %cst_69 = arith.constant 0.000000e+00 : bf16
    %176 = vector.broadcast %cst_69 : bf16 to vector<16x1xbf16>
    %177 = tpu.concatenate %175, %176 in 1 : vector<16x31xbf16>, vector<16x1xbf16> -> vector<16x32xbf16>
    %178 = tpu.concatenate %174, %171, %177 in 0 : vector<16x32xbf16>, vector<16x32xbf16>, vector<16x32xbf16> -> vector<48x32xbf16>
    %179 = vector.extract_strided_slice %168 {offsets = [0, 32], sizes = [16, 32], strides = [1, 1]} : vector<16x64xbf16> to vector<16x32xbf16>
    %cst_70 = arith.constant 0.000000e+00 : bf16
    %180 = vector.broadcast %cst_70 : bf16 to vector<16x1xbf16>
    %181 = vector.extract_strided_slice %179 {offsets = [0, 0], sizes = [16, 31], strides = [1, 1]} : vector<16x32xbf16> to vector<16x31xbf16>
    %182 = tpu.concatenate %180, %181 in 1 : vector<16x1xbf16>, vector<16x31xbf16> -> vector<16x32xbf16>
    %183 = vector.extract_strided_slice %179 {offsets = [0, 1], sizes = [16, 31], strides = [1, 1]} : vector<16x32xbf16> to vector<16x31xbf16>
    %cst_71 = arith.constant 0.000000e+00 : bf16
    %184 = vector.broadcast %cst_71 : bf16 to vector<16x1xbf16>
    %185 = tpu.concatenate %183, %184 in 1 : vector<16x31xbf16>, vector<16x1xbf16> -> vector<16x32xbf16>
    %186 = tpu.concatenate %182, %179, %185 in 0 : vector<16x32xbf16>, vector<16x32xbf16>, vector<16x32xbf16> -> vector<48x32xbf16>
    %187 = tpu.concatenate %178, %186 in 1 : vector<48x32xbf16>, vector<48x32xbf16> -> vector<48x64xbf16>
    %cst_72 = arith.constant dense<0.000000e+00> : vector<16x64xf32>
    %188 = tpu.matmul %170, %187, %cst_72 {dimension_numbers = #tpu.dot_dimension_numbers<[1], [0], [0], [1], [0, 0, 1, 1], [], []>} : vector<16x48xbf16>, vector<48x64xbf16>, vector<16x64xf32> -> vector<16x64xf32>
    %189 = arith.truncf %188 : vector<16x64xf32> to vector<16x64xbf16>
    %190 = arith.addf %137, %189 : vector<16x64xbf16>
    %cst_73 = arith.constant 0.000000e+00 : bf16
    %191 = vector.broadcast %cst_73 : bf16 to vector<16x64xbf16>
    %192 = arith.cmpf ogt, %190, %191 : vector<16x64xbf16>
    %cst_74 = arith.constant 2.001950e-01 : bf16
    %193 = vector.broadcast %cst_74 : bf16 to vector<16x64xbf16>
    %194 = arith.mulf %193, %190 : vector<16x64xbf16>
    %195 = arith.select %192, %190, %194 : vector<16x64xi1>, vector<16x64xbf16>
    %c4 = arith.constant 4 : index
    %c0_75 = arith.constant 0 : index
    %c0_76 = arith.constant 0 : index
    %196 = vector.load %arg5[%c4, %c0_75, %c0_76] : memref<6x16x48xbf16, #tpu.memory_space<vmem>>, vector<1x16x48xbf16>
    %197 = vector.shape_cast %196 : vector<1x16x48xbf16> to vector<16x48xbf16>
    %198 = vector.extract_strided_slice %195 {offsets = [0, 0], sizes = [16, 32], strides = [1, 1]} : vector<16x64xbf16> to vector<16x32xbf16>
    %cst_77 = arith.constant 0.000000e+00 : bf16
    %199 = vector.broadcast %cst_77 : bf16 to vector<16x9xbf16>
    %200 = vector.extract_strided_slice %198 {offsets = [0, 0], sizes = [16, 23], strides = [1, 1]} : vector<16x32xbf16> to vector<16x23xbf16>
    %201 = tpu.concatenate %199, %200 in 1 : vector<16x9xbf16>, vector<16x23xbf16> -> vector<16x32xbf16>
    %202 = vector.extract_strided_slice %198 {offsets = [0, 9], sizes = [16, 23], strides = [1, 1]} : vector<16x32xbf16> to vector<16x23xbf16>
    %cst_78 = arith.constant 0.000000e+00 : bf16
    %203 = vector.broadcast %cst_78 : bf16 to vector<16x9xbf16>
    %204 = tpu.concatenate %202, %203 in 1 : vector<16x23xbf16>, vector<16x9xbf16> -> vector<16x32xbf16>
    %205 = tpu.concatenate %201, %198, %204 in 0 : vector<16x32xbf16>, vector<16x32xbf16>, vector<16x32xbf16> -> vector<48x32xbf16>
    %206 = vector.extract_strided_slice %195 {offsets = [0, 32], sizes = [16, 32], strides = [1, 1]} : vector<16x64xbf16> to vector<16x32xbf16>
    %cst_79 = arith.constant 0.000000e+00 : bf16
    %207 = vector.broadcast %cst_79 : bf16 to vector<16x9xbf16>
    %208 = vector.extract_strided_slice %206 {offsets = [0, 0], sizes = [16, 23], strides = [1, 1]} : vector<16x32xbf16> to vector<16x23xbf16>
    %209 = tpu.concatenate %207, %208 in 1 : vector<16x9xbf16>, vector<16x23xbf16> -> vector<16x32xbf16>
    %210 = vector.extract_strided_slice %206 {offsets = [0, 9], sizes = [16, 23], strides = [1, 1]} : vector<16x32xbf16> to vector<16x23xbf16>
    %cst_80 = arith.constant 0.000000e+00 : bf16
    %211 = vector.broadcast %cst_80 : bf16 to vector<16x9xbf16>
    %212 = tpu.concatenate %210, %211 in 1 : vector<16x23xbf16>, vector<16x9xbf16> -> vector<16x32xbf16>
    %213 = tpu.concatenate %209, %206, %212 in 0 : vector<16x32xbf16>, vector<16x32xbf16>, vector<16x32xbf16> -> vector<48x32xbf16>
    %214 = tpu.concatenate %205, %213 in 1 : vector<48x32xbf16>, vector<48x32xbf16> -> vector<48x64xbf16>
    %cst_81 = arith.constant dense<0.000000e+00> : vector<16x64xf32>
    %215 = tpu.matmul %197, %214, %cst_81 {dimension_numbers = #tpu.dot_dimension_numbers<[1], [0], [0], [1], [0, 0, 1, 1], [], []>} : vector<16x48xbf16>, vector<48x64xbf16>, vector<16x64xf32> -> vector<16x64xf32>
    %cst_82 = arith.constant 0.000000e+00 : f32
    %216 = vector.broadcast %cst_82 : f32 to vector<16x64xf32>
    %217 = arith.cmpf ogt, %215, %216 : vector<16x64xf32>
    %cst_83 = arith.constant 2.000000e-01 : f32
    %218 = vector.broadcast %cst_83 : f32 to vector<16x64xf32>
    %219 = arith.mulf %218, %215 : vector<16x64xf32>
    %220 = arith.select %217, %215, %219 : vector<16x64xi1>, vector<16x64xf32>
    %221 = arith.truncf %220 : vector<16x64xf32> to vector<16x64xbf16>
    %c5 = arith.constant 5 : index
    %c0_84 = arith.constant 0 : index
    %c0_85 = arith.constant 0 : index
    %222 = vector.load %arg5[%c5, %c0_84, %c0_85] : memref<6x16x48xbf16, #tpu.memory_space<vmem>>, vector<1x16x48xbf16>
    %223 = vector.shape_cast %222 : vector<1x16x48xbf16> to vector<16x48xbf16>
    %224 = vector.extract_strided_slice %221 {offsets = [0, 0], sizes = [16, 32], strides = [1, 1]} : vector<16x64xbf16> to vector<16x32xbf16>
    %cst_86 = arith.constant 0.000000e+00 : bf16
    %225 = vector.broadcast %cst_86 : bf16 to vector<16x1xbf16>
    %226 = vector.extract_strided_slice %224 {offsets = [0, 0], sizes = [16, 31], strides = [1, 1]} : vector<16x32xbf16> to vector<16x31xbf16>
    %227 = tpu.concatenate %225, %226 in 1 : vector<16x1xbf16>, vector<16x31xbf16> -> vector<16x32xbf16>
    %228 = vector.extract_strided_slice %224 {offsets = [0, 1], sizes = [16, 31], strides = [1, 1]} : vector<16x32xbf16> to vector<16x31xbf16>
    %cst_87 = arith.constant 0.000000e+00 : bf16
    %229 = vector.broadcast %cst_87 : bf16 to vector<16x1xbf16>
    %230 = tpu.concatenate %228, %229 in 1 : vector<16x31xbf16>, vector<16x1xbf16> -> vector<16x32xbf16>
    %231 = tpu.concatenate %227, %224, %230 in 0 : vector<16x32xbf16>, vector<16x32xbf16>, vector<16x32xbf16> -> vector<48x32xbf16>
    %232 = vector.extract_strided_slice %221 {offsets = [0, 32], sizes = [16, 32], strides = [1, 1]} : vector<16x64xbf16> to vector<16x32xbf16>
    %cst_88 = arith.constant 0.000000e+00 : bf16
    %233 = vector.broadcast %cst_88 : bf16 to vector<16x1xbf16>
    %234 = vector.extract_strided_slice %232 {offsets = [0, 0], sizes = [16, 31], strides = [1, 1]} : vector<16x32xbf16> to vector<16x31xbf16>
    %235 = tpu.concatenate %233, %234 in 1 : vector<16x1xbf16>, vector<16x31xbf16> -> vector<16x32xbf16>
    %236 = vector.extract_strided_slice %232 {offsets = [0, 1], sizes = [16, 31], strides = [1, 1]} : vector<16x32xbf16> to vector<16x31xbf16>
    %cst_89 = arith.constant 0.000000e+00 : bf16
    %237 = vector.broadcast %cst_89 : bf16 to vector<16x1xbf16>
    %238 = tpu.concatenate %236, %237 in 1 : vector<16x31xbf16>, vector<16x1xbf16> -> vector<16x32xbf16>
    %239 = tpu.concatenate %235, %232, %238 in 0 : vector<16x32xbf16>, vector<16x32xbf16>, vector<16x32xbf16> -> vector<48x32xbf16>
    %240 = tpu.concatenate %231, %239 in 1 : vector<48x32xbf16>, vector<48x32xbf16> -> vector<48x64xbf16>
    %cst_90 = arith.constant dense<0.000000e+00> : vector<16x64xf32>
    %241 = tpu.matmul %223, %240, %cst_90 {dimension_numbers = #tpu.dot_dimension_numbers<[1], [0], [0], [1], [0, 0, 1, 1], [], []>} : vector<16x48xbf16>, vector<48x64xbf16>, vector<16x64xf32> -> vector<16x64xf32>
    %242 = arith.truncf %241 : vector<16x64xf32> to vector<16x64xbf16>
    %243 = arith.addf %190, %242 : vector<16x64xbf16>
    %cst_91 = arith.constant 0.000000e+00 : bf16
    %244 = vector.broadcast %cst_91 : bf16 to vector<16x64xbf16>
    %245 = arith.cmpf ogt, %243, %244 : vector<16x64xbf16>
    %cst_92 = arith.constant 2.001950e-01 : bf16
    %246 = vector.broadcast %cst_92 : bf16 to vector<16x64xbf16>
    %247 = arith.mulf %246, %243 : vector<16x64xbf16>
    %248 = arith.select %245, %243, %247 : vector<16x64xi1>, vector<16x64xbf16>
    %c0_93 = arith.constant 0 : index
    %c0_94 = arith.constant 0 : index
    %249 = vector.load %arg6[%c0_93, %c0_94] : memref<16x48xbf16, #tpu.memory_space<vmem>>, vector<16x48xbf16>
    %250 = vector.extract_strided_slice %248 {offsets = [0, 0], sizes = [16, 32], strides = [1, 1]} : vector<16x64xbf16> to vector<16x32xbf16>
    %cst_95 = arith.constant 0.000000e+00 : bf16
    %251 = vector.broadcast %cst_95 : bf16 to vector<16x1xbf16>
    %252 = vector.extract_strided_slice %250 {offsets = [0, 0], sizes = [16, 31], strides = [1, 1]} : vector<16x32xbf16> to vector<16x31xbf16>
    %253 = tpu.concatenate %251, %252 in 1 : vector<16x1xbf16>, vector<16x31xbf16> -> vector<16x32xbf16>
    %254 = vector.extract_strided_slice %250 {offsets = [0, 1], sizes = [16, 31], strides = [1, 1]} : vector<16x32xbf16> to vector<16x31xbf16>
    %cst_96 = arith.constant 0.000000e+00 : bf16
    %255 = vector.broadcast %cst_96 : bf16 to vector<16x1xbf16>
    %256 = tpu.concatenate %254, %255 in 1 : vector<16x31xbf16>, vector<16x1xbf16> -> vector<16x32xbf16>
    %257 = tpu.concatenate %253, %250, %256 in 0 : vector<16x32xbf16>, vector<16x32xbf16>, vector<16x32xbf16> -> vector<48x32xbf16>
    %258 = vector.extract_strided_slice %248 {offsets = [0, 32], sizes = [16, 32], strides = [1, 1]} : vector<16x64xbf16> to vector<16x32xbf16>
    %cst_97 = arith.constant 0.000000e+00 : bf16
    %259 = vector.broadcast %cst_97 : bf16 to vector<16x1xbf16>
    %260 = vector.extract_strided_slice %258 {offsets = [0, 0], sizes = [16, 31], strides = [1, 1]} : vector<16x32xbf16> to vector<16x31xbf16>
    %261 = tpu.concatenate %259, %260 in 1 : vector<16x1xbf16>, vector<16x31xbf16> -> vector<16x32xbf16>
    %262 = vector.extract_strided_slice %258 {offsets = [0, 1], sizes = [16, 31], strides = [1, 1]} : vector<16x32xbf16> to vector<16x31xbf16>
    %cst_98 = arith.constant 0.000000e+00 : bf16
    %263 = vector.broadcast %cst_98 : bf16 to vector<16x1xbf16>
    %264 = tpu.concatenate %262, %263 in 1 : vector<16x31xbf16>, vector<16x1xbf16> -> vector<16x32xbf16>
    %265 = tpu.concatenate %261, %258, %264 in 0 : vector<16x32xbf16>, vector<16x32xbf16>, vector<16x32xbf16> -> vector<48x32xbf16>
    %266 = tpu.concatenate %257, %265 in 1 : vector<48x32xbf16>, vector<48x32xbf16> -> vector<48x64xbf16>
    %cst_99 = arith.constant dense<0.000000e+00> : vector<16x64xf32>
    %267 = tpu.matmul %249, %266, %cst_99 {dimension_numbers = #tpu.dot_dimension_numbers<[1], [0], [0], [1], [0, 0, 1, 1], [], []>} : vector<16x48xbf16>, vector<48x64xbf16>, vector<16x64xf32> -> vector<16x64xf32>
    %268 = arith.truncf %267 : vector<16x64xf32> to vector<16x64xbf16>
    %269 = vector.extract_strided_slice %268 {offsets = [0, 0], sizes = [8, 64], strides = [1, 1]} : vector<16x64xbf16> to vector<8x64xbf16>
    %c0_100 = arith.constant 0 : index
    %c0_101 = arith.constant 0 : index
    %c0_102 = arith.constant 0 : index
    %270 = vector.load %arg7[%c0_100, %c0_101, %c0_102] : memref<2x64x128xbf16, #tpu.memory_space<vmem>>, vector<1x64x128xbf16>
    %271 = vector.shape_cast %270 : vector<1x64x128xbf16> to vector<64x128xbf16>
    %cst_103 = arith.constant dense<0.000000e+00> : vector<8x128xf32>
    %272 = tpu.matmul %269, %271, %cst_103 {dimension_numbers = #tpu.dot_dimension_numbers<[1], [0], [0], [1], [0, 0, 1, 1], [], []>} : vector<8x64xbf16>, vector<64x128xbf16>, vector<8x128xf32> -> vector<8x128xf32>
    %273 = vector.extract_strided_slice %268 {offsets = [8, 0], sizes = [8, 64], strides = [1, 1]} : vector<16x64xbf16> to vector<8x64xbf16>
    %c1_104 = arith.constant 1 : index
    %c0_105 = arith.constant 0 : index
    %c0_106 = arith.constant 0 : index
    %274 = vector.load %arg7[%c1_104, %c0_105, %c0_106] : memref<2x64x128xbf16, #tpu.memory_space<vmem>>, vector<1x64x128xbf16>
    %275 = vector.shape_cast %274 : vector<1x64x128xbf16> to vector<64x128xbf16>
    %cst_107 = arith.constant dense<0.000000e+00> : vector<8x128xf32>
    %276 = tpu.matmul %273, %275, %cst_107 {dimension_numbers = #tpu.dot_dimension_numbers<[1], [0], [0], [1], [0, 0, 1, 1], [], []>} : vector<8x64xbf16>, vector<64x128xbf16>, vector<8x128xf32> -> vector<8x128xf32>
    %277 = arith.addf %272, %276 : vector<8x128xf32>
    %278 = arith.truncf %277 : vector<8x128xf32> to vector<8x128xbf16>
    %cst_108 = arith.constant 0.000000e+00 : bf16
    %279 = vector.broadcast %cst_108 : bf16 to vector<8x128xbf16>
    %280 = arith.cmpf ogt, %278, %279 : vector<8x128xbf16>
    %cst_109 = arith.constant 2.001950e-01 : bf16
    %281 = vector.broadcast %cst_109 : bf16 to vector<8x128xbf16>
    %282 = arith.mulf %281, %278 : vector<8x128xbf16>
    %283 = arith.select %280, %278, %282 : vector<8x128xi1>, vector<8x128xbf16>
    %c0_110 = arith.constant 0 : index
    %c0_111 = arith.constant 0 : index
    %c0_112 = arith.constant 0 : index
    %284 = vector.load %arg8[%c0_110, %c0_111, %c0_112] : memref<6x8x24xbf16, #tpu.memory_space<vmem>>, vector<1x8x24xbf16>
    %285 = vector.shape_cast %284 : vector<1x8x24xbf16> to vector<8x24xbf16>
    %286 = vector.extract_strided_slice %283 {offsets = [0, 0], sizes = [8, 64], strides = [1, 1]} : vector<8x128xbf16> to vector<8x64xbf16>
    %cst_113 = arith.constant 0.000000e+00 : bf16
    %287 = vector.broadcast %cst_113 : bf16 to vector<8x1xbf16>
    %288 = vector.extract_strided_slice %286 {offsets = [0, 0], sizes = [8, 63], strides = [1, 1]} : vector<8x64xbf16> to vector<8x63xbf16>
    %289 = tpu.concatenate %287, %288 in 1 : vector<8x1xbf16>, vector<8x63xbf16> -> vector<8x64xbf16>
    %290 = vector.extract_strided_slice %286 {offsets = [0, 1], sizes = [8, 63], strides = [1, 1]} : vector<8x64xbf16> to vector<8x63xbf16>
    %cst_114 = arith.constant 0.000000e+00 : bf16
    %291 = vector.broadcast %cst_114 : bf16 to vector<8x1xbf16>
    %292 = tpu.concatenate %290, %291 in 1 : vector<8x63xbf16>, vector<8x1xbf16> -> vector<8x64xbf16>
    %293 = tpu.concatenate %289, %286, %292 in 0 : vector<8x64xbf16>, vector<8x64xbf16>, vector<8x64xbf16> -> vector<24x64xbf16>
    %294 = vector.extract_strided_slice %283 {offsets = [0, 64], sizes = [8, 64], strides = [1, 1]} : vector<8x128xbf16> to vector<8x64xbf16>
    %cst_115 = arith.constant 0.000000e+00 : bf16
    %295 = vector.broadcast %cst_115 : bf16 to vector<8x1xbf16>
    %296 = vector.extract_strided_slice %294 {offsets = [0, 0], sizes = [8, 63], strides = [1, 1]} : vector<8x64xbf16> to vector<8x63xbf16>
    %297 = tpu.concatenate %295, %296 in 1 : vector<8x1xbf16>, vector<8x63xbf16> -> vector<8x64xbf16>
    %298 = vector.extract_strided_slice %294 {offsets = [0, 1], sizes = [8, 63], strides = [1, 1]} : vector<8x64xbf16> to vector<8x63xbf16>
    %cst_116 = arith.constant 0.000000e+00 : bf16
    %299 = vector.broadcast %cst_116 : bf16 to vector<8x1xbf16>
    %300 = tpu.concatenate %298, %299 in 1 : vector<8x63xbf16>, vector<8x1xbf16> -> vector<8x64xbf16>
    %301 = tpu.concatenate %297, %294, %300 in 0 : vector<8x64xbf16>, vector<8x64xbf16>, vector<8x64xbf16> -> vector<24x64xbf16>
    %302 = tpu.concatenate %293, %301 in 1 : vector<24x64xbf16>, vector<24x64xbf16> -> vector<24x128xbf16>
    %cst_117 = arith.constant dense<0.000000e+00> : vector<8x128xf32>
    %303 = tpu.matmul %285, %302, %cst_117 {dimension_numbers = #tpu.dot_dimension_numbers<[1], [0], [0], [1], [0, 0, 1, 1], [], []>} : vector<8x24xbf16>, vector<24x128xbf16>, vector<8x128xf32> -> vector<8x128xf32>
    %cst_118 = arith.constant 0.000000e+00 : f32
    %304 = vector.broadcast %cst_118 : f32 to vector<8x128xf32>
    %305 = arith.cmpf ogt, %303, %304 : vector<8x128xf32>
    %cst_119 = arith.constant 2.000000e-01 : f32
    %306 = vector.broadcast %cst_119 : f32 to vector<8x128xf32>
    %307 = arith.mulf %306, %303 : vector<8x128xf32>
    %308 = arith.select %305, %303, %307 : vector<8x128xi1>, vector<8x128xf32>
    %309 = arith.truncf %308 : vector<8x128xf32> to vector<8x128xbf16>
    %c1_120 = arith.constant 1 : index
    %c0_121 = arith.constant 0 : index
    %c0_122 = arith.constant 0 : index
    %310 = vector.load %arg8[%c1_120, %c0_121, %c0_122] : memref<6x8x24xbf16, #tpu.memory_space<vmem>>, vector<1x8x24xbf16>
    %311 = vector.shape_cast %310 : vector<1x8x24xbf16> to vector<8x24xbf16>
    %312 = vector.extract_strided_slice %309 {offsets = [0, 0], sizes = [8, 64], strides = [1, 1]} : vector<8x128xbf16> to vector<8x64xbf16>
    %cst_123 = arith.constant 0.000000e+00 : bf16
    %313 = vector.broadcast %cst_123 : bf16 to vector<8x1xbf16>
    %314 = vector.extract_strided_slice %312 {offsets = [0, 0], sizes = [8, 63], strides = [1, 1]} : vector<8x64xbf16> to vector<8x63xbf16>
    %315 = tpu.concatenate %313, %314 in 1 : vector<8x1xbf16>, vector<8x63xbf16> -> vector<8x64xbf16>
    %316 = vector.extract_strided_slice %312 {offsets = [0, 1], sizes = [8, 63], strides = [1, 1]} : vector<8x64xbf16> to vector<8x63xbf16>
    %cst_124 = arith.constant 0.000000e+00 : bf16
    %317 = vector.broadcast %cst_124 : bf16 to vector<8x1xbf16>
    %318 = tpu.concatenate %316, %317 in 1 : vector<8x63xbf16>, vector<8x1xbf16> -> vector<8x64xbf16>
    %319 = tpu.concatenate %315, %312, %318 in 0 : vector<8x64xbf16>, vector<8x64xbf16>, vector<8x64xbf16> -> vector<24x64xbf16>
    %320 = vector.extract_strided_slice %309 {offsets = [0, 64], sizes = [8, 64], strides = [1, 1]} : vector<8x128xbf16> to vector<8x64xbf16>
    %cst_125 = arith.constant 0.000000e+00 : bf16
    %321 = vector.broadcast %cst_125 : bf16 to vector<8x1xbf16>
    %322 = vector.extract_strided_slice %320 {offsets = [0, 0], sizes = [8, 63], strides = [1, 1]} : vector<8x64xbf16> to vector<8x63xbf16>
    %323 = tpu.concatenate %321, %322 in 1 : vector<8x1xbf16>, vector<8x63xbf16> -> vector<8x64xbf16>
    %324 = vector.extract_strided_slice %320 {offsets = [0, 1], sizes = [8, 63], strides = [1, 1]} : vector<8x64xbf16> to vector<8x63xbf16>
    %cst_126 = arith.constant 0.000000e+00 : bf16
    %325 = vector.broadcast %cst_126 : bf16 to vector<8x1xbf16>
    %326 = tpu.concatenate %324, %325 in 1 : vector<8x63xbf16>, vector<8x1xbf16> -> vector<8x64xbf16>
    %327 = tpu.concatenate %323, %320, %326 in 0 : vector<8x64xbf16>, vector<8x64xbf16>, vector<8x64xbf16> -> vector<24x64xbf16>
    %328 = tpu.concatenate %319, %327 in 1 : vector<24x64xbf16>, vector<24x64xbf16> -> vector<24x128xbf16>
    %cst_127 = arith.constant dense<0.000000e+00> : vector<8x128xf32>
    %329 = tpu.matmul %311, %328, %cst_127 {dimension_numbers = #tpu.dot_dimension_numbers<[1], [0], [0], [1], [0, 0, 1, 1], [], []>} : vector<8x24xbf16>, vector<24x128xbf16>, vector<8x128xf32> -> vector<8x128xf32>
    %330 = arith.truncf %329 : vector<8x128xf32> to vector<8x128xbf16>
    %331 = arith.addf %278, %330 : vector<8x128xbf16>
    %cst_128 = arith.constant 0.000000e+00 : bf16
    %332 = vector.broadcast %cst_128 : bf16 to vector<8x128xbf16>
    %333 = arith.cmpf ogt, %331, %332 : vector<8x128xbf16>
    %cst_129 = arith.constant 2.001950e-01 : bf16
    %334 = vector.broadcast %cst_129 : bf16 to vector<8x128xbf16>
    %335 = arith.mulf %334, %331 : vector<8x128xbf16>
    %336 = arith.select %333, %331, %335 : vector<8x128xi1>, vector<8x128xbf16>
    %c2_130 = arith.constant 2 : index
    %c0_131 = arith.constant 0 : index
    %c0_132 = arith.constant 0 : index
    %337 = vector.load %arg8[%c2_130, %c0_131, %c0_132] : memref<6x8x24xbf16, #tpu.memory_space<vmem>>, vector<1x8x24xbf16>
    %338 = vector.shape_cast %337 : vector<1x8x24xbf16> to vector<8x24xbf16>
    %339 = vector.extract_strided_slice %336 {offsets = [0, 0], sizes = [8, 64], strides = [1, 1]} : vector<8x128xbf16> to vector<8x64xbf16>
    %cst_133 = arith.constant 0.000000e+00 : bf16
    %340 = vector.broadcast %cst_133 : bf16 to vector<8x3xbf16>
    %341 = vector.extract_strided_slice %339 {offsets = [0, 0], sizes = [8, 61], strides = [1, 1]} : vector<8x64xbf16> to vector<8x61xbf16>
    %342 = tpu.concatenate %340, %341 in 1 : vector<8x3xbf16>, vector<8x61xbf16> -> vector<8x64xbf16>
    %343 = vector.extract_strided_slice %339 {offsets = [0, 3], sizes = [8, 61], strides = [1, 1]} : vector<8x64xbf16> to vector<8x61xbf16>
    %cst_134 = arith.constant 0.000000e+00 : bf16
    %344 = vector.broadcast %cst_134 : bf16 to vector<8x3xbf16>
    %345 = tpu.concatenate %343, %344 in 1 : vector<8x61xbf16>, vector<8x3xbf16> -> vector<8x64xbf16>
    %346 = tpu.concatenate %342, %339, %345 in 0 : vector<8x64xbf16>, vector<8x64xbf16>, vector<8x64xbf16> -> vector<24x64xbf16>
    %347 = vector.extract_strided_slice %336 {offsets = [0, 64], sizes = [8, 64], strides = [1, 1]} : vector<8x128xbf16> to vector<8x64xbf16>
    %cst_135 = arith.constant 0.000000e+00 : bf16
    %348 = vector.broadcast %cst_135 : bf16 to vector<8x3xbf16>
    %349 = vector.extract_strided_slice %347 {offsets = [0, 0], sizes = [8, 61], strides = [1, 1]} : vector<8x64xbf16> to vector<8x61xbf16>
    %350 = tpu.concatenate %348, %349 in 1 : vector<8x3xbf16>, vector<8x61xbf16> -> vector<8x64xbf16>
    %351 = vector.extract_strided_slice %347 {offsets = [0, 3], sizes = [8, 61], strides = [1, 1]} : vector<8x64xbf16> to vector<8x61xbf16>
    %cst_136 = arith.constant 0.000000e+00 : bf16
    %352 = vector.broadcast %cst_136 : bf16 to vector<8x3xbf16>
    %353 = tpu.concatenate %351, %352 in 1 : vector<8x61xbf16>, vector<8x3xbf16> -> vector<8x64xbf16>
    %354 = tpu.concatenate %350, %347, %353 in 0 : vector<8x64xbf16>, vector<8x64xbf16>, vector<8x64xbf16> -> vector<24x64xbf16>
    %355 = tpu.concatenate %346, %354 in 1 : vector<24x64xbf16>, vector<24x64xbf16> -> vector<24x128xbf16>
    %cst_137 = arith.constant dense<0.000000e+00> : vector<8x128xf32>
    %356 = tpu.matmul %338, %355, %cst_137 {dimension_numbers = #tpu.dot_dimension_numbers<[1], [0], [0], [1], [0, 0, 1, 1], [], []>} : vector<8x24xbf16>, vector<24x128xbf16>, vector<8x128xf32> -> vector<8x128xf32>
    %cst_138 = arith.constant 0.000000e+00 : f32
    %357 = vector.broadcast %cst_138 : f32 to vector<8x128xf32>
    %358 = arith.cmpf ogt, %356, %357 : vector<8x128xf32>
    %cst_139 = arith.constant 2.000000e-01 : f32
    %359 = vector.broadcast %cst_139 : f32 to vector<8x128xf32>
    %360 = arith.mulf %359, %356 : vector<8x128xf32>
    %361 = arith.select %358, %356, %360 : vector<8x128xi1>, vector<8x128xf32>
    %362 = arith.truncf %361 : vector<8x128xf32> to vector<8x128xbf16>
    %c3_140 = arith.constant 3 : index
    %c0_141 = arith.constant 0 : index
    %c0_142 = arith.constant 0 : index
    %363 = vector.load %arg8[%c3_140, %c0_141, %c0_142] : memref<6x8x24xbf16, #tpu.memory_space<vmem>>, vector<1x8x24xbf16>
    %364 = vector.shape_cast %363 : vector<1x8x24xbf16> to vector<8x24xbf16>
    %365 = vector.extract_strided_slice %362 {offsets = [0, 0], sizes = [8, 64], strides = [1, 1]} : vector<8x128xbf16> to vector<8x64xbf16>
    %cst_143 = arith.constant 0.000000e+00 : bf16
    %366 = vector.broadcast %cst_143 : bf16 to vector<8x1xbf16>
    %367 = vector.extract_strided_slice %365 {offsets = [0, 0], sizes = [8, 63], strides = [1, 1]} : vector<8x64xbf16> to vector<8x63xbf16>
    %368 = tpu.concatenate %366, %367 in 1 : vector<8x1xbf16>, vector<8x63xbf16> -> vector<8x64xbf16>
    %369 = vector.extract_strided_slice %365 {offsets = [0, 1], sizes = [8, 63], strides = [1, 1]} : vector<8x64xbf16> to vector<8x63xbf16>
    %cst_144 = arith.constant 0.000000e+00 : bf16
    %370 = vector.broadcast %cst_144 : bf16 to vector<8x1xbf16>
    %371 = tpu.concatenate %369, %370 in 1 : vector<8x63xbf16>, vector<8x1xbf16> -> vector<8x64xbf16>
    %372 = tpu.concatenate %368, %365, %371 in 0 : vector<8x64xbf16>, vector<8x64xbf16>, vector<8x64xbf16> -> vector<24x64xbf16>
    %373 = vector.extract_strided_slice %362 {offsets = [0, 64], sizes = [8, 64], strides = [1, 1]} : vector<8x128xbf16> to vector<8x64xbf16>
    %cst_145 = arith.constant 0.000000e+00 : bf16
    %374 = vector.broadcast %cst_145 : bf16 to vector<8x1xbf16>
    %375 = vector.extract_strided_slice %373 {offsets = [0, 0], sizes = [8, 63], strides = [1, 1]} : vector<8x64xbf16> to vector<8x63xbf16>
    %376 = tpu.concatenate %374, %375 in 1 : vector<8x1xbf16>, vector<8x63xbf16> -> vector<8x64xbf16>
    %377 = vector.extract_strided_slice %373 {offsets = [0, 1], sizes = [8, 63], strides = [1, 1]} : vector<8x64xbf16> to vector<8x63xbf16>
    %cst_146 = arith.constant 0.000000e+00 : bf16
    %378 = vector.broadcast %cst_146 : bf16 to vector<8x1xbf16>
    %379 = tpu.concatenate %377, %378 in 1 : vector<8x63xbf16>, vector<8x1xbf16> -> vector<8x64xbf16>
    %380 = tpu.concatenate %376, %373, %379 in 0 : vector<8x64xbf16>, vector<8x64xbf16>, vector<8x64xbf16> -> vector<24x64xbf16>
    %381 = tpu.concatenate %372, %380 in 1 : vector<24x64xbf16>, vector<24x64xbf16> -> vector<24x128xbf16>
    %cst_147 = arith.constant dense<0.000000e+00> : vector<8x128xf32>
    %382 = tpu.matmul %364, %381, %cst_147 {dimension_numbers = #tpu.dot_dimension_numbers<[1], [0], [0], [1], [0, 0, 1, 1], [], []>} : vector<8x24xbf16>, vector<24x128xbf16>, vector<8x128xf32> -> vector<8x128xf32>
    %383 = arith.truncf %382 : vector<8x128xf32> to vector<8x128xbf16>
    %384 = arith.addf %331, %383 : vector<8x128xbf16>
    %cst_148 = arith.constant 0.000000e+00 : bf16
    %385 = vector.broadcast %cst_148 : bf16 to vector<8x128xbf16>
    %386 = arith.cmpf ogt, %384, %385 : vector<8x128xbf16>
    %cst_149 = arith.constant 2.001950e-01 : bf16
    %387 = vector.broadcast %cst_149 : bf16 to vector<8x128xbf16>
    %388 = arith.mulf %387, %384 : vector<8x128xbf16>
    %389 = arith.select %386, %384, %388 : vector<8x128xi1>, vector<8x128xbf16>
    %c4_150 = arith.constant 4 : index
    %c0_151 = arith.constant 0 : index
    %c0_152 = arith.constant 0 : index
    %390 = vector.load %arg8[%c4_150, %c0_151, %c0_152] : memref<6x8x24xbf16, #tpu.memory_space<vmem>>, vector<1x8x24xbf16>
    %391 = vector.shape_cast %390 : vector<1x8x24xbf16> to vector<8x24xbf16>
    %392 = vector.extract_strided_slice %389 {offsets = [0, 0], sizes = [8, 64], strides = [1, 1]} : vector<8x128xbf16> to vector<8x64xbf16>
    %cst_153 = arith.constant 0.000000e+00 : bf16
    %393 = vector.broadcast %cst_153 : bf16 to vector<8x9xbf16>
    %394 = vector.extract_strided_slice %392 {offsets = [0, 0], sizes = [8, 55], strides = [1, 1]} : vector<8x64xbf16> to vector<8x55xbf16>
    %395 = tpu.concatenate %393, %394 in 1 : vector<8x9xbf16>, vector<8x55xbf16> -> vector<8x64xbf16>
    %396 = vector.extract_strided_slice %392 {offsets = [0, 9], sizes = [8, 55], strides = [1, 1]} : vector<8x64xbf16> to vector<8x55xbf16>
    %cst_154 = arith.constant 0.000000e+00 : bf16
    %397 = vector.broadcast %cst_154 : bf16 to vector<8x9xbf16>
    %398 = tpu.concatenate %396, %397 in 1 : vector<8x55xbf16>, vector<8x9xbf16> -> vector<8x64xbf16>
    %399 = tpu.concatenate %395, %392, %398 in 0 : vector<8x64xbf16>, vector<8x64xbf16>, vector<8x64xbf16> -> vector<24x64xbf16>
    %400 = vector.extract_strided_slice %389 {offsets = [0, 64], sizes = [8, 64], strides = [1, 1]} : vector<8x128xbf16> to vector<8x64xbf16>
    %cst_155 = arith.constant 0.000000e+00 : bf16
    %401 = vector.broadcast %cst_155 : bf16 to vector<8x9xbf16>
    %402 = vector.extract_strided_slice %400 {offsets = [0, 0], sizes = [8, 55], strides = [1, 1]} : vector<8x64xbf16> to vector<8x55xbf16>
    %403 = tpu.concatenate %401, %402 in 1 : vector<8x9xbf16>, vector<8x55xbf16> -> vector<8x64xbf16>
    %404 = vector.extract_strided_slice %400 {offsets = [0, 9], sizes = [8, 55], strides = [1, 1]} : vector<8x64xbf16> to vector<8x55xbf16>
    %cst_156 = arith.constant 0.000000e+00 : bf16
    %405 = vector.broadcast %cst_156 : bf16 to vector<8x9xbf16>
    %406 = tpu.concatenate %404, %405 in 1 : vector<8x55xbf16>, vector<8x9xbf16> -> vector<8x64xbf16>
    %407 = tpu.concatenate %403, %400, %406 in 0 : vector<8x64xbf16>, vector<8x64xbf16>, vector<8x64xbf16> -> vector<24x64xbf16>
    %408 = tpu.concatenate %399, %407 in 1 : vector<24x64xbf16>, vector<24x64xbf16> -> vector<24x128xbf16>
    %cst_157 = arith.constant dense<0.000000e+00> : vector<8x128xf32>
    %409 = tpu.matmul %391, %408, %cst_157 {dimension_numbers = #tpu.dot_dimension_numbers<[1], [0], [0], [1], [0, 0, 1, 1], [], []>} : vector<8x24xbf16>, vector<24x128xbf16>, vector<8x128xf32> -> vector<8x128xf32>
    %cst_158 = arith.constant 0.000000e+00 : f32
    %410 = vector.broadcast %cst_158 : f32 to vector<8x128xf32>
    %411 = arith.cmpf ogt, %409, %410 : vector<8x128xf32>
    %cst_159 = arith.constant 2.000000e-01 : f32
    %412 = vector.broadcast %cst_159 : f32 to vector<8x128xf32>
    %413 = arith.mulf %412, %409 : vector<8x128xf32>
    %414 = arith.select %411, %409, %413 : vector<8x128xi1>, vector<8x128xf32>
    %415 = arith.truncf %414 : vector<8x128xf32> to vector<8x128xbf16>
    %c5_160 = arith.constant 5 : index
    %c0_161 = arith.constant 0 : index
    %c0_162 = arith.constant 0 : index
    %416 = vector.load %arg8[%c5_160, %c0_161, %c0_162] : memref<6x8x24xbf16, #tpu.memory_space<vmem>>, vector<1x8x24xbf16>
    %417 = vector.shape_cast %416 : vector<1x8x24xbf16> to vector<8x24xbf16>
    %418 = vector.extract_strided_slice %415 {offsets = [0, 0], sizes = [8, 64], strides = [1, 1]} : vector<8x128xbf16> to vector<8x64xbf16>
    %cst_163 = arith.constant 0.000000e+00 : bf16
    %419 = vector.broadcast %cst_163 : bf16 to vector<8x1xbf16>
    %420 = vector.extract_strided_slice %418 {offsets = [0, 0], sizes = [8, 63], strides = [1, 1]} : vector<8x64xbf16> to vector<8x63xbf16>
    %421 = tpu.concatenate %419, %420 in 1 : vector<8x1xbf16>, vector<8x63xbf16> -> vector<8x64xbf16>
    %422 = vector.extract_strided_slice %418 {offsets = [0, 1], sizes = [8, 63], strides = [1, 1]} : vector<8x64xbf16> to vector<8x63xbf16>
    %cst_164 = arith.constant 0.000000e+00 : bf16
    %423 = vector.broadcast %cst_164 : bf16 to vector<8x1xbf16>
    %424 = tpu.concatenate %422, %423 in 1 : vector<8x63xbf16>, vector<8x1xbf16> -> vector<8x64xbf16>
    %425 = tpu.concatenate %421, %418, %424 in 0 : vector<8x64xbf16>, vector<8x64xbf16>, vector<8x64xbf16> -> vector<24x64xbf16>
    %426 = vector.extract_strided_slice %415 {offsets = [0, 64], sizes = [8, 64], strides = [1, 1]} : vector<8x128xbf16> to vector<8x64xbf16>
    %cst_165 = arith.constant 0.000000e+00 : bf16
    %427 = vector.broadcast %cst_165 : bf16 to vector<8x1xbf16>
    %428 = vector.extract_strided_slice %426 {offsets = [0, 0], sizes = [8, 63], strides = [1, 1]} : vector<8x64xbf16> to vector<8x63xbf16>
    %429 = tpu.concatenate %427, %428 in 1 : vector<8x1xbf16>, vector<8x63xbf16> -> vector<8x64xbf16>
    %430 = vector.extract_strided_slice %426 {offsets = [0, 1], sizes = [8, 63], strides = [1, 1]} : vector<8x64xbf16> to vector<8x63xbf16>
    %cst_166 = arith.constant 0.000000e+00 : bf16
    %431 = vector.broadcast %cst_166 : bf16 to vector<8x1xbf16>
    %432 = tpu.concatenate %430, %431 in 1 : vector<8x63xbf16>, vector<8x1xbf16> -> vector<8x64xbf16>
    %433 = tpu.concatenate %429, %426, %432 in 0 : vector<8x64xbf16>, vector<8x64xbf16>, vector<8x64xbf16> -> vector<24x64xbf16>
    %434 = tpu.concatenate %425, %433 in 1 : vector<24x64xbf16>, vector<24x64xbf16> -> vector<24x128xbf16>
    %cst_167 = arith.constant dense<0.000000e+00> : vector<8x128xf32>
    %435 = tpu.matmul %417, %434, %cst_167 {dimension_numbers = #tpu.dot_dimension_numbers<[1], [0], [0], [1], [0, 0, 1, 1], [], []>} : vector<8x24xbf16>, vector<24x128xbf16>, vector<8x128xf32> -> vector<8x128xf32>
    %436 = arith.truncf %435 : vector<8x128xf32> to vector<8x128xbf16>
    %437 = arith.addf %384, %436 : vector<8x128xbf16>
    %c0_168 = arith.constant 0 : index
    %c0_169 = arith.constant 0 : index
    %438 = vector.load %arg9[%c0_168, %c0_169] : memref<10x56xbf16, #tpu.memory_space<vmem>>, vector<10x56xbf16>
    %439 = vector.extract_strided_slice %437 {offsets = [0, 0], sizes = [8, 64], strides = [1, 1]} : vector<8x128xbf16> to vector<8x64xbf16>
    %cst_170 = arith.constant 0.000000e+00 : bf16
    %440 = vector.broadcast %cst_170 : bf16 to vector<8x3xbf16>
    %441 = vector.extract_strided_slice %439 {offsets = [0, 0], sizes = [8, 61], strides = [1, 1]} : vector<8x64xbf16> to vector<8x61xbf16>
    %442 = tpu.concatenate %440, %441 in 1 : vector<8x3xbf16>, vector<8x61xbf16> -> vector<8x64xbf16>
    %cst_171 = arith.constant 0.000000e+00 : bf16
    %443 = vector.broadcast %cst_171 : bf16 to vector<8x2xbf16>
    %444 = vector.extract_strided_slice %439 {offsets = [0, 0], sizes = [8, 62], strides = [1, 1]} : vector<8x64xbf16> to vector<8x62xbf16>
    %445 = tpu.concatenate %443, %444 in 1 : vector<8x2xbf16>, vector<8x62xbf16> -> vector<8x64xbf16>
    %cst_172 = arith.constant 0.000000e+00 : bf16
    %446 = vector.broadcast %cst_172 : bf16 to vector<8x1xbf16>
    %447 = vector.extract_strided_slice %439 {offsets = [0, 0], sizes = [8, 63], strides = [1, 1]} : vector<8x64xbf16> to vector<8x63xbf16>
    %448 = tpu.concatenate %446, %447 in 1 : vector<8x1xbf16>, vector<8x63xbf16> -> vector<8x64xbf16>
    %449 = vector.extract_strided_slice %439 {offsets = [0, 1], sizes = [8, 63], strides = [1, 1]} : vector<8x64xbf16> to vector<8x63xbf16>
    %cst_173 = arith.constant 0.000000e+00 : bf16
    %450 = vector.broadcast %cst_173 : bf16 to vector<8x1xbf16>
    %451 = tpu.concatenate %449, %450 in 1 : vector<8x63xbf16>, vector<8x1xbf16> -> vector<8x64xbf16>
    %452 = vector.extract_strided_slice %439 {offsets = [0, 2], sizes = [8, 62], strides = [1, 1]} : vector<8x64xbf16> to vector<8x62xbf16>
    %cst_174 = arith.constant 0.000000e+00 : bf16
    %453 = vector.broadcast %cst_174 : bf16 to vector<8x2xbf16>
    %454 = tpu.concatenate %452, %453 in 1 : vector<8x62xbf16>, vector<8x2xbf16> -> vector<8x64xbf16>
    %455 = vector.extract_strided_slice %439 {offsets = [0, 3], sizes = [8, 61], strides = [1, 1]} : vector<8x64xbf16> to vector<8x61xbf16>
    %cst_175 = arith.constant 0.000000e+00 : bf16
    %456 = vector.broadcast %cst_175 : bf16 to vector<8x3xbf16>
    %457 = tpu.concatenate %455, %456 in 1 : vector<8x61xbf16>, vector<8x3xbf16> -> vector<8x64xbf16>
    %458 = tpu.concatenate %442, %445, %448, %439, %451, %454, %457 in 0 : vector<8x64xbf16>, vector<8x64xbf16>, vector<8x64xbf16>, vector<8x64xbf16>, vector<8x64xbf16>, vector<8x64xbf16>, vector<8x64xbf16> -> vector<56x64xbf16>
    %459 = vector.extract_strided_slice %437 {offsets = [0, 64], sizes = [8, 64], strides = [1, 1]} : vector<8x128xbf16> to vector<8x64xbf16>
    %cst_176 = arith.constant 0.000000e+00 : bf16
    %460 = vector.broadcast %cst_176 : bf16 to vector<8x3xbf16>
    %461 = vector.extract_strided_slice %459 {offsets = [0, 0], sizes = [8, 61], strides = [1, 1]} : vector<8x64xbf16> to vector<8x61xbf16>
    %462 = tpu.concatenate %460, %461 in 1 : vector<8x3xbf16>, vector<8x61xbf16> -> vector<8x64xbf16>
    %cst_177 = arith.constant 0.000000e+00 : bf16
    %463 = vector.broadcast %cst_177 : bf16 to vector<8x2xbf16>
    %464 = vector.extract_strided_slice %459 {offsets = [0, 0], sizes = [8, 62], strides = [1, 1]} : vector<8x64xbf16> to vector<8x62xbf16>
    %465 = tpu.concatenate %463, %464 in 1 : vector<8x2xbf16>, vector<8x62xbf16> -> vector<8x64xbf16>
    %cst_178 = arith.constant 0.000000e+00 : bf16
    %466 = vector.broadcast %cst_178 : bf16 to vector<8x1xbf16>
    %467 = vector.extract_strided_slice %459 {offsets = [0, 0], sizes = [8, 63], strides = [1, 1]} : vector<8x64xbf16> to vector<8x63xbf16>
    %468 = tpu.concatenate %466, %467 in 1 : vector<8x1xbf16>, vector<8x63xbf16> -> vector<8x64xbf16>
    %469 = vector.extract_strided_slice %459 {offsets = [0, 1], sizes = [8, 63], strides = [1, 1]} : vector<8x64xbf16> to vector<8x63xbf16>
    %cst_179 = arith.constant 0.000000e+00 : bf16
    %470 = vector.broadcast %cst_179 : bf16 to vector<8x1xbf16>
    %471 = tpu.concatenate %469, %470 in 1 : vector<8x63xbf16>, vector<8x1xbf16> -> vector<8x64xbf16>
    %472 = vector.extract_strided_slice %459 {offsets = [0, 2], sizes = [8, 62], strides = [1, 1]} : vector<8x64xbf16> to vector<8x62xbf16>
    %cst_180 = arith.constant 0.000000e+00 : bf16
    %473 = vector.broadcast %cst_180 : bf16 to vector<8x2xbf16>
    %474 = tpu.concatenate %472, %473 in 1 : vector<8x62xbf16>, vector<8x2xbf16> -> vector<8x64xbf16>
    %475 = vector.extract_strided_slice %459 {offsets = [0, 3], sizes = [8, 61], strides = [1, 1]} : vector<8x64xbf16> to vector<8x61xbf16>
    %cst_181 = arith.constant 0.000000e+00 : bf16
    %476 = vector.broadcast %cst_181 : bf16 to vector<8x3xbf16>
    %477 = tpu.concatenate %475, %476 in 1 : vector<8x61xbf16>, vector<8x3xbf16> -> vector<8x64xbf16>
    %478 = tpu.concatenate %462, %465, %468, %459, %471, %474, %477 in 0 : vector<8x64xbf16>, vector<8x64xbf16>, vector<8x64xbf16>, vector<8x64xbf16>, vector<8x64xbf16>, vector<8x64xbf16>, vector<8x64xbf16> -> vector<56x64xbf16>
    %479 = tpu.concatenate %458, %478 in 1 : vector<56x64xbf16>, vector<56x64xbf16> -> vector<56x128xbf16>
    %cst_182 = arith.constant dense<0.000000e+00> : vector<10x128xf32>
    %480 = tpu.matmul %438, %479, %cst_182 {dimension_numbers = #tpu.dot_dimension_numbers<[1], [0], [0], [1], [0, 0, 1, 1], [], []>} : vector<10x56xbf16>, vector<56x128xbf16>, vector<10x128xf32> -> vector<10x128xf32>
    %481 = vector.extract_strided_slice %480 {offsets = [0, 0], sizes = [1, 128], strides = [1, 1]} : vector<10x128xf32> to vector<1x128xf32>
    %482 = vector.extract_strided_slice %480 {offsets = [1, 0], sizes = [1, 128], strides = [1, 1]} : vector<10x128xf32> to vector<1x128xf32>
    %483 = math.tanh %481 : vector<1x128xf32>
    %cst_183 = arith.constant 0.000000e+00 : f32
    %484 = vector.broadcast %cst_183 : f32 to vector<1x128xf32>
    %485 = arith.minimumf %482, %484 : vector<1x128xf32>
    %486 = math.absf %482 : vector<1x128xf32>
    %cst_184 = arith.constant 0.000000e+00 : f32
    %487 = vector.broadcast %cst_184 : f32 to vector<1x128xf32>
    %488 = arith.subf %487, %486 : vector<1x128xf32>
    %489 = math.exp %488 : vector<1x128xf32>
    %cst_185 = arith.constant 1.000000e+00 : f32
    %490 = vector.broadcast %cst_185 : f32 to vector<1x128xf32>
    %491 = arith.addf %490, %489 : vector<1x128xf32>
    %492 = math.log %491 : vector<1x128xf32>
    %493 = arith.subf %485, %492 : vector<1x128xf32>
    %cst_186 = arith.constant 2.300000e+00 : f32
    %494 = vector.broadcast %cst_186 : f32 to vector<1x128xf32>
    %495 = arith.mulf %494, %493 : vector<1x128xf32>
    %496 = math.exp %495 : vector<1x128xf32>
    %cst_187 = arith.constant 2.000000e+00 : f32
    %497 = vector.broadcast %cst_187 : f32 to vector<1x128xf32>
    %498 = arith.mulf %497, %496 : vector<1x128xf32>
    %cst_188 = arith.constant 1.000000e-07 : f32
    %499 = vector.broadcast %cst_188 : f32 to vector<1x128xf32>
    %500 = arith.addf %498, %499 : vector<1x128xf32>
    %501 = arith.mulf %483, %500 : vector<1x128xf32>
    %c0_189 = arith.constant 0 : index
    %c0_190 = arith.constant 0 : index
    %c0_191 = arith.constant 0 : index
    %502 = vector.load %arg15[%c0_189, %c0_190, %c0_191] : memref<1x1x128xf32, #tpu.memory_space<vmem>>, vector<1x1x128xf32>
    %503 = vector.shape_cast %502 : vector<1x1x128xf32> to vector<1x128xf32>
    %504 = vector.shape_cast %501 : vector<1x128xf32> to vector<1x1x128xf32>
    tpu.vector_store %arg15[%c0_189, %c0_190, %c0_191], %504 {strides = array<i32>} : memref<1x1x128xf32, #tpu.memory_space<vmem>>, vector<1x1x128xf32>,
    %505 = vector.extract_strided_slice %480 {offsets = [2, 0], sizes = [8, 128], strides = [1, 1]} : vector<10x128xf32> to vector<8x128xf32>
    %506 = arith.truncf %505 : vector<8x128xf32> to vector<8x128xbf16>
    %c0_192 = arith.constant 0 : index
    %c0_193 = arith.constant 0 : index
    %507 = vector.load %arg10[%c0_192, %c0_193] : memref<128x64xbf16, #tpu.memory_space<vmem>>, vector<128x64xbf16>
    %cst_194 = arith.constant dense<0.000000e+00> : vector<8x64xf32>
    %508 = tpu.matmul %506, %507, %cst_194 {dimension_numbers = #tpu.dot_dimension_numbers<[1], [0], [0], [1], [0, 0, 1, 1], [], []>} : vector<8x128xbf16>, vector<128x64xbf16>, vector<8x64xf32> -> vector<8x64xf32>
    %c0_195 = arith.constant 0 : index
    %c0_196 = arith.constant 0 : index
    %509 = vector.load %arg13[%c0_195, %c0_196] : memref<8x1xf32, #tpu.memory_space<vmem>>, vector<8x1xf32>
    %510 = vector.broadcast %509 : vector<8x1xf32> to vector<8x64xf32>
    %511 = arith.addf %508, %510 : vector<8x64xf32>
    %cst_197 = arith.constant 0.000000e+00 : f32
    %512 = vector.broadcast %cst_197 : f32 to vector<8x64xf32>
    %513 = arith.cmpf ogt, %511, %512 : vector<8x64xf32>
    %cst_198 = arith.constant 2.000000e-01 : f32
    %514 = vector.broadcast %cst_198 : f32 to vector<8x64xf32>
    %515 = arith.mulf %514, %511 : vector<8x64xf32>
    %516 = arith.select %513, %511, %515 : vector<8x64xi1>, vector<8x64xf32>
    %517 = arith.truncf %516 : vector<8x64xf32> to vector<8x64xbf16>
    %c0_199 = arith.constant 0 : index
    %c0_200 = arith.constant 0 : index
    %518 = vector.load %arg11[%c0_199, %c0_200] : memref<3x24xbf16, #tpu.memory_space<vmem>>, vector<3x24xbf16>
    %519 = vector.extract_strided_slice %517 {offsets = [0, 0], sizes = [8, 32], strides = [1, 1]} : vector<8x64xbf16> to vector<8x32xbf16>
    %cst_201 = arith.constant 0.000000e+00 : bf16
    %520 = vector.broadcast %cst_201 : bf16 to vector<8x1xbf16>
    %521 = vector.extract_strided_slice %519 {offsets = [0, 0], sizes = [8, 30], strides = [1, 1]} : vector<8x32xbf16> to vector<8x30xbf16>
    %522 = tpu.concatenate %520, %521 in 1 : vector<8x1xbf16>, vector<8x30xbf16> -> vector<8x31xbf16>
    %523 = vector.extract_strided_slice %519 {offsets = [0, 0], sizes = [8, 31], strides = [1, 1]} : vector<8x32xbf16> to vector<8x31xbf16>
    %524 = vector.extract_strided_slice %519 {offsets = [0, 1], sizes = [8, 31], strides = [1, 1]} : vector<8x32xbf16> to vector<8x31xbf16>
    %525 = tpu.concatenate %522, %523, %524 in 0 : vector<8x31xbf16>, vector<8x31xbf16>, vector<8x31xbf16> -> vector<24x31xbf16>
    %526 = vector.extract_strided_slice %517 {offsets = [0, 32], sizes = [8, 32], strides = [1, 1]} : vector<8x64xbf16> to vector<8x32xbf16>
    %cst_202 = arith.constant 0.000000e+00 : bf16
    %527 = vector.broadcast %cst_202 : bf16 to vector<8x1xbf16>
    %528 = vector.extract_strided_slice %526 {offsets = [0, 0], sizes = [8, 30], strides = [1, 1]} : vector<8x32xbf16> to vector<8x30xbf16>
    %529 = tpu.concatenate %527, %528 in 1 : vector<8x1xbf16>, vector<8x30xbf16> -> vector<8x31xbf16>
    %530 = vector.extract_strided_slice %526 {offsets = [0, 0], sizes = [8, 31], strides = [1, 1]} : vector<8x32xbf16> to vector<8x31xbf16>
    %531 = vector.extract_strided_slice %526 {offsets = [0, 1], sizes = [8, 31], strides = [1, 1]} : vector<8x32xbf16> to vector<8x31xbf16>
    %532 = tpu.concatenate %529, %530, %531 in 0 : vector<8x31xbf16>, vector<8x31xbf16>, vector<8x31xbf16> -> vector<24x31xbf16>
    %533 = tpu.concatenate %525, %532 in 1 : vector<24x31xbf16>, vector<24x31xbf16> -> vector<24x62xbf16>
    %cst_203 = arith.constant dense<0.000000e+00> : vector<3x62xf32>
    %534 = tpu.matmul %518, %533, %cst_203 {dimension_numbers = #tpu.dot_dimension_numbers<[1], [0], [0], [1], [0, 0, 1, 1], [], []>} : vector<3x24xbf16>, vector<24x62xbf16>, vector<3x62xf32> -> vector<3x62xf32>
    %535 = arith.truncf %534 : vector<3x62xf32> to vector<3x62xbf16>
    %c0_204 = arith.constant 0 : index
    %c0_205 = arith.constant 0 : index
    %536 = vector.load %arg12[%c0_204, %c0_205] : memref<62x32xbf16, #tpu.memory_space<vmem>>, vector<62x32xbf16>
    %cst_206 = arith.constant dense<0.000000e+00> : vector<3x32xf32>
    %537 = tpu.matmul %535, %536, %cst_206 {dimension_numbers = #tpu.dot_dimension_numbers<[1], [0], [0], [1], [0, 0, 1, 1], [], []>} : vector<3x62xbf16>, vector<62x32xbf16>, vector<3x32xf32> -> vector<3x32xf32>
    %c0_207 = arith.constant 0 : index
    %c0_208 = arith.constant 0 : index
    %538 = vector.load %arg14[%c0_207, %c0_208] : memref<3x1xf32, #tpu.memory_space<vmem>>, vector<3x1xf32>
    %539 = vector.broadcast %538 : vector<3x1xf32> to vector<3x32xf32>
    %540 = arith.addf %537, %539 : vector<3x32xf32>
    %cst_209 = arith.constant 5.000000e+00 : f32
    %541 = vector.broadcast %cst_209 : f32 to vector<3x32xf32>
    %542 = arith.subf %540, %541 : vector<3x32xf32>
    %cst_210 = arith.constant 0.000000e+00 : f32
    %543 = vector.broadcast %cst_210 : f32 to vector<3x32xf32>
    %544 = arith.minimumf %542, %543 : vector<3x32xf32>
    %545 = math.absf %542 : vector<3x32xf32>
    %cst_211 = arith.constant 0.000000e+00 : f32
    %546 = vector.broadcast %cst_211 : f32 to vector<3x32xf32>
    %547 = arith.subf %546, %545 : vector<3x32xf32>
    %548 = math.exp %547 : vector<3x32xf32>
    %cst_212 = arith.constant 1.000000e+00 : f32
    %549 = vector.broadcast %cst_212 : f32 to vector<3x32xf32>
    %550 = arith.addf %549, %548 : vector<3x32xf32>
    %551 = math.log %550 : vector<3x32xf32>
    %552 = arith.subf %544, %551 : vector<3x32xf32>
    %cst_213 = arith.constant 2.300000e+00 : f32
    %553 = vector.broadcast %cst_213 : f32 to vector<3x32xf32>
    %554 = arith.mulf %553, %552 : vector<3x32xf32>
    %555 = math.exp %554 : vector<3x32xf32>
    %cst_214 = arith.constant 2.000000e+00 : f32
    %556 = vector.broadcast %cst_214 : f32 to vector<3x32xf32>
    %557 = arith.mulf %556, %555 : vector<3x32xf32>
    %cst_215 = arith.constant 1.000000e-07 : f32
    %558 = vector.broadcast %cst_215 : f32 to vector<3x32xf32>
    %559 = arith.addf %557, %558 : vector<3x32xf32>
    %c0_216 = arith.constant 0 : index
    %c0_217 = arith.constant 0 : index
    %c0_218 = arith.constant 0 : index
    %560 = vector.load %arg16[%c0_216, %c0_217, %c0_218] : memref<1x3x32xf32, #tpu.memory_space<vmem>>, vector<1x3x32xf32>
    %561 = vector.shape_cast %560 : vector<1x3x32xf32> to vector<3x32xf32>
    %562 = vector.shape_cast %559 : vector<3x32xf32> to vector<1x3x32xf32>
    tpu.vector_store %arg16[%c0_216, %c0_217, %c0_218], %562 {strides = array<i32>} : memref<1x3x32xf32, #tpu.memory_space<vmem>>, vector<1x3x32xf32>,
    return
  }
  func.func @transform_0(%arg0: i32) -> (i32, i32, i32) {
    %c0_i32 = arith.constant 0 : i32
    %c0_i32_0 = arith.constant 0 : i32
    %c0_i32_1 = arith.constant 0 : i32
    return %arg0, %c0_i32, %c0_i32_0 : i32, i32, i32
  }
  func.func @transform_1(%arg0: i32) -> (i32, i32) {
    %c0_i32 = arith.constant 0 : i32
    %c0_i32_0 = arith.constant 0 : i32
    %c0_i32_1 = arith.constant 0 : i32
    return %c0_i32, %c0_i32_0 : i32, i32
  }
  func.func @transform_2(%arg0: i32) -> (i32, i32) {
    %c0_i32 = arith.constant 0 : i32
    %c0_i32_0 = arith.constant 0 : i32
    %c0_i32_1 = arith.constant 0 : i32
    return %c0_i32, %c0_i32_0 : i32, i32
  }
  func.func @transform_3(%arg0: i32) -> (i32, i32, i32) {
    %c0_i32 = arith.constant 0 : i32
    %c0_i32_0 = arith.constant 0 : i32
    %c0_i32_1 = arith.constant 0 : i32
    %c0_i32_2 = arith.constant 0 : i32
    return %c0_i32, %c0_i32_0, %c0_i32_1 : i32, i32, i32
  }
  func.func @transform_4(%arg0: i32) -> (i32, i32, i32) {
    %c0_i32 = arith.constant 0 : i32
    %c0_i32_0 = arith.constant 0 : i32
    %c0_i32_1 = arith.constant 0 : i32
    %c0_i32_2 = arith.constant 0 : i32
    return %c0_i32, %c0_i32_0, %c0_i32_1 : i32, i32, i32
  }
  func.func @transform_5(%arg0: i32) -> (i32, i32) {
    %c0_i32 = arith.constant 0 : i32
    %c0_i32_0 = arith.constant 0 : i32
    %c0_i32_1 = arith.constant 0 : i32
    return %c0_i32, %c0_i32_0 : i32, i32
  }
  func.func @transform_6(%arg0: i32) -> (i32, i32, i32) {
    %c0_i32 = arith.constant 0 : i32
    %c0_i32_0 = arith.constant 0 : i32
    %c0_i32_1 = arith.constant 0 : i32
    %c0_i32_2 = arith.constant 0 : i32
    return %c0_i32, %c0_i32_0, %c0_i32_1 : i32, i32, i32
  }
  func.func @transform_7(%arg0: i32) -> (i32, i32, i32) {
    %c0_i32 = arith.constant 0 : i32
    %c0_i32_0 = arith.constant 0 : i32
    %c0_i32_1 = arith.constant 0 : i32
    %c0_i32_2 = arith.constant 0 : i32
    return %c0_i32, %c0_i32_0, %c0_i32_1 : i32, i32, i32
  }
  func.func @transform_8(%arg0: i32) -> (i32, i32) {
    %c0_i32 = arith.constant 0 : i32
    %c0_i32_0 = arith.constant 0 : i32
    %c0_i32_1 = arith.constant 0 : i32
    return %c0_i32, %c0_i32_0 : i32, i32
  }
  func.func @transform_9(%arg0: i32) -> (i32, i32) {
    %c0_i32 = arith.constant 0 : i32
    %c0_i32_0 = arith.constant 0 : i32
    %c0_i32_1 = arith.constant 0 : i32
    return %c0_i32, %c0_i32_0 : i32, i32
  }
  func.func @transform_10(%arg0: i32) -> (i32, i32) {
    %c0_i32 = arith.constant 0 : i32
    %c0_i32_0 = arith.constant 0 : i32
    %c0_i32_1 = arith.constant 0 : i32
    return %c0_i32, %c0_i32_0 : i32, i32
  }
  func.func @transform_11(%arg0: i32) -> (i32, i32) {
    %c0_i32 = arith.constant 0 : i32
    %c0_i32_0 = arith.constant 0 : i32
    %c0_i32_1 = arith.constant 0 : i32
    return %c0_i32, %c0_i32_0 : i32, i32
  }
  func.func @transform_12(%arg0: i32) -> (i32, i32) {
    %c0_i32 = arith.constant 0 : i32
    %c0_i32_0 = arith.constant 0 : i32
    %c0_i32_1 = arith.constant 0 : i32
    return %c0_i32, %c0_i32_0 : i32, i32
  }
  func.func @transform_13(%arg0: i32) -> (i32, i32) {
    %c0_i32 = arith.constant 0 : i32
    %c0_i32_0 = arith.constant 0 : i32
    %c0_i32_1 = arith.constant 0 : i32
    return %c0_i32, %c0_i32_0 : i32, i32
  }
  func.func @transform_14(%arg0: i32) -> (i32, i32, i32) {
    %c0_i32 = arith.constant 0 : i32
    %c0_i32_0 = arith.constant 0 : i32
    %c0_i32_1 = arith.constant 0 : i32
    return %arg0, %c0_i32, %c0_i32_0 : i32, i32, i32
  }
  func.func @transform_15(%arg0: i32) -> (i32, i32, i32) {
    %c0_i32 = arith.constant 0 : i32
    %c0_i32_0 = arith.constant 0 : i32
    %c0_i32_1 = arith.constant 0 : i32
    return %arg0, %c0_i32, %c0_i32_0 : i32, i32, i32
  }
}

</mosaic_0001>

<llo_original>
// kernel: reverse.1
$region0: #{reverse.1}
  %s0 = inlined_call_operand.vmem [shape: f32[4,16,1,3], index: 0, kind: input, shape index: {}]
  %s1 = inlined_call_operand.vmem [shape: f32[4,16,1,3], index: 1, kind: output, shape index: {}]
  $region1: #{reverse.1} parent=0
    #allocation0 [shape = 'u8[32768]{0}', space=vmem, size = 0x8000, scoped, tag = 'operand span for operand 0']
    #allocation1 [shape = 'u8[16384]{0}', space=vmem, size = 0x4000, scoped, tag = 'packed  for operand 0']
    #allocation2 [shape = 'u8[16384]{0}', space=vmem, size = 0x4000, scoped, tag = 'operand span for operand 1']
    #allocation3 [shape = 'u8[8192]{0}', space=vmem, size = 0x2000, scoped, tag = 'packed  for operand 1']
    %s2 = scalar_lea.vmem [#allocation1], 4
    // Predicated region
    $region2: #{reverse.1} parent=1 // pred_check
      _
    $region3: #{reverse.1} parent=1 // pred_check_branch
      %4 = sbr.rel (0) target = $region5
    $region4: #{reverse.1} parent=1 // pred_region
      // Predicated region
      $region6: #{reverse.1} parent=4 // pred_check
        _
      $region7: #{reverse.1} parent=4 // pred_check_branch
        %6 = sbr.rel target = $region9
      $region8: #{reverse.1} parent=4 // pred_region
        // Predicated region
        $region21: #{reverse.1} parent=8 // pred_check
          _
        $region22: #{reverse.1} parent=8 // pred_check_branch
          %27 = sbr.rel (0) target = $region24
        $region23: #{reverse.1} parent=8 // pred_region
          loop: start=0, step=1, limit=1
          $region25: #{reverse.1} parent=23 // loop_pre_header
            _
          $region26: #{reverse.1} parent=23 // loop_header
            %s29 = sphi 0, %s33
            %p30 = scmp.ge.s32.totalorder %s29, 1
            %s34 = sphi %s0, %s0
            %s35 = sphi %s2, %s2
          $region27: #{reverse.1} parent=23 // loop_header_branch
            %32 = sbr.rel (%p30) target = $region31
          $region28: #{reverse.1} parent=23 // loop_body
            _
          $region29: #{reverse.1} parent=23 // loop_footer
            %s33 = sadd.s32 1, %s29
          $region30: #{reverse.1} parent=23 // loop_footer_branch
            %28 = sbr.rel target = $region26
          $region31: #{reverse.1} parent=23 // loop_exit
            _
          loop: start=0, step=1, limit=1
          $region32: #{reverse.1} parent=23 // loop_pre_header
            _
          $region33: #{reverse.1} parent=23 // loop_header
            %s38 = sphi 0, %s42
            %p39 = scmp.ge.s32.totalorder %s38, 1
            %s43 = sphi %s0, %s0
            %s44 = sphi %s2, %s2
          $region34: #{reverse.1} parent=23 // loop_header_branch
            %41 = sbr.rel (%p39) target = $region38
          $region35: #{reverse.1} parent=23 // loop_body
            %v45 = vld [vmem:[%s43] sm:$0xf]
            %46 = vst [vmem:[%s44] sm:$0xf] %v45
            %v47 = vld [vmem:[%s43 + $0x4] sm:$0xf]
            %48 = vst [vmem:[%s44 + $0x8] sm:$0xf] %v47
            %v49 = vld [vmem:[%s43 + $0x8] sm:$0xf]
            %50 = vst [vmem:[%s44 + $0x10] sm:$0xf] %v49
            %v51 = vld [vmem:[%s43 + $0xc] sm:$0xf]
            %52 = vst [vmem:[%s44 + $0x18] sm:$0xf] %v51
          $region36: #{reverse.1} parent=23 // loop_footer
            %s42 = sadd.s32 1, %s38
          $region37: #{reverse.1} parent=23 // loop_footer_branch
            %37 = sbr.rel target = $region33
          $region38: #{reverse.1} parent=23 // loop_exit
            _
        $region24: #{reverse.1} parent=8 // pred_fallthru
          _
      $region9: #{reverse.1} parent=4 // pred_fallthru
        _
      // Predicated region
      $region10: #{reverse.1} parent=4 // pred_check
        _
      $region11: #{reverse.1} parent=4 // pred_check_branch
        %8 = sbr.rel (0) target = $region13
      $region12: #{reverse.1} parent=4 // pred_region
        loop: start=0, step=1, limit=1
        $region14: #{reverse.1} parent=12 // loop_pre_header
          _
        $region15: #{reverse.1} parent=12 // loop_header
          %s11 = sphi 0, %s15
          %p12 = scmp.ge.s32.totalorder %s11, 1
          %s16 = sphi %s0, %s0
          %s17 = sphi %s2, %s2
        $region16: #{reverse.1} parent=12 // loop_header_branch
          %14 = sbr.rel (%p12) target = $region20
        $region17: #{reverse.1} parent=12 // loop_body
          %v18 = vld [vmem:[%s16] sm:$0xf]
          %19 = vst [vmem:[%s17] sm:$0xf] %v18
          %v20 = vld [vmem:[%s16 + $0x4] sm:$0xf]
          %21 = vst [vmem:[%s17 + $0x8] sm:$0xf] %v20
          %v22 = vld [vmem:[%s16 + $0x8] sm:$0xf]
          %23 = vst [vmem:[%s17 + $0x10] sm:$0xf] %v22
          %v24 = vld [vmem:[%s16 + $0xc] sm:$0xf]
          %25 = vst [vmem:[%s17 + $0x18] sm:$0xf] %v24
        $region18: #{reverse.1} parent=12 // loop_footer
          %s15 = sadd.s32 1, %s11
        $region19: #{reverse.1} parent=12 // loop_footer_branch
          %10 = sbr.rel target = $region15
        $region20: #{reverse.1} parent=12 // loop_exit
          _
      $region13: #{reverse.1} parent=4 // pred_fallthru
        _
    $region5: #{reverse.1} parent=1 // pred_fallthru
      _
    %53 = vnop
    %s55 = sshllo.u32 0, 4
    %s56 = smul.addr 4, 7
    %s57 = scalar_lea.vmem [#allocation1], %s56
    %v58 = vld [vmem:[%s57] sm:%s55]
    %s59 = scalar_lea.vmem [#allocation0], 56
    %60 = vst [vmem:[%s59] sm:%s55] %v58
    %s61 = smul.addr 4, 6
    %s62 = scalar_lea.vmem [#allocation1], %s61
    %v63 = vld [vmem:[%s62] sm:%s55]
    %s64 = scalar_lea.vmem [#allocation0], 48
    %65 = vst [vmem:[%s64] sm:%s55] %v63
    %s66 = smul.addr 4, 5
    %s67 = scalar_lea.vmem [#allocation1], %s66
    %v68 = vld [vmem:[%s67] sm:%s55]
    %s69 = scalar_lea.vmem [#allocation0], 40
    %70 = vst [vmem:[%s69] sm:%s55] %v68
    %s71 = smul.addr 4, 4
    %s72 = scalar_lea.vmem [#allocation1], %s71
    %v73 = vld [vmem:[%s72] sm:%s55]
    %s74 = scalar_lea.vmem [#allocation0], 32
    %75 = vst [vmem:[%s74] sm:%s55] %v73
    %s76 = smul.addr 4, 3
    %s77 = scalar_lea.vmem [#allocation1], %s76
    %v78 = vld [vmem:[%s77] sm:%s55]
    %s79 = scalar_lea.vmem [#allocation0], 24
    %80 = vst [vmem:[%s79] sm:%s55] %v78
    %s81 = smul.addr 4, 2
    %s82 = scalar_lea.vmem [#allocation1], %s81
    %v83 = vld [vmem:[%s82] sm:%s55]
    %s84 = scalar_lea.vmem [#allocation0], 16
    %85 = vst [vmem:[%s84] sm:%s55] %v83
    %s86 = scalar_lea.vmem [#allocation1], 4
    %v87 = vld [vmem:[%s86] sm:%s55]
    %s88 = scalar_lea.vmem [#allocation0], 8
    %89 = vst [vmem:[%s88] sm:%s55] %v87
    %v90 = vld [vmem:[#allocation1] sm:%s55]
    %91 = vst [vmem:[#allocation0] sm:%s55] %v90
    %s92 = scalar_lea.vmem [#allocation0], 7
    %v93 = vld [vmem:[%s92] ss:$-1 sm:$0xff]
    %v94 = vrot.slane %v93, 5
    %95 = vst [vmem:[#allocation2] sm:$0xff] %v94
    %s96 = scalar_lea.vmem [#allocation0], 8
    %s97 = scalar_lea.vmem %s96, 7 [#allocation0]
    %v98 = vld [vmem:[%s97] ss:$-1 sm:$0xff]
    %v99 = vrot.slane %v98, 5
    %v100 = vlaneseq
    %v101 = vshrl.u32 %v100, 7
    %vm102 = vcmp.lt.s32.totalorder %v101, 3
    %103 = vst.msk [vmem:[#allocation2] sm:$0xff] %vm102, %v99
    %s104 = scalar_lea.vmem [#allocation2], 8
    %s105 = scalar_lea.vmem [#allocation0], 16
    %s106 = scalar_lea.vmem %s105, 7 [#allocation0]
    %v107 = vld [vmem:[%s106] ss:$-1 sm:$0xff]
    %v108 = vrot.slane %v107, 5
    %109 = vst [vmem:[%s104] sm:$0xff] %v108
    %s110 = scalar_lea.vmem %s105, 8 [#allocation0]
    %s111 = scalar_lea.vmem %s110, 7 [#allocation0]
    %v112 = vld [vmem:[%s111] ss:$-1 sm:$0xff]
    %v113 = vrot.slane %v112, 5
    %v114 = vlaneseq
    %v115 = vshrl.u32 %v114, 7
    %vm116 = vcmp.lt.s32.totalorder %v115, 3
    %117 = vst.msk [vmem:[%s104] sm:$0xff] %vm116, %v113
    %s118 = scalar_lea.vmem [#allocation2], 16
    %s119 = scalar_lea.vmem [#allocation0], 32
    %s120 = scalar_lea.vmem %s119, 7 [#allocation0]
    %v121 = vld [vmem:[%s120] ss:$-1 sm:$0xff]
    %v122 = vrot.slane %v121, 5
    %123 = vst [vmem:[%s118] sm:$0xff] %v122
    %s124 = scalar_lea.vmem %s119, 8 [#allocation0]
    %s125 = scalar_lea.vmem %s124, 7 [#allocation0]
    %v126 = vld [vmem:[%s125] ss:$-1 sm:$0xff]
    %v127 = vrot.slane %v126, 5
    %v128 = vlaneseq
    %v129 = vshrl.u32 %v128, 7
    %vm130 = vcmp.lt.s32.totalorder %v129, 3
    %131 = vst.msk [vmem:[%s118] sm:$0xff] %vm130, %v127
    %s132 = scalar_lea.vmem [#allocation2], 24
    %s133 = scalar_lea.vmem [#allocation0], 48
    %s134 = scalar_lea.vmem %s133, 7 [#allocation0]
    %v135 = vld [vmem:[%s134] ss:$-1 sm:$0xff]
    %v136 = vrot.slane %v135, 5
    %137 = vst [vmem:[%s132] sm:$0xff] %v136
    %s138 = scalar_lea.vmem %s133, 8 [#allocation0]
    %s139 = scalar_lea.vmem %s138, 7 [#allocation0]
    %v140 = vld [vmem:[%s139] ss:$-1 sm:$0xff]
    %v141 = vrot.slane %v140, 5
    %v142 = vlaneseq
    %v143 = vshrl.u32 %v142, 7
    %vm144 = vcmp.lt.s32.totalorder %v143, 3
    %145 = vst.msk [vmem:[%s132] sm:$0xff] %vm144, %v141
    %s147 = sshllo.u32 0, 4
    %v149 = vld [vmem:[#allocation2] sm:%s147]
    %s150 = sshllo.u32 0, 4
    %151 = vst [vmem:[#allocation3] sm:%s150] %v149
    %s152 = scalar_lea.vmem [#allocation2], 8
    %v153 = vld [vmem:[%s152] sm:%s147]
    %s154 = sshllo.u32 0, 4
    %s155 = scalar_lea.vmem [#allocation3], 4
    %156 = vst [vmem:[%s155] sm:%s154] %v153
    %s157 = scalar_lea.vmem [#allocation2], 16
    %v158 = vld [vmem:[%s157] sm:%s147]
    %s159 = sshllo.u32 0, 4
    %s160 = smul.addr 4, 2
    %s161 = scalar_lea.vmem [#allocation3], %s160
    %162 = vst [vmem:[%s161] sm:%s159] %v158
    %s163 = scalar_lea.vmem [#allocation2], 24
    %v164 = vld [vmem:[%s163] sm:%s147]
    %s165 = sshllo.u32 0, 4
    %s166 = smul.addr 4, 3
    %s167 = scalar_lea.vmem [#allocation3], %s166
    %168 = vst [vmem:[%s167] sm:%s165] %v164
    // Predicated region
    $region39: #{reverse.1} parent=1 // pred_check
      _
    $region40: #{reverse.1} parent=1 // pred_check_branch
      %170 = sbr.rel (0) target = $region42
    $region41: #{reverse.1} parent=1 // pred_region
      // Predicated region
      $region43: #{reverse.1} parent=41 // pred_check
        _
      $region44: #{reverse.1} parent=41 // pred_check_branch
        %172 = sbr.rel target = $region46
      $region45: #{reverse.1} parent=41 // pred_region
        // Predicated region
        $region58: #{reverse.1} parent=45 // pred_check
          _
        $region59: #{reverse.1} parent=45 // pred_check_branch
          %193 = sbr.rel (0) target = $region61
        $region60: #{reverse.1} parent=45 // pred_region
          loop: start=0, step=1, limit=1
          $region62: #{reverse.1} parent=60 // loop_pre_header
            _
          $region63: #{reverse.1} parent=60 // loop_header
            %s195 = sphi 0, %s199
            %p196 = scmp.ge.s32.totalorder %s195, 1
            %s200 = sphi [#allocation3], [#allocation3]
            %s201 = sphi %s1, %s1
          $region64: #{reverse.1} parent=60 // loop_header_branch
            %198 = sbr.rel (%p196) target = $region68
          $region65: #{reverse.1} parent=60 // loop_body
            _
          $region66: #{reverse.1} parent=60 // loop_footer
            %s199 = sadd.s32 1, %s195
          $region67: #{reverse.1} parent=60 // loop_footer_branch
            %194 = sbr.rel target = $region63
          $region68: #{reverse.1} parent=60 // loop_exit
            _
          loop: start=0, step=1, limit=1
          $region69: #{reverse.1} parent=60 // loop_pre_header
            _
          $region70: #{reverse.1} parent=60 // loop_header
            %s204 = sphi 0, %s208
            %p205 = scmp.ge.s32.totalorder %s204, 1
            %s209 = sphi [#allocation3], [#allocation3]
            %s210 = sphi %s1, %s1
          $region71: #{reverse.1} parent=60 // loop_header_branch
            %207 = sbr.rel (%p205) target = $region75
          $region72: #{reverse.1} parent=60 // loop_body
            %v211 = vld [vmem:[%s209] sm:$0xf]
            %212 = vst [vmem:[%s210] sm:$0xf] %v211
            %v213 = vld [vmem:[%s209 + $0x4] sm:$0xf]
            %214 = vst [vmem:[%s210 + $0x4] sm:$0xf] %v213
            %v215 = vld [vmem:[%s209 + $0x8] sm:$0xf]
            %216 = vst [vmem:[%s210 + $0x8] sm:$0xf] %v215
            %v217 = vld [vmem:[%s209 + $0xc] sm:$0xf]
            %218 = vst [vmem:[%s210 + $0xc] sm:$0xf] %v217
          $region73: #{reverse.1} parent=60 // loop_footer
            %s208 = sadd.s32 1, %s204
          $region74: #{reverse.1} parent=60 // loop_footer_branch
            %203 = sbr.rel target = $region70
          $region75: #{reverse.1} parent=60 // loop_exit
            _
        $region61: #{reverse.1} parent=45 // pred_fallthru
          _
      $region46: #{reverse.1} parent=41 // pred_fallthru
        _
      // Predicated region
      $region47: #{reverse.1} parent=41 // pred_check
        _
      $region48: #{reverse.1} parent=41 // pred_check_branch
        %174 = sbr.rel (0) target = $region50
      $region49: #{reverse.1} parent=41 // pred_region
        loop: start=0, step=1, limit=1
        $region51: #{reverse.1} parent=49 // loop_pre_header
          _
        $region52: #{reverse.1} parent=49 // loop_header
          %s177 = sphi 0, %s181
          %p178 = scmp.ge.s32.totalorder %s177, 1
          %s182 = sphi [#allocation3], [#allocation3]
          %s183 = sphi %s1, %s1
        $region53: #{reverse.1} parent=49 // loop_header_branch
          %180 = sbr.rel (%p178) target = $region57
        $region54: #{reverse.1} parent=49 // loop_body
          %v184 = vld [vmem:[%s182] sm:$0xf]
          %185 = vst [vmem:[%s183] sm:$0xf] %v184
          %v186 = vld [vmem:[%s182 + $0x4] sm:$0xf]
          %187 = vst [vmem:[%s183 + $0x4] sm:$0xf] %v186
          %v188 = vld [vmem:[%s182 + $0x8] sm:$0xf]
          %189 = vst [vmem:[%s183 + $0x8] sm:$0xf] %v188
          %v190 = vld [vmem:[%s182 + $0xc] sm:$0xf]
          %191 = vst [vmem:[%s183 + $0xc] sm:$0xf] %v190
        $region55: #{reverse.1} parent=49 // loop_footer
          %s181 = sadd.s32 1, %s177
        $region56: #{reverse.1} parent=49 // loop_footer_branch
          %176 = sbr.rel target = $region52
        $region57: #{reverse.1} parent=49 // loop_exit
          _
      $region50: #{reverse.1} parent=41 // pred_fallthru
        _
    $region42: #{reverse.1} parent=1 // pred_fallthru
      _
    %219 = vnop

// kernel: generator_forward.1
$region0: #{generator_forward.1}
  #allocation0 [shape = 'u32[]', space=smem, size = 0x4, offset = 0x4, fixed_abs, tag = 'smem constant byte address 0x4 - core index']
  #allocation1 [shape = 'u32[144,128]{1,0:T(1,128)}', space=vmem, size = 0x12000, scoped, tag = 'internal scratch']
  %s0 = inlined_call_operand.vmem [shape: f32[4,8,16], index: 0, kind: input, shape index: {}]
  %s1 = inlined_call_operand.vmem [shape: bf16[32,56], index: 1, kind: input, shape index: {}]
  %s2 = inlined_call_operand.vmem [shape: bf16[32,96], index: 2, kind: input, shape index: {}]
  %s3 = inlined_call_operand.vmem [shape: bf16[2,32,64], index: 3, kind: input, shape index: {}]
  %s4 = inlined_call_operand.vmem [shape: bf16[6,16,48], index: 4, kind: input, shape index: {}]
  %s5 = inlined_call_operand.vmem [shape: bf16[16,48], index: 5, kind: input, shape index: {}]
  %s6 = inlined_call_operand.vmem [shape: bf16[2,64,128], index: 6, kind: input, shape index: {}]
  %s7 = inlined_call_operand.vmem [shape: bf16[6,8,24], index: 7, kind: input, shape index: {}]
  %s8 = inlined_call_operand.vmem [shape: bf16[10,56], index: 8, kind: input, shape index: {}]
  %s9 = inlined_call_operand.vmem [shape: bf16[128,64], index: 9, kind: input, shape index: {}]
  %s10 = inlined_call_operand.vmem [shape: bf16[3,24], index: 10, kind: input, shape index: {}]
  %s11 = inlined_call_operand.vmem [shape: bf16[62,32], index: 11, kind: input, shape index: {}]
  %s12 = inlined_call_operand.vmem [shape: f32[8,1], index: 12, kind: input, shape index: {}]
  %s13 = inlined_call_operand.vmem [shape: f32[3,1], index: 13, kind: input, shape index: {}]
  %s14 = inlined_call_operand.vmem [shape: f32[2,1,128], index: 14, kind: output, shape index: {0}]
  %s15 = inlined_call_operand.vmem [shape: f32[2,3,32], index: 15, kind: output, shape index: {1}]
  %16 = xla_tuple %s14, %s15
  %s17 = sld [smem:[#allocation0]]
  $region97: #{generator_forward.1} parent=0
    _
  %s19 = ssub.s32 1, %s17
  %s20 = scalar_select 0, %s19, %s17
  loop: start=0, step=1, limit=4
  $region2: #{generator_forward.1} parent=0 // loop_pre_header
    _
  $region3: #{generator_forward.1} parent=0 // loop_header
    %s22 = sphi 0, %s26
    %p23 = scmp.ge.s32.totalorder %s22, 4
    %s32 = sphi 0, %s34
    %s35 = sphi 0, %s32
    %s36 = sphi 0, %s35
    %s52 = sphi 0, %s36
    %s56 = sphi 0, %s56
    %s58 = sphi 0, %s56
    %s59 = sphi 0, %s58
    %s73 = sphi 0, %s59
    %s77 = sphi 0, %s77
    %s79 = sphi 0, %s77
    %s80 = sphi 0, %s79
    %s94 = sphi 0, %s80
    %s98 = sphi 0, %s98
    %s100 = sphi 0, %s98
    %s101 = sphi 0, %s100
    %s115 = sphi 0, %s101
    %s119 = sphi 0, %s119
    %s121 = sphi 0, %s119
    %s122 = sphi 0, %s121
    %s136 = sphi 0, %s122
    %s140 = sphi 0, %s140
    %s142 = sphi 0, %s140
    %s143 = sphi 0, %s142
    %s157 = sphi 0, %s143
    %s161 = sphi 0, %s161
    %s163 = sphi 0, %s161
    %s164 = sphi 0, %s163
    %s178 = sphi 0, %s164
    %s182 = sphi 0, %s182
    %s184 = sphi 0, %s182
    %s185 = sphi 0, %s184
    %s199 = sphi 0, %s185
    %s203 = sphi 0, %s203
    %s205 = sphi 0, %s203
    %s206 = sphi 0, %s205
    %s220 = sphi 0, %s206
    %s224 = sphi 0, %s224
    %s226 = sphi 0, %s224
    %s227 = sphi 0, %s226
    %s241 = sphi 0, %s227
    %s245 = sphi 0, %s245
    %s247 = sphi 0, %s245
    %s248 = sphi 0, %s247
    %s262 = sphi 0, %s248
    %s266 = sphi 0, %s266
    %s268 = sphi 0, %s266
    %s269 = sphi 0, %s268
    %s283 = sphi 0, %s269
    %s287 = sphi 0, %s287
    %s289 = sphi 0, %s287
    %s290 = sphi 0, %s289
    %s304 = sphi 0, %s290
    %s308 = sphi 0, %s308
    %s310 = sphi 0, %s308
    %s311 = sphi 0, %s310
    %s325 = sphi 0, %s311
    %s331 = sphi 0, %s333
    %s334 = sphi 0, %s331
    %s335 = sphi 0, %s334
    %s351 = sphi 0, %s335
    %s357 = sphi 0, %s359
    %s360 = sphi 0, %s357
    %s361 = sphi 0, %s360
    %s377 = sphi 0, %s361
  $region4: #{generator_forward.1} parent=0 // loop_header_branch
    %25 = sbr.rel (%p23) target = $region8
  $region5: #{generator_forward.1} parent=0 // loop_body
    %s27 = ssub.s32 %s22, 1
    %s28 = ssub.s32 %s22, 2
    %s29 = sadd.s32 %s22, 1
    %s30 = ssub.s32 %s22, %s29
    %p31 = scmp.eq.s32.totalorder %s30, 0
    %s33 = sadd.s32 %s32, 1
    %s34 = scalar_select %p31, %s32, %s33
    %p37 = pneg %p31
    %p38 = scmp.eq.s32.totalorder %s22, 1
    %p39 = por %p37, %p38
    %p40 = scmp.ne.s32.totalorder %s32, %s35
    %p41 = scmp.eq.s32.totalorder %s22, 0
    %p42 = por %p40, %p41
    %p43 = scmp.ne.s32.totalorder %s32, %s35
    %p44 = scmp.eq.s32.totalorder %s27, 1
    %p45 = por %p43, %p44
    %p46 = scmp.ne.s32.totalorder %s35, %s36
    %p47 = scmp.eq.s32.totalorder %s27, 0
    %p48 = por %p46, %p47
    %p49 = scmp.ne.s32.totalorder %s35, %s36
    %p50 = scmp.eq.s32.totalorder %s28, 1
    %p51 = por %p49, %p50
    %p53 = scmp.ne.s32.totalorder %s36, %s52
    %p54 = scmp.eq.s32.totalorder %s28, 0
    %p55 = por %p53, %p54
    %s57 = sadd.s32 %s56, 1
    %p60 = scmp.eq.s32.totalorder %s22, 1
    %p61 = scmp.ne.s32.totalorder %s56, %s58
    %p62 = scmp.eq.s32.totalorder %s22, 0
    %p63 = por %p61, %p62
    %p64 = scmp.ne.s32.totalorder %s56, %s58
    %p65 = scmp.eq.s32.totalorder %s27, 1
    %p66 = por %p64, %p65
    %p67 = scmp.ne.s32.totalorder %s58, %s59
    %p68 = scmp.eq.s32.totalorder %s27, 0
    %p69 = por %p67, %p68
    %p70 = scmp.ne.s32.totalorder %s58, %s59
    %p71 = scmp.eq.s32.totalorder %s28, 1
    %p72 = por %p70, %p71
    %p74 = scmp.ne.s32.totalorder %s59, %s73
    %p75 = scmp.eq.s32.totalorder %s28, 0
    %p76 = por %p74, %p75
    %s78 = sadd.s32 %s77, 1
    %p81 = scmp.eq.s32.totalorder %s22, 1
    %p82 = scmp.ne.s32.totalorder %s77, %s79
    %p83 = scmp.eq.s32.totalorder %s22, 0
    %p84 = por %p82, %p83
    %p85 = scmp.ne.s32.totalorder %s77, %s79
    %p86 = scmp.eq.s32.totalorder %s27, 1
    %p87 = por %p85, %p86
    %p88 = scmp.ne.s32.totalorder %s79, %s80
    %p89 = scmp.eq.s32.totalorder %s27, 0
    %p90 = por %p88, %p89
    %p91 = scmp.ne.s32.totalorder %s79, %s80
    %p92 = scmp.eq.s32.totalorder %s28, 1
    %p93 = por %p91, %p92
    %p95 = scmp.ne.s32.totalorder %s80, %s94
    %p96 = scmp.eq.s32.totalorder %s28, 0
    %p97 = por %p95, %p96
    %s99 = sadd.s32 %s98, 1
    %p102 = scmp.eq.s32.totalorder %s22, 1
    %p103 = scmp.ne.s32.totalorder %s98, %s100
    %p104 = scmp.eq.s32.totalorder %s22, 0
    %p105 = por %p103, %p104
    %p106 = scmp.ne.s32.totalorder %s98, %s100
    %p107 = scmp.eq.s32.totalorder %s27, 1
    %p108 = por %p106, %p107
    %p109 = scmp.ne.s32.totalorder %s100, %s101
    %p110 = scmp.eq.s32.totalorder %s27, 0
    %p111 = por %p109, %p110
    %p112 = scmp.ne.s32.totalorder %s100, %s101
    %p113 = scmp.eq.s32.totalorder %s28, 1
    %p114 = por %p112, %p113
    %p116 = scmp.ne.s32.totalorder %s101, %s115
    %p117 = scmp.eq.s32.totalorder %s28, 0
    %p118 = por %p116, %p117
    %s120 = sadd.s32 %s119, 1
    %p123 = scmp.eq.s32.totalorder %s22, 1
    %p124 = scmp.ne.s32.totalorder %s119, %s121
    %p125 = scmp.eq.s32.totalorder %s22, 0
    %p126 = por %p124, %p125
    %p127 = scmp.ne.s32.totalorder %s119, %s121
    %p128 = scmp.eq.s32.totalorder %s27, 1
    %p129 = por %p127, %p128
    %p130 = scmp.ne.s32.totalorder %s121, %s122
    %p131 = scmp.eq.s32.totalorder %s27, 0
    %p132 = por %p130, %p131
    %p133 = scmp.ne.s32.totalorder %s121, %s122
    %p134 = scmp.eq.s32.totalorder %s28, 1
    %p135 = por %p133, %p134
    %p137 = scmp.ne.s32.totalorder %s122, %s136
    %p138 = scmp.eq.s32.totalorder %s28, 0
    %p139 = por %p137, %p138
    %s141 = sadd.s32 %s140, 1
    %p144 = scmp.eq.s32.totalorder %s22, 1
    %p145 = scmp.ne.s32.totalorder %s140, %s142
    %p146 = scmp.eq.s32.totalorder %s22, 0
    %p147 = por %p145, %p146
    %p148 = scmp.ne.s32.totalorder %s140, %s142
    %p149 = scmp.eq.s32.totalorder %s27, 1
    %p150 = por %p148, %p149
    %p151 = scmp.ne.s32.totalorder %s142, %s143
    %p152 = scmp.eq.s32.totalorder %s27, 0
    %p153 = por %p151, %p152
    %p154 = scmp.ne.s32.totalorder %s142, %s143
    %p155 = scmp.eq.s32.totalorder %s28, 1
    %p156 = por %p154, %p155
    %p158 = scmp.ne.s32.totalorder %s143, %s157
    %p159 = scmp.eq.s32.totalorder %s28, 0
    %p160 = por %p158, %p159
    %s162 = sadd.s32 %s161, 1
    %p165 = scmp.eq.s32.totalorder %s22, 1
    %p166 = scmp.ne.s32.totalorder %s161, %s163
    %p167 = scmp.eq.s32.totalorder %s22, 0
    %p168 = por %p166, %p167
    %p169 = scmp.ne.s32.totalorder %s161, %s163
    %p170 = scmp.eq.s32.totalorder %s27, 1
    %p171 = por %p169, %p170
    %p172 = scmp.ne.s32.totalorder %s163, %s164
    %p173 = scmp.eq.s32.totalorder %s27, 0
    %p174 = por %p172, %p173
    %p175 = scmp.ne.s32.totalorder %s163, %s164
    %p176 = scmp.eq.s32.totalorder %s28, 1
    %p177 = por %p175, %p176
    %p179 = scmp.ne.s32.totalorder %s164, %s178
    %p180 = scmp.eq.s32.totalorder %s28, 0
    %p181 = por %p179, %p180
    %s183 = sadd.s32 %s182, 1
    %p186 = scmp.eq.s32.totalorder %s22, 1
    %p187 = scmp.ne.s32.totalorder %s182, %s184
    %p188 = scmp.eq.s32.totalorder %s22, 0
    %p189 = por %p187, %p188
    %p190 = scmp.ne.s32.totalorder %s182, %s184
    %p191 = scmp.eq.s32.totalorder %s27, 1
    %p192 = por %p190, %p191
    %p193 = scmp.ne.s32.totalorder %s184, %s185
    %p194 = scmp.eq.s32.totalorder %s27, 0
    %p195 = por %p193, %p194
    %p196 = scmp.ne.s32.totalorder %s184, %s185
    %p197 = scmp.eq.s32.totalorder %s28, 1
    %p198 = por %p196, %p197
    %p200 = scmp.ne.s32.totalorder %s185, %s199
    %p201 = scmp.eq.s32.totalorder %s28, 0
    %p202 = por %p200, %p201
    %s204 = sadd.s32 %s203, 1
    %p207 = scmp.eq.s32.totalorder %s22, 1
    %p208 = scmp.ne.s32.totalorder %s203, %s205
    %p209 = scmp.eq.s32.totalorder %s22, 0
    %p210 = por %p208, %p209
    %p211 = scmp.ne.s32.totalorder %s203, %s205
    %p212 = scmp.eq.s32.totalorder %s27, 1
    %p213 = por %p211, %p212
    %p214 = scmp.ne.s32.totalorder %s205, %s206
    %p215 = scmp.eq.s32.totalorder %s27, 0
    %p216 = por %p214, %p215
    %p217 = scmp.ne.s32.totalorder %s205, %s206
    %p218 = scmp.eq.s32.totalorder %s28, 1
    %p219 = por %p217, %p218
    %p221 = scmp.ne.s32.totalorder %s206, %s220
    %p222 = scmp.eq.s32.totalorder %s28, 0
    %p223 = por %p221, %p222
    %s225 = sadd.s32 %s224, 1
    %p228 = scmp.eq.s32.totalorder %s22, 1
    %p229 = scmp.ne.s32.totalorder %s224, %s226
    %p230 = scmp.eq.s32.totalorder %s22, 0
    %p231 = por %p229, %p230
    %p232 = scmp.ne.s32.totalorder %s224, %s226
    %p233 = scmp.eq.s32.totalorder %s27, 1
    %p234 = por %p232, %p233
    %p235 = scmp.ne.s32.totalorder %s226, %s227
    %p236 = scmp.eq.s32.totalorder %s27, 0
    %p237 = por %p235, %p236
    %p238 = scmp.ne.s32.totalorder %s226, %s227
    %p239 = scmp.eq.s32.totalorder %s28, 1
    %p240 = por %p238, %p239
    %p242 = scmp.ne.s32.totalorder %s227, %s241
    %p243 = scmp.eq.s32.totalorder %s28, 0
    %p244 = por %p242, %p243
    %s246 = sadd.s32 %s245, 1
    %p249 = scmp.eq.s32.totalorder %s22, 1
    %p250 = scmp.ne.s32.totalorder %s245, %s247
    %p251 = scmp.eq.s32.totalorder %s22, 0
    %p252 = por %p250, %p251
    %p253 = scmp.ne.s32.totalorder %s245, %s247
    %p254 = scmp.eq.s32.totalorder %s27, 1
    %p255 = por %p253, %p254
    %p256 = scmp.ne.s32.totalorder %s247, %s248
    %p257 = scmp.eq.s32.totalorder %s27, 0
    %p258 = por %p256, %p257
    %p259 = scmp.ne.s32.totalorder %s247, %s248
    %p260 = scmp.eq.s32.totalorder %s28, 1
    %p261 = por %p259, %p260
    %p263 = scmp.ne.s32.totalorder %s248, %s262
    %p264 = scmp.eq.s32.totalorder %s28, 0
    %p265 = por %p263, %p264
    %s267 = sadd.s32 %s266, 1
    %p270 = scmp.eq.s32.totalorder %s22, 1
    %p271 = scmp.ne.s32.totalorder %s266, %s268
    %p272 = scmp.eq.s32.totalorder %s22, 0
    %p273 = por %p271, %p272
    %p274 = scmp.ne.s32.totalorder %s266, %s268
    %p275 = scmp.eq.s32.totalorder %s27, 1
    %p276 = por %p274, %p275
    %p277 = scmp.ne.s32.totalorder %s268, %s269
    %p278 = scmp.eq.s32.totalorder %s27, 0
    %p279 = por %p277, %p278
    %p280 = scmp.ne.s32.totalorder %s268, %s269
    %p281 = scmp.eq.s32.totalorder %s28, 1
    %p282 = por %p280, %p281
    %p284 = scmp.ne.s32.totalorder %s269, %s283
    %p285 = scmp.eq.s32.totalorder %s28, 0
    %p286 = por %p284, %p285
    %s288 = sadd.s32 %s287, 1
    %p291 = scmp.eq.s32.totalorder %s22, 1
    %p292 = scmp.ne.s32.totalorder %s287, %s289
    %p293 = scmp.eq.s32.totalorder %s22, 0
    %p294 = por %p292, %p293
    %p295 = scmp.ne.s32.totalorder %s287, %s289
    %p296 = scmp.eq.s32.totalorder %s27, 1
    %p297 = por %p295, %p296
    %p298 = scmp.ne.s32.totalorder %s289, %s290
    %p299 = scmp.eq.s32.totalorder %s27, 0
    %p300 = por %p298, %p299
    %p301 = scmp.ne.s32.totalorder %s289, %s290
    %p302 = scmp.eq.s32.totalorder %s28, 1
    %p303 = por %p301, %p302
    %p305 = scmp.ne.s32.totalorder %s290, %s304
    %p306 = scmp.eq.s32.totalorder %s28, 0
    %p307 = por %p305, %p306
    %s309 = sadd.s32 %s308, 1
    %p312 = scmp.eq.s32.totalorder %s22, 1
    %p313 = scmp.ne.s32.totalorder %s308, %s310
    %p314 = scmp.eq.s32.totalorder %s22, 0
    %p315 = por %p313, %p314
    %p316 = scmp.ne.s32.totalorder %s308, %s310
    %p317 = scmp.eq.s32.totalorder %s27, 1
    %p318 = por %p316, %p317
    %p319 = scmp.ne.s32.totalorder %s310, %s311
    %p320 = scmp.eq.s32.totalorder %s27, 0
    %p321 = por %p319, %p320
    %p322 = scmp.ne.s32.totalorder %s310, %s311
    %p323 = scmp.eq.s32.totalorder %s28, 1
    %p324 = por %p322, %p323
    %p326 = scmp.ne.s32.totalorder %s311, %s325
    %p327 = scmp.eq.s32.totalorder %s28, 0
    %p328 = por %p326, %p327
    %s329 = ssub.s32 %s22, %s29
    %p330 = scmp.eq.s32.totalorder %s329, 0
    %s332 = sadd.s32 %s331, 1
    %s333 = scalar_select %p330, %s331, %s332
    %p336 = pneg %p330
    %p337 = scmp.eq.s32.totalorder %s22, 1
    %p338 = por %p336, %p337
    %p339 = scmp.ne.s32.totalorder %s331, %s334
    %p340 = scmp.eq.s32.totalorder %s22, 0
    %p341 = por %p339, %p340
    %p342 = scmp.ne.s32.totalorder %s331, %s334
    %p343 = scmp.eq.s32.totalorder %s27, 1
    %p344 = por %p342, %p343
    %p345 = scmp.ne.s32.totalorder %s334, %s335
    %p346 = scmp.eq.s32.totalorder %s27, 0
    %p347 = por %p345, %p346
    %p348 = scmp.ne.s32.totalorder %s334, %s335
    %p349 = scmp.eq.s32.totalorder %s28, 1
    %p350 = por %p348, %p349
    %p352 = scmp.ne.s32.totalorder %s335, %s351
    %p353 = scmp.eq.s32.totalorder %s28, 0
    %p354 = por %p352, %p353
    %s355 = ssub.s32 %s22, %s29
    %p356 = scmp.eq.s32.totalorder %s355, 0
    %s358 = sadd.s32 %s357, 1
    %s359 = scalar_select %p356, %s357, %s358
    %p362 = pneg %p356
    %p363 = scmp.eq.s32.totalorder %s22, 1
    %p364 = por %p362, %p363
    %p365 = scmp.ne.s32.totalorder %s357, %s360
    %p366 = scmp.eq.s32.totalorder %s22, 0
    %p367 = por %p365, %p366
    %p368 = scmp.ne.s32.totalorder %s357, %s360
    %p369 = scmp.eq.s32.totalorder %s27, 1
    %p370 = por %p368, %p369
    %p371 = scmp.ne.s32.totalorder %s360, %s361
    %p372 = scmp.eq.s32.totalorder %s27, 0
    %p373 = por %p371, %p372
    %p374 = scmp.ne.s32.totalorder %s360, %s361
    %p375 = scmp.eq.s32.totalorder %s28, 1
    %p376 = por %p374, %p375
    %p378 = scmp.ne.s32.totalorder %s361, %s377
    %p379 = scmp.eq.s32.totalorder %s28, 0
    %p380 = por %p378, %p379
    %p381 = scmp.le.s32.totalorder 1, %s22
    %p382 = scmp.lt.s32.totalorder %s22, 3
    %p383 = pnand %p381, %p382
    %p384 = pneg %p383
    // Predicated region
    $region9: #{generator_forward.1} parent=5 // pred_check
      _
    $region10: #{generator_forward.1} parent=5 // pred_check_branch
      %386 = sbr.rel (%p383) target = $region12
    $region11: #{generator_forward.1} parent=5 // pred_region
      %s387 = ssub.s32 %s22, 1
      // Predicated region
      $region13: #{generator_forward.1} parent=11 // pred_check
        %p388 = pneg %p69
      $region14: #{generator_forward.1} parent=11 // pred_check_branch
        %390 = sbr.rel (%p388) target = $region16
      $region15: #{generator_forward.1} parent=11 // pred_region
        _
      $region16: #{generator_forward.1} parent=11 // pred_fallthru
        _
      // Predicated region
      $region17: #{generator_forward.1} parent=11 // pred_check
        %p391 = pneg %p90
      $region18: #{generator_forward.1} parent=11 // pred_check_branch
        %393 = sbr.rel (%p391) target = $region20
      $region19: #{generator_forward.1} parent=11 // pred_region
        _
      $region20: #{generator_forward.1} parent=11 // pred_fallthru
        _
      // Predicated region
      $region21: #{generator_forward.1} parent=11 // pred_check
        %p394 = pneg %p111
      $region22: #{generator_forward.1} parent=11 // pred_check_branch
        %396 = sbr.rel (%p394) target = $region24
      $region23: #{generator_forward.1} parent=11 // pred_region
        _
      $region24: #{generator_forward.1} parent=11 // pred_fallthru
        _
      // Predicated region
      $region25: #{generator_forward.1} parent=11 // pred_check
        %p397 = pneg %p132
      $region26: #{generator_forward.1} parent=11 // pred_check_branch
        %399 = sbr.rel (%p397) target = $region28
      $region27: #{generator_forward.1} parent=11 // pred_region
        _
      $region28: #{generator_forward.1} parent=11 // pred_fallthru
        _
      // Predicated region
      $region29: #{generator_forward.1} parent=11 // pred_check
        %p400 = pneg %p153
      $region30: #{generator_forward.1} parent=11 // pred_check_branch
        %402 = sbr.rel (%p400) target = $region32
      $region31: #{generator_forward.1} parent=11 // pred_region
        _
      $region32: #{generator_forward.1} parent=11 // pred_fallthru
        _
      // Predicated region
      $region33: #{generator_forward.1} parent=11 // pred_check
        %p403 = pneg %p174
      $region34: #{generator_forward.1} parent=11 // pred_check_branch
        %405 = sbr.rel (%p403) target = $region36
      $region35: #{generator_forward.1} parent=11 // pred_region
        _
      $region36: #{generator_forward.1} parent=11 // pred_fallthru
        _
      // Predicated region
      $region37: #{generator_forward.1} parent=11 // pred_check
        %p406 = pneg %p195
      $region38: #{generator_forward.1} parent=11 // pred_check_branch
        %408 = sbr.rel (%p406) target = $region40
      $region39: #{generator_forward.1} parent=11 // pred_region
        _
      $region40: #{generator_forward.1} parent=11 // pred_fallthru
        _
      // Predicated region
      $region41: #{generator_forward.1} parent=11 // pred_check
        %p409 = pneg %p216
      $region42: #{generator_forward.1} parent=11 // pred_check_branch
        %411 = sbr.rel (%p409) target = $region44
      $region43: #{generator_forward.1} parent=11 // pred_region
        _
      $region44: #{generator_forward.1} parent=11 // pred_fallthru
        _
      // Predicated region
      $region45: #{generator_forward.1} parent=11 // pred_check
        %p412 = pneg %p237
      $region46: #{generator_forward.1} parent=11 // pred_check_branch
        %414 = sbr.rel (%p412) target = $region48
      $region47: #{generator_forward.1} parent=11 // pred_region
        _
      $region48: #{generator_forward.1} parent=11 // pred_fallthru
        _
      // Predicated region
      $region49: #{generator_forward.1} parent=11 // pred_check
        %p415 = pneg %p258
      $region50: #{generator_forward.1} parent=11 // pred_check_branch
        %417 = sbr.rel (%p415) target = $region52
      $region51: #{generator_forward.1} parent=11 // pred_region
        _
      $region52: #{generator_forward.1} parent=11 // pred_fallthru
        _
      // Predicated region
      $region53: #{generator_forward.1} parent=11 // pred_check
        %p418 = pneg %p279
      $region54: #{generator_forward.1} parent=11 // pred_check_branch
        %420 = sbr.rel (%p418) target = $region56
      $region55: #{generator_forward.1} parent=11 // pred_region
        _
      $region56: #{generator_forward.1} parent=11 // pred_fallthru
        _
      // Predicated region
      $region57: #{generator_forward.1} parent=11 // pred_check
        %p421 = pneg %p300
      $region58: #{generator_forward.1} parent=11 // pred_check_branch
        %423 = sbr.rel (%p421) target = $region60
      $region59: #{generator_forward.1} parent=11 // pred_region
        _
      $region60: #{generator_forward.1} parent=11 // pred_fallthru
        _
      // Predicated region
      $region61: #{generator_forward.1} parent=11 // pred_check
        %p424 = pneg %p321
      $region62: #{generator_forward.1} parent=11 // pred_check_branch
        %426 = sbr.rel (%p424) target = $region64
      $region63: #{generator_forward.1} parent=11 // pred_region
        _
      $region64: #{generator_forward.1} parent=11 // pred_fallthru
        _
    $region12: #{generator_forward.1} parent=5 // pred_fallthru
      _
    %p427 = scmp.lt.s32.totalorder %s22, 2
    // Predicated region
    $region65: #{generator_forward.1} parent=5 // pred_check
      %p428 = pneg %p427
    $region66: #{generator_forward.1} parent=5 // pred_check_branch
      %430 = sbr.rel (%p428) target = $region68
    $region67: #{generator_forward.1} parent=5 // pred_region
      // Predicated region
      $region69: #{generator_forward.1} parent=67 // pred_check
        %p431 = pneg %p42
      $region70: #{generator_forward.1} parent=67 // pred_check_branch
        %433 = sbr.rel (%p431) target = $region72
      $region71: #{generator_forward.1} parent=67 // pred_region
        %s434 = smul.u32 2, %s22
        %p435 = scmp.lt.s32.totalorder %s434, 3
        %s436 = scalar_select %p435, %s434, 3
        %s437 = smul.addr %s436, 8
        %s438 = scalar_lea.vmem %s0, %s437
        %s439 = smul.u32 2, %s22
      $region72: #{generator_forward.1} parent=67 // pred_fallthru
        _
    $region68: #{generator_forward.1} parent=5 // pred_fallthru
      _
    %p440 = scmp.le.s32.totalorder 1, %s22
    %p441 = scmp.lt.s32.totalorder %s22, 3
    %p442 = pnand %p440, %p441
    %p443 = pneg %p442
    // Predicated region
    $region73: #{generator_forward.1} parent=5 // pred_check
      _
    $region74: #{generator_forward.1} parent=5 // pred_check_branch
      %445 = sbr.rel (%p442) target = $region76
    $region75: #{generator_forward.1} parent=5 // pred_region
      %s446 = ssub.s32 %s22, 1
      %s447 = smul.u32 2, %s27
      %p448 = scmp.lt.s32.totalorder %s447, 3
      %s449 = scalar_select %p448, %s447, 3
      %s450 = smul.addr %s449, 8
      %s451 = scalar_lea.vmem %s0, %s450
      %p452 = pneg %p48
      %p453 = pneg %p45
      %p454 = pneg %p69
      %p455 = pneg %p66
      %p456 = pneg %p90
      %p457 = pneg %p87
      %p458 = pneg %p111
      %p459 = pneg %p108
      %p460 = pneg %p132
      %p461 = pneg %p129
      %p462 = pneg %p153
      %p463 = pneg %p150
      %p464 = pneg %p174
      %p465 = pneg %p171
      %p466 = pneg %p195
      %p467 = pneg %p192
      %p468 = pneg %p216
      %p469 = pneg %p213
      %p470 = pneg %p237
      %p471 = pneg %p234
      %p472 = pneg %p258
      %p473 = pneg %p255
      %p474 = pneg %p279
      %p475 = pneg %p276
      %p476 = pneg %p300
      %p477 = pneg %p297
      %p478 = pneg %p321
      %p479 = pneg %p318
      %p480 = pneg %p347
      %p481 = pneg %p344
      %p482 = scmp.lt.s32.totalorder %s27, 1
      %s483 = scalar_select %p482, %s27, 1
      %s484 = scalar_lea.vmem %s14, %s483
      %p485 = pneg %p373
      %p486 = pneg %p370
      %p487 = scmp.lt.s32.totalorder %s27, 1
      %s488 = scalar_select %p487, %s27, 1
      %s489 = smul.addr %s488, 4
      %s490 = scalar_lea.vmem %s15, %s489
      %s491 = smul.u32 2, %s27
      %p492 = scmp.lt.s32.totalorder %s491, 3
      %s493 = scalar_select %p492, %s491, 3
      %s494 = smul.addr %s493, 8
      %s495 = scalar_lea.vmem %s0, %s494
      %s496 = smul.u32 2, %s27
      %p497 = scmp.lt.s32.totalorder %s27, 1
      %s498 = scalar_select %p497, %s27, 1
      %s499 = scalar_lea.vmem %s14, %s498
      %p500 = scmp.lt.s32.totalorder %s27, 1
      %s501 = scalar_select %p500, %s27, 1
      %s502 = smul.addr %s501, 4
      %s503 = scalar_lea.vmem %s15, %s502
      %v506 = vld [vmem:[%s495] sm:$0xff]
      %s507 = scalar_lea.vmem %s495, 8
      %v508 = vld [vmem:[%s507] sm:$0xff]
      %510 = vrot.lane.b32.xlu0 %v508, 16
      %v511 = vpop.permute.xlu0 %510
      %vm513 = vcmask 130048
      %v514 = vsel %vm513, %v506, %v511
      %v515 = vpack.c.bf16 %v514, %v514
      %v516 = vld [vmem:[%s1] sm:$0xf]
      %v517 = vld [vmem:[%s1 + $0x4] sm:$0xf]
      %v518 = vld [vmem:[%s1 + $0x8] sm:$0xf]
      %v519 = vld [vmem:[%s1 + $0xc] sm:$0xf]
      %521 = vrot.lane.b32.xlu0 %v515, 3
      %v522 = vpop.permute.xlu0 %521
      %vm523 = vcmask 23552
      %v526 = vsel %vm523, 0, %v522
      %527 = vrot.lane.b32.xlu0 %v515, 2
      %v528 = vpop.permute.xlu0 %527
      %vm529 = vcmask 15360
      %v531 = vsel %vm529, 0, %v528
      %532 = vrot.lane.b32.xlu0 %v515, 1
      %v533 = vpop.permute.xlu0 %532
      %vm534 = vcmask 7168
      %v536 = vsel %vm534, 0, %v533
      %537 = vrot.lane.b32.xlu0 %v515, 127
      %v538 = vpop.permute.xlu0 %537
      %vm539 = vcmask 121856
      %v541 = vsel %vm539, %v538, 0
      %542 = vrot.lane.b32.xlu0 %v515, 126
      %v543 = vpop.permute.xlu0 %542
      %vm544 = vcmask 113664
      %v546 = vsel %vm544, %v543, 0
      %547 = vrot.lane.b32.xlu0 %v515, 125
      %v548 = vpop.permute.xlu0 %547
      %vm549 = vcmask 105472
      %v551 = vsel %vm549, %v548, 0
      %v553 = vrot.slane %v531, 4
      %v554 = vrot.slane %v515, 4
      %v556 = vrot.slane %v546, 4
      %vm557 = vcmask 1043456
      %v559 = vsel %vm557, %v526, %v553
      %v561 = vsel %vm557, %v536, %v554
      %v563 = vsel %vm557, %v541, %v556
      %564 = vrot.lane.b32.xlu0 %v515, 115
      %v565 = vpop.permute.xlu0 %564
      %v567 = vsel %vm523, 0, %v565
      %568 = vrot.lane.b32.xlu0 %v515, 114
      %v569 = vpop.permute.xlu0 %568
      %v571 = vsel %vm529, 0, %v569
      %572 = vrot.lane.b32.xlu0 %v515, 113
      %v573 = vpop.permute.xlu0 %572
      %v575 = vsel %vm534, 0, %v573
      %576 = vrot.lane.b32.xlu0 %v515, 111
      %v577 = vpop.permute.xlu0 %576
      %v579 = vsel %vm539, %v577, 0
      %580 = vrot.lane.b32.xlu0 %v515, 110
      %v581 = vpop.permute.xlu0 %580
      %v583 = vsel %vm544, %v581, 0
      %584 = vrot.lane.b32.xlu0 %v515, 109
      %v585 = vpop.permute.xlu0 %584
      %v587 = vsel %vm549, %v585, 0
      %v589 = vrot.slane %v571, 4
      %590 = vrot.lane.b32.xlu0 %v554, 112
      %v591 = vpop.permute.xlu0 %590
      %v593 = vrot.slane %v583, 4
      %v595 = vsel %vm557, %v567, %v589
      %v597 = vsel %vm557, %v575, %v591
      %v599 = vsel %vm557, %v579, %v593
      %604 = vrot.lane.b32.xlu0 %v595, 16
      %v605 = vpop.permute.xlu0 %604
      %606 = vrot.lane.b32.xlu0 %v597, 16
      %v607 = vpop.permute.xlu0 %606
      %608 = vrot.lane.b32.xlu0 %v599, 16
      %v609 = vpop.permute.xlu0 %608
      %610 = vrot.lane.b32.xlu0 %v587, 16
      %v611 = vpop.permute.xlu0 %610
      %v613 = vsel %vm513, %v559, %v605
      %v616 = vsel %vm513, %v561, %v607
      %v619 = vsel %vm513, %v563, %v609
      %v622 = vsel %vm513, %v551, %v611
      %v627 = vunpack.c.l.b16 %v516
      %v628 = vunpack.c.l.b16 %v517
      %v629 = vunpack.c.l.b16 %v518
      %v630 = vunpack.c.l.b16 %v519
      %v631 = vpack.c.b16 %v628, %v627
      %v632 = vpack.c.b16 %v630, %v629
      %vm633 = vcmask 457728
      %v635 = vsel %vm633, %v631, 0
      %v638 = vsel %vm633, %v632, 0
      %v640 = vsel %vm557, %v622, 0
      %642 = vmatprep.subr.bf16.mxu0 0
      %643 = vmatpush1.bf16.msra.mxu0 %v613
      %644 = vmatprep.subr.bf16.mxu0 0
      %645 = vmatpush1.bf16.msra.mxu0 %v616
      %646 = vmatprep.subr.bf16.mxu0 0
      %647 = vmatpush1.bf16.msra.mxu0 %v619
      %648 = vmatprep.subr.bf16.mxu0 0
      %649 = vmatpush1.bf16.msra.mxu0 %v640
      %650 = vmatprep.subr.bf16.mxu0 0
      %651 = vmatpush1.bf16.msra.mxu0 0
      %652 = vmatprep.subr.bf16.mxu0 0
      %653 = vmatpush1.bf16.msra.mxu0 0
      %654 = vmatprep.subr.bf16.mxu0 0
      %655 = vmatpush1.bf16.msra.mxu0 0
      %656 = vmatprep.subr.bf16.mxu0 0
      %657 = vmatpush1.bf16.msra.mxu0 0
      %658 = vmatprep.subr.bf16.mxu0 0
      %659 = vmatpush1.bf16.msra.mxu0 0
      %660 = vmatprep.subr.bf16.mxu0 0
      %661 = vmatpush1.bf16.msra.mxu0 0
      %662 = vmatprep.subr.bf16.mxu0 0
      %663 = vmatpush1.bf16.msra.mxu0 0
      %664 = vmatprep.subr.bf16.mxu0 0
      %665 = vmatpush1.bf16.msra.mxu0 0
      %666 = vmatprep.subr.bf16.mxu0 0
      %667 = vmatpush1.bf16.msra.mxu0 0
      %668 = vmatprep.subr.bf16.mxu0 0
      %669 = vmatpush1.bf16.msra.mxu0 0
      %670 = vmatprep.subr.bf16.mxu0 0
      %671 = vmatpush1.bf16.msra.mxu0 0
      %672 = vmatprep.subr.bf16.mxu0 0
      %673 = vmatpush1.bf16.msra.mxu0 0
      %674 = vmatprep.mubr.bf16.mxu0 0
      %675 = vmatmul.mubr.bf16.gmra.mrb[0].mxu0 %v635
      %v676 = vpop.f32.mrb[0].mxu0
      %v677 = vadd.f32 0.0, %v676
      %v678 = vpop.f32.mrb[0].mxu0
      %v679 = vpop.f32.mrb[0].mxu0
      %v680 = vadd.f32 0.0, %v679
      %v681 = vpop.f32.mrb[0].mxu0
      %682 = vmatprep.mubr.bf16.mxu0 0
      %683 = vmatmul.mubr.bf16.gmra.mrb[0].mxu0 %v638
      %v684 = vpop.f32.mrb[0].mxu0
      %v685 = vadd.f32 0.0, %v684
      %v686 = vpop.f32.mrb[0].mxu0
      %v687 = vpop.f32.mrb[0].mxu0
      %v688 = vadd.f32 0.0, %v687
      %v689 = vpop.f32.mrb[0].mxu0
      %690 = vdwg.mxu0
      %v691 = vpack.c.bf16 %v680, %v677
      %v692 = vpack.c.bf16 %v688, %v685
      %vm693 = vcmp.gt.bf16.partialorder %v691, 0
      %vm694 = vcmp.gt.bf16.partialorder %v692, 0
      %v695 = vmul.bf16 %v691, 1045249613
      %v696 = vmul.bf16 %v692, 1045249613
      %v697 = vsel %vm693, %v691, %v695
      %v698 = vsel %vm694, %v692, %v696
      %v699 = vld [vmem:[%s2] sm:$0xf]
      %v700 = vld [vmem:[%s2 + $0x4] sm:$0xf]
      %v701 = vld [vmem:[%s2 + $0x8] sm:$0xf]
      %v702 = vld [vmem:[%s2 + $0xc] sm:$0xf]
      %705 = vrot.lane.b32.xlu0 %v697, 1
      %v706 = vpop.permute.xlu0 %705
      %707 = vrot.lane.b32.xlu0 %v698, 1
      %v708 = vpop.permute.xlu0 %707
      %v710 = vsel %vm534, 0, %v706
      %v712 = vsel %vm534, 0, %v708
      %713 = vrot.lane.b32.xlu0 %v697, 127
      %v714 = vpop.permute.xlu0 %713
      %715 = vrot.lane.b32.xlu0 %v698, 127
      %v716 = vpop.permute.xlu0 %715
      %v718 = vsel %vm539, %v714, 0
      %v720 = vsel %vm539, %v716, 0
      %721 = vrot.lane.b32.xlu0 %v697, 113
      %v722 = vpop.permute.xlu0 %721
      %723 = vrot.lane.b32.xlu0 %v698, 113
      %v724 = vpop.permute.xlu0 %723
      %v726 = vsel %vm534, 0, %v722
      %v728 = vsel %vm534, 0, %v724
      %729 = vrot.lane.b32.xlu0 %v697, 111
      %v730 = vpop.permute.xlu0 %729
      %731 = vrot.lane.b32.xlu0 %v698, 111
      %v732 = vpop.permute.xlu0 %731
      %v734 = vsel %vm539, %v730, 0
      %v736 = vsel %vm539, %v732, 0
      %737 = vrot.lane.b32.xlu0 %v697, 112
      %v738 = vpop.permute.xlu0 %737
      %739 = vrot.lane.b32.xlu0 %v698, 112
      %v740 = vpop.permute.xlu0 %739
      %745 = vrot.lane.b32.xlu0 %v726, 16
      %v746 = vpop.permute.xlu0 %745
      %747 = vrot.lane.b32.xlu0 %v728, 16
      %v748 = vpop.permute.xlu0 %747
      %749 = vrot.lane.b32.xlu0 %v738, 16
      %v750 = vpop.permute.xlu0 %749
      %751 = vrot.lane.b32.xlu0 %v740, 16
      %v752 = vpop.permute.xlu0 %751
      %753 = vrot.lane.b32.xlu0 %v734, 16
      %v754 = vpop.permute.xlu0 %753
      %755 = vrot.lane.b32.xlu0 %v736, 16
      %v756 = vpop.permute.xlu0 %755
      %v758 = vsel %vm513, %v710, %v746
      %v761 = vsel %vm513, %v712, %v748
      %v765 = vsel %vm513, %v697, %v750
      %v769 = vsel %vm513, %v698, %v752
      %v772 = vsel %vm513, %v718, %v754
      %v775 = vsel %vm513, %v720, %v756
      %v781 = vunpack.c.l.b16 %v699
      %v782 = vunpack.c.l.b16 %v700
      %v783 = vunpack.c.l.b16 %v701
      %v784 = vunpack.c.l.b16 %v702
      %v785 = vpack.c.b16 %v782, %v781
      %v786 = vpack.c.b16 %v784, %v783
      %vm787 = vcmask 785408
      %v789 = vsel %vm787, %v785, 0
      %v792 = vsel %vm787, %v786, 0
      %794 = vmatprep.subr.bf16.mxu0 0
      %795 = vmatpush1.bf16.msra.mxu0 %v758
      %796 = vmatprep.subr.bf16.mxu0 0
      %797 = vmatpush1.bf16.msra.mxu0 %v761
      %798 = vmatprep.subr.bf16.mxu0 0
      %799 = vmatpush1.bf16.msra.mxu0 %v765
      %800 = vmatprep.subr.bf16.mxu0 0
      %801 = vmatpush1.bf16.msra.mxu0 %v769
      %802 = vmatprep.subr.bf16.mxu0 0
      %803 = vmatpush1.bf16.msra.mxu0 %v772
      %804 = vmatprep.subr.bf16.mxu0 0
      %805 = vmatpush1.bf16.msra.mxu0 %v775
      %806 = vmatprep.subr.bf16.mxu0 0
      %807 = vmatpush1.bf16.msra.mxu0 0
      %808 = vmatprep.subr.bf16.mxu0 0
      %809 = vmatpush1.bf16.msra.mxu0 0
      %810 = vmatprep.subr.bf16.mxu0 0
      %811 = vmatpush1.bf16.msra.mxu0 0
      %812 = vmatprep.subr.bf16.mxu0 0
      %813 = vmatpush1.bf16.msra.mxu0 0
      %814 = vmatprep.subr.bf16.mxu0 0
      %815 = vmatpush1.bf16.msra.mxu0 0
      %816 = vmatprep.subr.bf16.mxu0 0
      %817 = vmatpush1.bf16.msra.mxu0 0
      %818 = vmatprep.subr.bf16.mxu0 0
      %819 = vmatpush1.bf16.msra.mxu0 0
      %820 = vmatprep.subr.bf16.mxu0 0
      %821 = vmatpush1.bf16.msra.mxu0 0
      %822 = vmatprep.subr.bf16.mxu0 0
      %823 = vmatpush1.bf16.msra.mxu0 0
      %824 = vmatprep.subr.bf16.mxu0 0
      %825 = vmatpush1.bf16.msra.mxu0 0
      %826 = vmatprep.mubr.bf16.mxu0 0
      %827 = vmatmul.mubr.bf16.gmra.mrb[0].mxu0 %v789
      %v828 = vpop.f32.mrb[0].mxu0
      %v829 = vadd.f32 0.0, %v828
      %v830 = vpop.f32.mrb[0].mxu0
      %v831 = vpop.f32.mrb[0].mxu0
      %v832 = vadd.f32 0.0, %v831
      %v833 = vpop.f32.mrb[0].mxu0
      %834 = vmatprep.mubr.bf16.mxu0 0
      %835 = vmatmul.mubr.bf16.gmra.mrb[0].mxu0 %v792
      %v836 = vpop.f32.mrb[0].mxu0
      %v837 = vadd.f32 0.0, %v836
      %v838 = vpop.f32.mrb[0].mxu0
      %v839 = vpop.f32.mrb[0].mxu0
      %v840 = vadd.f32 0.0, %v839
      %v841 = vpop.f32.mrb[0].mxu0
      %842 = vdwg.mxu0
      %v843 = vpack.c.bf16 %v832, %v829
      %v844 = vpack.c.bf16 %v840, %v837
      %v845 = vld [vmem:[%s3] sm:$0xf]
      %v846 = vld [vmem:[%s3 + $0x4] sm:$0xf]
      %v847 = vld [vmem:[%s3 + $0x8] sm:$0xf]
      %v848 = vld [vmem:[%s3 + $0xc] sm:$0xf]
      %s849 = scalar_lea.vmem %s3, 16
      %v850 = vld [vmem:[%s849] sm:$0xf]
      %v851 = vld [vmem:[%s849 + $0x4] sm:$0xf]
      %v852 = vld [vmem:[%s849 + $0x8] sm:$0xf]
      %v853 = vld [vmem:[%s849 + $0xc] sm:$0xf]
      %v858 = vunpack.c.l.b16 %v850
      %v859 = vunpack.c.l.b16 %v851
      %v860 = vunpack.c.l.b16 %v852
      %v861 = vunpack.c.l.b16 %v853
      %v862 = vpack.c.b16 %v859, %v858
      %v863 = vpack.c.b16 %v861, %v860
      %vm866 = vcmask 261120
      %v868 = vsel %vm866, %v844, 0
      %870 = vmatprep.subr.bf16.mxu0 0
      %871 = vmatpush1.bf16.msra.mxu0 %v862
      %872 = vmatprep.subr.bf16.mxu0 0
      %873 = vmatpush1.bf16.msra.mxu0 %v863
      %874 = vmatprep.subr.bf16.mxu0 0
      %875 = vmatpush1.bf16.msra.mxu0 0
      %876 = vmatprep.subr.bf16.mxu0 0
      %877 = vmatpush1.bf16.msra.mxu0 0
      %878 = vmatprep.subr.bf16.mxu0 0
      %879 = vmatpush1.bf16.msra.mxu0 0
      %880 = vmatprep.subr.bf16.mxu0 0
      %881 = vmatpush1.bf16.msra.mxu0 0
      %882 = vmatprep.subr.bf16.mxu0 0
      %883 = vmatpush1.bf16.msra.mxu0 0
      %884 = vmatprep.subr.bf16.mxu0 0
      %885 = vmatpush1.bf16.msra.mxu0 0
      %886 = vmatprep.subr.bf16.mxu0 0
      %887 = vmatpush1.bf16.msra.mxu0 0
      %888 = vmatprep.subr.bf16.mxu0 0
      %889 = vmatpush1.bf16.msra.mxu0 0
      %890 = vmatprep.subr.bf16.mxu0 0
      %891 = vmatpush1.bf16.msra.mxu0 0
      %892 = vmatprep.subr.bf16.mxu0 0
      %893 = vmatpush1.bf16.msra.mxu0 0
      %894 = vmatprep.subr.bf16.mxu0 0
      %895 = vmatpush1.bf16.msra.mxu0 0
      %896 = vmatprep.subr.bf16.mxu0 0
      %897 = vmatpush1.bf16.msra.mxu0 0
      %898 = vmatprep.subr.bf16.mxu0 0
      %899 = vmatpush1.bf16.msra.mxu0 0
      %900 = vmatprep.subr.bf16.mxu0 0
      %901 = vmatpush1.bf16.msra.mxu0 0
      %902 = vmatprep.mubr.bf16.mxu0 0
      %903 = vmatmul.mubr.bf16.gmra.mrb[0].mxu0 %v868
      %v904 = vpop.f32.mrb[0].mxu0
      %v905 = vadd.f32 0.0, %v904
      %v906 = vpop.f32.mrb[0].mxu0
      %v907 = vpop.f32.mrb[0].mxu0
      %v908 = vadd.f32 0.0, %v907
      %v909 = vpop.f32.mrb[0].mxu0
      %910 = vdwg.mxu0
      %v915 = vunpack.c.l.b16 %v845
      %v916 = vunpack.c.l.b16 %v846
      %v917 = vunpack.c.l.b16 %v847
      %v918 = vunpack.c.l.b16 %v848
      %v919 = vpack.c.b16 %v916, %v915
      %v920 = vpack.c.b16 %v918, %v917
      %v924 = vsel %vm866, %v843, 0
      %926 = vmatprep.subr.bf16.mxu0 0
      %927 = vmatpush1.bf16.msra.mxu0 %v919
      %928 = vmatprep.subr.bf16.mxu0 0
      %929 = vmatpush1.bf16.msra.mxu0 %v920
      %930 = vmatprep.subr.bf16.mxu0 0
      %931 = vmatpush1.bf16.msra.mxu0 0
      %932 = vmatprep.subr.bf16.mxu0 0
      %933 = vmatpush1.bf16.msra.mxu0 0
      %934 = vmatprep.subr.bf16.mxu0 0
      %935 = vmatpush1.bf16.msra.mxu0 0
      %936 = vmatprep.subr.bf16.mxu0 0
      %937 = vmatpush1.bf16.msra.mxu0 0
      %938 = vmatprep.subr.bf16.mxu0 0
      %939 = vmatpush1.bf16.msra.mxu0 0
      %940 = vmatprep.subr.bf16.mxu0 0
      %941 = vmatpush1.bf16.msra.mxu0 0
      %942 = vmatprep.subr.bf16.mxu0 0
      %943 = vmatpush1.bf16.msra.mxu0 0
      %944 = vmatprep.subr.bf16.mxu0 0
      %945 = vmatpush1.bf16.msra.mxu0 0
      %946 = vmatprep.subr.bf16.mxu0 0
      %947 = vmatpush1.bf16.msra.mxu0 0
      %948 = vmatprep.subr.bf16.mxu0 0
      %949 = vmatpush1.bf16.msra.mxu0 0
      %950 = vmatprep.subr.bf16.mxu0 0
      %951 = vmatpush1.bf16.msra.mxu0 0
      %952 = vmatprep.subr.bf16.mxu0 0
      %953 = vmatpush1.bf16.msra.mxu0 0
      %954 = vmatprep.subr.bf16.mxu0 0
      %955 = vmatpush1.bf16.msra.mxu0 0
      %956 = vmatprep.subr.bf16.mxu0 0
      %957 = vmatpush1.bf16.msra.mxu0 0
      %958 = vmatprep.mubr.bf16.mxu0 0
      %959 = vmatmul.mubr.bf16.gmra.mrb[0].mxu0 %v924
      %v960 = vpop.f32.mrb[0].mxu0
      %v961 = vadd.f32 %v905, %v960
      %v962 = vpop.f32.mrb[0].mxu0
      %v963 = vpop.f32.mrb[0].mxu0
      %v964 = vadd.f32 %v908, %v963
      %v965 = vpop.f32.mrb[0].mxu0
      %966 = vdwg.mxu0
      %v967 = vpack.c.bf16 %v964, %v961
      %vm968 = vcmp.gt.bf16.partialorder %v967, 0
      %v969 = vmul.bf16 %v967, 1045249613
      %v970 = vsel %vm968, %v967, %v969
      %v971 = vld [vmem:[%s4] sm:$0xf]
      %v972 = vld [vmem:[%s4 + $0x4] sm:$0xf]
      %974 = vrot.lane.b32.xlu0 %v970, 1
      %v975 = vpop.permute.xlu0 %974
      %v977 = vsel %vm534, 0, %v975
      %978 = vrot.lane.b32.xlu0 %v970, 127
      %v979 = vpop.permute.xlu0 %978
      %vm980 = vcmask 252928
      %v982 = vsel %vm980, %v979, 0
      %983 = vrot.lane.b32.xlu0 %v970, 97
      %v984 = vpop.permute.xlu0 %983
      %v986 = vsel %vm534, 0, %v984
      %987 = vrot.lane.b32.xlu0 %v970, 95
      %v988 = vpop.permute.xlu0 %987
      %v990 = vsel %vm980, %v988, 0
      %991 = vrot.lane.b32.xlu0 %v970, 96
      %v992 = vpop.permute.xlu0 %991
      %995 = vrot.lane.b32.xlu0 %v986, 32
      %v996 = vpop.permute.xlu0 %995
      %997 = vrot.lane.b32.xlu0 %v992, 32
      %v998 = vpop.permute.xlu0 %997
      %999 = vrot.lane.b32.xlu0 %v990, 32
      %v1000 = vpop.permute.xlu0 %999
      %v1002 = vsel %vm866, %v977, %v996
      %v1006 = vsel %vm866, %v970, %v998
      %v1009 = vsel %vm866, %v982, %v1000
      %v1013 = vunpack.c.l.b16 %v971
      %v1014 = vunpack.c.l.b16 %v972
      %v1015 = vpack.c.b16 %v1014, %v1013
      %vm1016 = vcmask 392192
      %v1018 = vsel %vm1016, %v1015, 0
      %1020 = vmatprep.subr.bf16.mxu0 0
      %1021 = vmatpush1.bf16.msra.mxu0 %v1002
      %1022 = vmatprep.subr.bf16.mxu0 0
      %1023 = vmatpush1.bf16.msra.mxu0 %v1006
      %1024 = vmatprep.subr.bf16.mxu0 0
      %1025 = vmatpush1.bf16.msra.mxu0 %v1009
      %1026 = vmatprep.subr.bf16.mxu0 0
      %1027 = vmatpush1.bf16.msra.mxu0 0
      %1028 = vmatprep.subr.bf16.mxu0 0
      %1029 = vmatpush1.bf16.msra.mxu0 0
      %1030 = vmatprep.subr.bf16.mxu0 0
      %1031 = vmatpush1.bf16.msra.mxu0 0
      %1032 = vmatprep.subr.bf16.mxu0 0
      %1033 = vmatpush1.bf16.msra.mxu0 0
      %1034 = vmatprep.subr.bf16.mxu0 0
      %1035 = vmatpush1.bf16.msra.mxu0 0
      %1036 = vmatprep.subr.bf16.mxu0 0
      %1037 = vmatpush1.bf16.msra.mxu0 0
      %1038 = vmatprep.subr.bf16.mxu0 0
      %1039 = vmatpush1.bf16.msra.mxu0 0
      %1040 = vmatprep.subr.bf16.mxu0 0
      %1041 = vmatpush1.bf16.msra.mxu0 0
      %1042 = vmatprep.subr.bf16.mxu0 0
      %1043 = vmatpush1.bf16.msra.mxu0 0
      %1044 = vmatprep.subr.bf16.mxu0 0
      %1045 = vmatpush1.bf16.msra.mxu0 0
      %1046 = vmatprep.subr.bf16.mxu0 0
      %1047 = vmatpush1.bf16.msra.mxu0 0
      %1048 = vmatprep.subr.bf16.mxu0 0
      %1049 = vmatpush1.bf16.msra.mxu0 0
      %1050 = vmatprep.subr.bf16.mxu0 0
      %1051 = vmatpush1.bf16.msra.mxu0 0
      %1052 = vmatprep.mubr.bf16.mxu0 0
      %1053 = vmatmul.mubr.bf16.gmra.mrb[0].mxu0 %v1018
      %v1054 = vpop.f32.mrb[0].mxu0
      %v1055 = vadd.f32 0.0, %v1054
      %v1056 = vpop.f32.mrb[0].mxu0
      %v1057 = vpop.f32.mrb[0].mxu0
      %v1058 = vadd.f32 0.0, %v1057
      %v1059 = vpop.f32.mrb[0].mxu0
      %1060 = vdwg.mxu0
      %vm1061 = vcmp.gt.f32.partialorder %v1055, 0.0
      %vm1062 = vcmp.gt.f32.partialorder %v1058, 0.0
      %v1063 = vmul.f32 %v1055, 0.2
      %v1064 = vmul.f32 %v1058, 0.2
      %v1065 = vsel %vm1061, %v1055, %v1063
      %v1066 = vsel %vm1062, %v1058, %v1064
      %v1067 = vpack.c.bf16 %v1066, %v1065
      %s1068 = scalar_lea.vmem %s4, 8
      %v1069 = vld [vmem:[%s1068] sm:$0xf]
      %v1070 = vld [vmem:[%s1068 + $0x4] sm:$0xf]
      %1072 = vrot.lane.b32.xlu0 %v1067, 1
      %v1073 = vpop.permute.xlu0 %1072
      %v1075 = vsel %vm534, 0, %v1073
      %1076 = vrot.lane.b32.xlu0 %v1067, 127
      %v1077 = vpop.permute.xlu0 %1076
      %v1079 = vsel %vm980, %v1077, 0
      %1080 = vrot.lane.b32.xlu0 %v1067, 97
      %v1081 = vpop.permute.xlu0 %1080
      %v1083 = vsel %vm534, 0, %v1081
      %1084 = vrot.lane.b32.xlu0 %v1067, 95
      %v1085 = vpop.permute.xlu0 %1084
      %v1087 = vsel %vm980, %v1085, 0
      %1088 = vrot.lane.b32.xlu0 %v1067, 96
      %v1089 = vpop.permute.xlu0 %1088
      %1092 = vrot.lane.b32.xlu0 %v1083, 32
      %v1093 = vpop.permute.xlu0 %1092
      %1094 = vrot.lane.b32.xlu0 %v1089, 32
      %v1095 = vpop.permute.xlu0 %1094
      %1096 = vrot.lane.b32.xlu0 %v1087, 32
      %v1097 = vpop.permute.xlu0 %1096
      %v1099 = vsel %vm866, %v1075, %v1093
      %v1103 = vsel %vm866, %v1067, %v1095
      %v1106 = vsel %vm866, %v1079, %v1097
      %v1110 = vunpack.c.l.b16 %v1069
      %v1111 = vunpack.c.l.b16 %v1070
      %v1112 = vpack.c.b16 %v1111, %v1110
      %v1114 = vsel %vm1016, %v1112, 0
      %1116 = vmatprep.subr.bf16.mxu0 0
      %1117 = vmatpush1.bf16.msra.mxu0 %v1099
      %1118 = vmatprep.subr.bf16.mxu0 0
      %1119 = vmatpush1.bf16.msra.mxu0 %v1103
      %1120 = vmatprep.subr.bf16.mxu0 0
      %1121 = vmatpush1.bf16.msra.mxu0 %v1106
      %1122 = vmatprep.subr.bf16.mxu0 0
      %1123 = vmatpush1.bf16.msra.mxu0 0
      %1124 = vmatprep.subr.bf16.mxu0 0
      %1125 = vmatpush1.bf16.msra.mxu0 0
      %1126 = vmatprep.subr.bf16.mxu0 0
      %1127 = vmatpush1.bf16.msra.mxu0 0
      %1128 = vmatprep.subr.bf16.mxu0 0
      %1129 = vmatpush1.bf16.msra.mxu0 0
      %1130 = vmatprep.subr.bf16.mxu0 0
      %1131 = vmatpush1.bf16.msra.mxu0 0
      %1132 = vmatprep.subr.bf16.mxu0 0
      %1133 = vmatpush1.bf16.msra.mxu0 0
      %1134 = vmatprep.subr.bf16.mxu0 0
      %1135 = vmatpush1.bf16.msra.mxu0 0
      %1136 = vmatprep.subr.bf16.mxu0 0
      %1137 = vmatpush1.bf16.msra.mxu0 0
      %1138 = vmatprep.subr.bf16.mxu0 0
      %1139 = vmatpush1.bf16.msra.mxu0 0
      %1140 = vmatprep.subr.bf16.mxu0 0
      %1141 = vmatpush1.bf16.msra.mxu0 0
      %1142 = vmatprep.subr.bf16.mxu0 0
      %1143 = vmatpush1.bf16.msra.mxu0 0
      %1144 = vmatprep.subr.bf16.mxu0 0
      %1145 = vmatpush1.bf16.msra.mxu0 0
      %1146 = vmatprep.subr.bf16.mxu0 0
      %1147 = vmatpush1.bf16.msra.mxu0 0
      %1148 = vmatprep.mubr.bf16.mxu0 0
      %1149 = vmatmul.mubr.bf16.gmra.mrb[0].mxu0 %v1114
      %v1150 = vpop.f32.mrb[0].mxu0
      %v1151 = vadd.f32 0.0, %v1150
      %v1152 = vpop.f32.mrb[0].mxu0
      %v1153 = vpop.f32.mrb[0].mxu0
      %v1154 = vadd.f32 0.0, %v1153
      %v1155 = vpop.f32.mrb[0].mxu0
      %1156 = vdwg.mxu0
      %v1157 = vpack.c.bf16 %v1154, %v1151
      %v1158 = vadd.bf16 %v967, %v1157
      %vm1159 = vcmp.gt.bf16.partialorder %v1158, 0
      %v1160 = vmul.bf16 %v1158, 1045249613
      %v1161 = vsel %vm1159, %v1158, %v1160
      %s1162 = scalar_lea.vmem %s4, 16
      %v1163 = vld [vmem:[%s1162] sm:$0xf]
      %v1164 = vld [vmem:[%s1162 + $0x4] sm:$0xf]
      %1166 = vrot.lane.b32.xlu0 %v1161, 3
      %v1167 = vpop.permute.xlu0 %1166
      %v1169 = vsel %vm523, 0, %v1167
      %1170 = vrot.lane.b32.xlu0 %v1161, 125
      %v1171 = vpop.permute.xlu0 %1170
      %vm1172 = vcmask 236544
      %v1174 = vsel %vm1172, %v1171, 0
      %1175 = vrot.lane.b32.xlu0 %v1161, 99
      %v1176 = vpop.permute.xlu0 %1175
      %v1178 = vsel %vm523, 0, %v1176
      %1179 = vrot.lane.b32.xlu0 %v1161, 93
      %v1180 = vpop.permute.xlu0 %1179
      %v1182 = vsel %vm1172, %v1180, 0
      %1183 = vrot.lane.b32.xlu0 %v1161, 96
      %v1184 = vpop.permute.xlu0 %1183
      %1187 = vrot.lane.b32.xlu0 %v1178, 32
      %v1188 = vpop.permute.xlu0 %1187
      %1189 = vrot.lane.b32.xlu0 %v1184, 32
      %v1190 = vpop.permute.xlu0 %1189
      %1191 = vrot.lane.b32.xlu0 %v1182, 32
      %v1192 = vpop.permute.xlu0 %1191
      %v1194 = vsel %vm866, %v1169, %v1188
      %v1198 = vsel %vm866, %v1161, %v1190
      %v1201 = vsel %vm866, %v1174, %v1192
      %v1205 = vunpack.c.l.b16 %v1163
      %v1206 = vunpack.c.l.b16 %v1164
      %v1207 = vpack.c.b16 %v1206, %v1205
      %v1209 = vsel %vm1016, %v1207, 0
      %1211 = vmatprep.subr.bf16.mxu0 0
      %1212 = vmatpush1.bf16.msra.mxu0 %v1194
      %1213 = vmatprep.subr.bf16.mxu0 0
      %1214 = vmatpush1.bf16.msra.mxu0 %v1198
      %1215 = vmatprep.subr.bf16.mxu0 0
      %1216 = vmatpush1.bf16.msra.mxu0 %v1201
      %1217 = vmatprep.subr.bf16.mxu0 0
      %1218 = vmatpush1.bf16.msra.mxu0 0
      %1219 = vmatprep.subr.bf16.mxu0 0
      %1220 = vmatpush1.bf16.msra.mxu0 0
      %1221 = vmatprep.subr.bf16.mxu0 0
      %1222 = vmatpush1.bf16.msra.mxu0 0
      %1223 = vmatprep.subr.bf16.mxu0 0
      %1224 = vmatpush1.bf16.msra.mxu0 0
      %1225 = vmatprep.subr.bf16.mxu0 0
      %1226 = vmatpush1.bf16.msra.mxu0 0
      %1227 = vmatprep.subr.bf16.mxu0 0
      %1228 = vmatpush1.bf16.msra.mxu0 0
      %1229 = vmatprep.subr.bf16.mxu0 0
      %1230 = vmatpush1.bf16.msra.mxu0 0
      %1231 = vmatprep.subr.bf16.mxu0 0
      %1232 = vmatpush1.bf16.msra.mxu0 0
      %1233 = vmatprep.subr.bf16.mxu0 0
      %1234 = vmatpush1.bf16.msra.mxu0 0
      %1235 = vmatprep.subr.bf16.mxu0 0
      %1236 = vmatpush1.bf16.msra.mxu0 0
      %1237 = vmatprep.subr.bf16.mxu0 0
      %1238 = vmatpush1.bf16.msra.mxu0 0
      %1239 = vmatprep.subr.bf16.mxu0 0
      %1240 = vmatpush1.bf16.msra.mxu0 0
      %1241 = vmatprep.subr.bf16.mxu0 0
      %1242 = vmatpush1.bf16.msra.mxu0 0
      %1243 = vmatprep.mubr.bf16.mxu0 0
      %1244 = vmatmul.mubr.bf16.gmra.mrb[0].mxu0 %v1209
      %v1245 = vpop.f32.mrb[0].mxu0
      %v1246 = vadd.f32 0.0, %v1245
      %v1247 = vpop.f32.mrb[0].mxu0
      %v1248 = vpop.f32.mrb[0].mxu0
      %v1249 = vadd.f32 0.0, %v1248
      %v1250 = vpop.f32.mrb[0].mxu0
      %1251 = vdwg.mxu0
      %vm1252 = vcmp.gt.f32.partialorder %v1246, 0.0
      %vm1253 = vcmp.gt.f32.partialorder %v1249, 0.0
      %v1254 = vmul.f32 %v1246, 0.2
      %v1255 = vmul.f32 %v1249, 0.2
      %v1256 = vsel %vm1252, %v1246, %v1254
      %v1257 = vsel %vm1253, %v1249, %v1255
      %v1258 = vpack.c.bf16 %v1257, %v1256
      %s1259 = scalar_lea.vmem %s4, 24
      %v1260 = vld [vmem:[%s1259] sm:$0xf]
      %v1261 = vld [vmem:[%s1259 + $0x4] sm:$0xf]
      %1263 = vrot.lane.b32.xlu0 %v1258, 1
      %v1264 = vpop.permute.xlu0 %1263
      %v1266 = vsel %vm534, 0, %v1264
      %1267 = vrot.lane.b32.xlu0 %v1258, 127
      %v1268 = vpop.permute.xlu0 %1267
      %v1270 = vsel %vm980, %v1268, 0
      %1271 = vrot.lane.b32.xlu0 %v1258, 97
      %v1272 = vpop.permute.xlu0 %1271
      %v1274 = vsel %vm534, 0, %v1272
      %1275 = vrot.lane.b32.xlu0 %v1258, 95
      %v1276 = vpop.permute.xlu0 %1275
      %v1278 = vsel %vm980, %v1276, 0
      %1279 = vrot.lane.b32.xlu0 %v1258, 96
      %v1280 = vpop.permute.xlu0 %1279
      %1283 = vrot.lane.b32.xlu0 %v1274, 32
      %v1284 = vpop.permute.xlu0 %1283
      %1285 = vrot.lane.b32.xlu0 %v1280, 32
      %v1286 = vpop.permute.xlu0 %1285
      %1287 = vrot.lane.b32.xlu0 %v1278, 32
      %v1288 = vpop.permute.xlu0 %1287
      %v1290 = vsel %vm866, %v1266, %v1284
      %v1294 = vsel %vm866, %v1258, %v1286
      %v1297 = vsel %vm866, %v1270, %v1288
      %v1301 = vunpack.c.l.b16 %v1260
      %v1302 = vunpack.c.l.b16 %v1261
      %v1303 = vpack.c.b16 %v1302, %v1301
      %v1305 = vsel %vm1016, %v1303, 0
      %1307 = vmatprep.subr.bf16.mxu0 0
      %1308 = vmatpush1.bf16.msra.mxu0 %v1290
      %1309 = vmatprep.subr.bf16.mxu0 0
      %1310 = vmatpush1.bf16.msra.mxu0 %v1294
      %1311 = vmatprep.subr.bf16.mxu0 0
      %1312 = vmatpush1.bf16.msra.mxu0 %v1297
      %1313 = vmatprep.subr.bf16.mxu0 0
      %1314 = vmatpush1.bf16.msra.mxu0 0
      %1315 = vmatprep.subr.bf16.mxu0 0
      %1316 = vmatpush1.bf16.msra.mxu0 0
      %1317 = vmatprep.subr.bf16.mxu0 0
      %1318 = vmatpush1.bf16.msra.mxu0 0
      %1319 = vmatprep.subr.bf16.mxu0 0
      %1320 = vmatpush1.bf16.msra.mxu0 0
      %1321 = vmatprep.subr.bf16.mxu0 0
      %1322 = vmatpush1.bf16.msra.mxu0 0
      %1323 = vmatprep.subr.bf16.mxu0 0
      %1324 = vmatpush1.bf16.msra.mxu0 0
      %1325 = vmatprep.subr.bf16.mxu0 0
      %1326 = vmatpush1.bf16.msra.mxu0 0
      %1327 = vmatprep.subr.bf16.mxu0 0
      %1328 = vmatpush1.bf16.msra.mxu0 0
      %1329 = vmatprep.subr.bf16.mxu0 0
      %1330 = vmatpush1.bf16.msra.mxu0 0
      %1331 = vmatprep.subr.bf16.mxu0 0
      %1332 = vmatpush1.bf16.msra.mxu0 0
      %1333 = vmatprep.subr.bf16.mxu0 0
      %1334 = vmatpush1.bf16.msra.mxu0 0
      %1335 = vmatprep.subr.bf16.mxu0 0
      %1336 = vmatpush1.bf16.msra.mxu0 0
      %1337 = vmatprep.subr.bf16.mxu0 0
      %1338 = vmatpush1.bf16.msra.mxu0 0
      %1339 = vmatprep.mubr.bf16.mxu0 0
      %1340 = vmatmul.mubr.bf16.gmra.mrb[0].mxu0 %v1305
      %v1341 = vpop.f32.mrb[0].mxu0
      %v1342 = vadd.f32 0.0, %v1341
      %v1343 = vpop.f32.mrb[0].mxu0
      %v1344 = vpop.f32.mrb[0].mxu0
      %v1345 = vadd.f32 0.0, %v1344
      %v1346 = vpop.f32.mrb[0].mxu0
      %1347 = vdwg.mxu0
      %v1348 = vpack.c.bf16 %v1345, %v1342
      %v1349 = vadd.bf16 %v1158, %v1348
      %vm1350 = vcmp.gt.bf16.partialorder %v1349, 0
      %v1351 = vmul.bf16 %v1349, 1045249613
      %v1352 = vsel %vm1350, %v1349, %v1351
      %s1353 = scalar_lea.vmem %s4, 32
      %v1354 = vld [vmem:[%s1353] sm:$0xf]
      %v1355 = vld [vmem:[%s1353 + $0x4] sm:$0xf]
      %1357 = vrot.lane.b32.xlu0 %v1352, 9
      %v1358 = vpop.permute.xlu0 %1357
      %vm1359 = vcmask 72704
      %v1361 = vsel %vm1359, 0, %v1358
      %1362 = vrot.lane.b32.xlu0 %v1352, 119
      %v1363 = vpop.permute.xlu0 %1362
      %vm1364 = vcmask 187392
      %v1366 = vsel %vm1364, %v1363, 0
      %1367 = vrot.lane.b32.xlu0 %v1352, 105
      %v1368 = vpop.permute.xlu0 %1367
      %v1370 = vsel %vm1359, 0, %v1368
      %1371 = vrot.lane.b32.xlu0 %v1352, 87
      %v1372 = vpop.permute.xlu0 %1371
      %v1374 = vsel %vm1364, %v1372, 0
      %1375 = vrot.lane.b32.xlu0 %v1352, 96
      %v1376 = vpop.permute.xlu0 %1375
      %1379 = vrot.lane.b32.xlu0 %v1370, 32
      %v1380 = vpop.permute.xlu0 %1379
      %1381 = vrot.lane.b32.xlu0 %v1376, 32
      %v1382 = vpop.permute.xlu0 %1381
      %1383 = vrot.lane.b32.xlu0 %v1374, 32
      %v1384 = vpop.permute.xlu0 %1383
      %v1386 = vsel %vm866, %v1361, %v1380
      %v1390 = vsel %vm866, %v1352, %v1382
      %v1393 = vsel %vm866, %v1366, %v1384
      %v1397 = vunpack.c.l.b16 %v1354
      %v1398 = vunpack.c.l.b16 %v1355
      %v1399 = vpack.c.b16 %v1398, %v1397
      %v1401 = vsel %vm1016, %v1399, 0
      %1403 = vmatprep.subr.bf16.mxu0 0
      %1404 = vmatpush1.bf16.msra.mxu0 %v1386
      %1405 = vmatprep.subr.bf16.mxu0 0
      %1406 = vmatpush1.bf16.msra.mxu0 %v1390
      %1407 = vmatprep.subr.bf16.mxu0 0
      %1408 = vmatpush1.bf16.msra.mxu0 %v1393
      %1409 = vmatprep.subr.bf16.mxu0 0
      %1410 = vmatpush1.bf16.msra.mxu0 0
      %1411 = vmatprep.subr.bf16.mxu0 0
      %1412 = vmatpush1.bf16.msra.mxu0 0
      %1413 = vmatprep.subr.bf16.mxu0 0
      %1414 = vmatpush1.bf16.msra.mxu0 0
      %1415 = vmatprep.subr.bf16.mxu0 0
      %1416 = vmatpush1.bf16.msra.mxu0 0
      %1417 = vmatprep.subr.bf16.mxu0 0
      %1418 = vmatpush1.bf16.msra.mxu0 0
      %1419 = vmatprep.subr.bf16.mxu0 0
      %1420 = vmatpush1.bf16.msra.mxu0 0
      %1421 = vmatprep.subr.bf16.mxu0 0
      %1422 = vmatpush1.bf16.msra.mxu0 0
      %1423 = vmatprep.subr.bf16.mxu0 0
      %1424 = vmatpush1.bf16.msra.mxu0 0
      %1425 = vmatprep.subr.bf16.mxu0 0
      %1426 = vmatpush1.bf16.msra.mxu0 0
      %1427 = vmatprep.subr.bf16.mxu0 0
      %1428 = vmatpush1.bf16.msra.mxu0 0
      %1429 = vmatprep.subr.bf16.mxu0 0
      %1430 = vmatpush1.bf16.msra.mxu0 0
      %1431 = vmatprep.subr.bf16.mxu0 0
      %1432 = vmatpush1.bf16.msra.mxu0 0
      %1433 = vmatprep.subr.bf16.mxu0 0
      %1434 = vmatpush1.bf16.msra.mxu0 0
      %1435 = vmatprep.mubr.bf16.mxu0 0
      %1436 = vmatmul.mubr.bf16.gmra.mrb[0].mxu0 %v1401
      %v1437 = vpop.f32.mrb[0].mxu0
      %v1438 = vadd.f32 0.0, %v1437
      %v1439 = vpop.f32.mrb[0].mxu0
      %v1440 = vpop.f32.mrb[0].mxu0
      %v1441 = vadd.f32 0.0, %v1440
      %v1442 = vpop.f32.mrb[0].mxu0
      %1443 = vdwg.mxu0
      %vm1444 = vcmp.gt.f32.partialorder %v1438, 0.0
      %vm1445 = vcmp.gt.f32.partialorder %v1441, 0.0
      %v1446 = vmul.f32 %v1438, 0.2
      %v1447 = vmul.f32 %v1441, 0.2
      %v1448 = vsel %vm1444, %v1438, %v1446
      %v1449 = vsel %vm1445, %v1441, %v1447
      %v1450 = vpack.c.bf16 %v1449, %v1448
      %s1451 = scalar_lea.vmem %s4, 40
      %v1452 = vld [vmem:[%s1451] sm:$0xf]
      %v1453 = vld [vmem:[%s1451 + $0x4] sm:$0xf]
      %1455 = vrot.lane.b32.xlu0 %v1450, 1
      %v1456 = vpop.permute.xlu0 %1455
      %v1458 = vsel %vm534, 0, %v1456
      %1459 = vrot.lane.b32.xlu0 %v1450, 127
      %v1460 = vpop.permute.xlu0 %1459
      %v1462 = vsel %vm980, %v1460, 0
      %1463 = vrot.lane.b32.xlu0 %v1450, 97
      %v1464 = vpop.permute.xlu0 %1463
      %v1466 = vsel %vm534, 0, %v1464
      %1467 = vrot.lane.b32.xlu0 %v1450, 95
      %v1468 = vpop.permute.xlu0 %1467
      %v1470 = vsel %vm980, %v1468, 0
      %1471 = vrot.lane.b32.xlu0 %v1450, 96
      %v1472 = vpop.permute.xlu0 %1471
      %1475 = vrot.lane.b32.xlu0 %v1466, 32
      %v1476 = vpop.permute.xlu0 %1475
      %1477 = vrot.lane.b32.xlu0 %v1472, 32
      %v1478 = vpop.permute.xlu0 %1477
      %1479 = vrot.lane.b32.xlu0 %v1470, 32
      %v1480 = vpop.permute.xlu0 %1479
      %v1482 = vsel %vm866, %v1458, %v1476
      %v1486 = vsel %vm866, %v1450, %v1478
      %v1489 = vsel %vm866, %v1462, %v1480
      %v1493 = vunpack.c.l.b16 %v1452
      %v1494 = vunpack.c.l.b16 %v1453
      %v1495 = vpack.c.b16 %v1494, %v1493
      %v1497 = vsel %vm1016, %v1495, 0
      %1499 = vmatprep.subr.bf16.mxu0 0
      %1500 = vmatpush1.bf16.msra.mxu0 %v1482
      %1501 = vmatprep.subr.bf16.mxu0 0
      %1502 = vmatpush1.bf16.msra.mxu0 %v1486
      %1503 = vmatprep.subr.bf16.mxu0 0
      %1504 = vmatpush1.bf16.msra.mxu0 %v1489
      %1505 = vmatprep.subr.bf16.mxu0 0
      %1506 = vmatpush1.bf16.msra.mxu0 0
      %1507 = vmatprep.subr.bf16.mxu0 0
      %1508 = vmatpush1.bf16.msra.mxu0 0
      %1509 = vmatprep.subr.bf16.mxu0 0
      %1510 = vmatpush1.bf16.msra.mxu0 0
      %1511 = vmatprep.subr.bf16.mxu0 0
      %1512 = vmatpush1.bf16.msra.mxu0 0
      %1513 = vmatprep.subr.bf16.mxu0 0
      %1514 = vmatpush1.bf16.msra.mxu0 0
      %1515 = vmatprep.subr.bf16.mxu0 0
      %1516 = vmatpush1.bf16.msra.mxu0 0
      %1517 = vmatprep.subr.bf16.mxu0 0
      %1518 = vmatpush1.bf16.msra.mxu0 0
      %1519 = vmatprep.subr.bf16.mxu0 0
      %1520 = vmatpush1.bf16.msra.mxu0 0
      %1521 = vmatprep.subr.bf16.mxu0 0
      %1522 = vmatpush1.bf16.msra.mxu0 0
      %1523 = vmatprep.subr.bf16.mxu0 0
      %1524 = vmatpush1.bf16.msra.mxu0 0
      %1525 = vmatprep.subr.bf16.mxu0 0
      %1526 = vmatpush1.bf16.msra.mxu0 0
      %1527 = vmatprep.subr.bf16.mxu0 0
      %1528 = vmatpush1.bf16.msra.mxu0 0
      %1529 = vmatprep.subr.bf16.mxu0 0
      %1530 = vmatpush1.bf16.msra.mxu0 0
      %1531 = vmatprep.mubr.bf16.mxu0 0
      %1532 = vmatmul.mubr.bf16.gmra.mrb[0].mxu0 %v1497
      %v1533 = vpop.f32.mrb[0].mxu0
      %v1534 = vadd.f32 0.0, %v1533
      %v1535 = vpop.f32.mrb[0].mxu0
      %v1536 = vpop.f32.mrb[0].mxu0
      %v1537 = vadd.f32 0.0, %v1536
      %v1538 = vpop.f32.mrb[0].mxu0
      %1539 = vdwg.mxu0
      %v1540 = vpack.c.bf16 %v1537, %v1534
      %v1541 = vadd.bf16 %v1349, %v1540
      %vm1542 = vcmp.gt.bf16.partialorder %v1541, 0
      %v1543 = vmul.bf16 %v1541, 1045249613
      %v1544 = vsel %vm1542, %v1541, %v1543
      %v1545 = vld [vmem:[%s5] sm:$0xf]
      %v1546 = vld [vmem:[%s5 + $0x4] sm:$0xf]
      %1548 = vrot.lane.b32.xlu0 %v1544, 1
      %v1549 = vpop.permute.xlu0 %1548
      %v1551 = vsel %vm534, 0, %v1549
      %1552 = vrot.lane.b32.xlu0 %v1544, 127
      %v1553 = vpop.permute.xlu0 %1552
      %v1555 = vsel %vm980, %v1553, 0
      %1556 = vrot.lane.b32.xlu0 %v1544, 97
      %v1557 = vpop.permute.xlu0 %1556
      %v1559 = vsel %vm534, 0, %v1557
      %1560 = vrot.lane.b32.xlu0 %v1544, 95
      %v1561 = vpop.permute.xlu0 %1560
      %v1563 = vsel %vm980, %v1561, 0
      %1564 = vrot.lane.b32.xlu0 %v1544, 96
      %v1565 = vpop.permute.xlu0 %1564
      %1568 = vrot.lane.b32.xlu0 %v1559, 32
      %v1569 = vpop.permute.xlu0 %1568
      %1570 = vrot.lane.b32.xlu0 %v1565, 32
      %v1571 = vpop.permute.xlu0 %1570
      %1572 = vrot.lane.b32.xlu0 %v1563, 32
      %v1573 = vpop.permute.xlu0 %1572
      %v1575 = vsel %vm866, %v1551, %v1569
      %v1579 = vsel %vm866, %v1544, %v1571
      %v1582 = vsel %vm866, %v1555, %v1573
      %v1586 = vunpack.c.l.b16 %v1545
      %v1587 = vunpack.c.l.b16 %v1546
      %v1588 = vpack.c.b16 %v1587, %v1586
      %v1590 = vsel %vm1016, %v1588, 0
      %1592 = vmatprep.subr.bf16.mxu0 0
      %1593 = vmatpush1.bf16.msra.mxu0 %v1575
      %1594 = vmatprep.subr.bf16.mxu0 0
      %1595 = vmatpush1.bf16.msra.mxu0 %v1579
      %1596 = vmatprep.subr.bf16.mxu0 0
      %1597 = vmatpush1.bf16.msra.mxu0 %v1582
      %1598 = vmatprep.subr.bf16.mxu0 0
      %1599 = vmatpush1.bf16.msra.mxu0 0
      %1600 = vmatprep.subr.bf16.mxu0 0
      %1601 = vmatpush1.bf16.msra.mxu0 0
      %1602 = vmatprep.subr.bf16.mxu0 0
      %1603 = vmatpush1.bf16.msra.mxu0 0
      %1604 = vmatprep.subr.bf16.mxu0 0
      %1605 = vmatpush1.bf16.msra.mxu0 0
      %1606 = vmatprep.subr.bf16.mxu0 0
      %1607 = vmatpush1.bf16.msra.mxu0 0
      %1608 = vmatprep.subr.bf16.mxu0 0
      %1609 = vmatpush1.bf16.msra.mxu0 0
      %1610 = vmatprep.subr.bf16.mxu0 0
      %1611 = vmatpush1.bf16.msra.mxu0 0
      %1612 = vmatprep.subr.bf16.mxu0 0
      %1613 = vmatpush1.bf16.msra.mxu0 0
      %1614 = vmatprep.subr.bf16.mxu0 0
      %1615 = vmatpush1.bf16.msra.mxu0 0
      %1616 = vmatprep.subr.bf16.mxu0 0
      %1617 = vmatpush1.bf16.msra.mxu0 0
      %1618 = vmatprep.subr.bf16.mxu0 0
      %1619 = vmatpush1.bf16.msra.mxu0 0
      %1620 = vmatprep.subr.bf16.mxu0 0
      %1621 = vmatpush1.bf16.msra.mxu0 0
      %1622 = vmatprep.subr.bf16.mxu0 0
      %1623 = vmatpush1.bf16.msra.mxu0 0
      %1624 = vmatprep.mubr.bf16.mxu0 0
      %1625 = vmatmul.mubr.bf16.gmra.mrb[0].mxu0 %v1590
      %v1626 = vpop.f32.mrb[0].mxu0
      %v1627 = vadd.f32 0.0, %v1626
      %v1628 = vpop.f32.mrb[0].mxu0
      %v1629 = vpop.f32.mrb[0].mxu0
      %v1630 = vadd.f32 0.0, %v1629
      %v1631 = vpop.f32.mrb[0].mxu0
      %1632 = vdwg.mxu0
      %v1633 = vpack.c.bf16 %v1630, %v1627
      %v1634 = vld [vmem:[%s6] sm:$0xf]
      %v1635 = vld [vmem:[%s6 + $0x4] sm:$0xf]
      %v1636 = vld [vmem:[%s6 + $0x8] sm:$0xf]
      %v1637 = vld [vmem:[%s6 + $0xc] sm:$0xf]
      %v1638 = vld [vmem:[%s6 + $0x10] sm:$0xf]
      %v1639 = vld [vmem:[%s6 + $0x14] sm:$0xf]
      %v1640 = vld [vmem:[%s6 + $0x18] sm:$0xf]
      %v1641 = vld [vmem:[%s6 + $0x1c] sm:$0xf]
      %s1642 = scalar_lea.vmem %s6, 32
      %v1643 = vld [vmem:[%s1642] sm:$0xf]
      %v1644 = vld [vmem:[%s1642 + $0x4] sm:$0xf]
      %v1645 = vld [vmem:[%s1642 + $0x8] sm:$0xf]
      %v1646 = vld [vmem:[%s1642 + $0xc] sm:$0xf]
      %v1647 = vld [vmem:[%s1642 + $0x10] sm:$0xf]
      %v1648 = vld [vmem:[%s1642 + $0x14] sm:$0xf]
      %v1649 = vld [vmem:[%s1642 + $0x18] sm:$0xf]
      %v1650 = vld [vmem:[%s1642 + $0x1c] sm:$0xf]
      %v1652 = vrot.slane %v1633, 4
      %v1661 = vunpack.c.l.b16 %v1643
      %v1662 = vunpack.c.l.b16 %v1644
      %v1663 = vunpack.c.l.b16 %v1645
      %v1664 = vunpack.c.l.b16 %v1646
      %v1665 = vunpack.c.l.b16 %v1647
      %v1666 = vunpack.c.l.b16 %v1648
      %v1667 = vunpack.c.l.b16 %v1649
      %v1668 = vunpack.c.l.b16 %v1650
      %v1669 = vpack.c.b16 %v1662, %v1661
      %v1670 = vpack.c.b16 %v1664, %v1663
      %v1671 = vpack.c.b16 %v1666, %v1665
      %v1672 = vpack.c.b16 %v1668, %v1667
      %vm1677 = vcmask 523264
      %v1679 = vsel %vm1677, %v1652, 0
      %1681 = vmatprep.subr.bf16.mxu0 0
      %1682 = vmatpush1.bf16.msra.mxu0 %v1669
      %1683 = vmatprep.subr.bf16.mxu0 0
      %1684 = vmatpush1.bf16.msra.mxu0 %v1670
      %1685 = vmatprep.subr.bf16.mxu0 0
      %1686 = vmatpush1.bf16.msra.mxu0 %v1671
      %1687 = vmatprep.subr.bf16.mxu0 0
      %1688 = vmatpush1.bf16.msra.mxu0 %v1672
      %1689 = vmatprep.subr.bf16.mxu0 0
      %1690 = vmatpush1.bf16.msra.mxu0 0
      %1691 = vmatprep.subr.bf16.mxu0 0
      %1692 = vmatpush1.bf16.msra.mxu0 0
      %1693 = vmatprep.subr.bf16.mxu0 0
      %1694 = vmatpush1.bf16.msra.mxu0 0
      %1695 = vmatprep.subr.bf16.mxu0 0
      %1696 = vmatpush1.bf16.msra.mxu0 0
      %1697 = vmatprep.subr.bf16.mxu0 0
      %1698 = vmatpush1.bf16.msra.mxu0 0
      %1699 = vmatprep.subr.bf16.mxu0 0
      %1700 = vmatpush1.bf16.msra.mxu0 0
      %1701 = vmatprep.subr.bf16.mxu0 0
      %1702 = vmatpush1.bf16.msra.mxu0 0
      %1703 = vmatprep.subr.bf16.mxu0 0
      %1704 = vmatpush1.bf16.msra.mxu0 0
      %1705 = vmatprep.subr.bf16.mxu0 0
      %1706 = vmatpush1.bf16.msra.mxu0 0
      %1707 = vmatprep.subr.bf16.mxu0 0
      %1708 = vmatpush1.bf16.msra.mxu0 0
      %1709 = vmatprep.subr.bf16.mxu0 0
      %1710 = vmatpush1.bf16.msra.mxu0 0
      %1711 = vmatprep.subr.bf16.mxu0 0
      %1712 = vmatpush1.bf16.msra.mxu0 0
      %1713 = vmatprep.mubr.bf16.mxu0 0
      %1714 = vmatmul.mubr.bf16.gmra.mrb[0].mxu0 %v1679
      %v1715 = vpop.f32.mrb[0].mxu0
      %v1716 = vadd.f32 0.0, %v1715
      %v1717 = vpop.f32.mrb[0].mxu0
      %v1718 = vpop.f32.mrb[0].mxu0
      %v1719 = vpop.f32.mrb[0].mxu0
      %1720 = vdwg.mxu0
      %v1729 = vunpack.c.l.b16 %v1634
      %v1730 = vunpack.c.l.b16 %v1635
      %v1731 = vunpack.c.l.b16 %v1636
      %v1732 = vunpack.c.l.b16 %v1637
      %v1733 = vunpack.c.l.b16 %v1638
      %v1734 = vunpack.c.l.b16 %v1639
      %v1735 = vunpack.c.l.b16 %v1640
      %v1736 = vunpack.c.l.b16 %v1641
      %v1737 = vpack.c.b16 %v1730, %v1729
      %v1738 = vpack.c.b16 %v1732, %v1731
      %v1739 = vpack.c.b16 %v1734, %v1733
      %v1740 = vpack.c.b16 %v1736, %v1735
      %v1746 = vsel %vm1677, %v1633, 0
      %1748 = vmatprep.subr.bf16.mxu0 0
      %1749 = vmatpush1.bf16.msra.mxu0 %v1737
      %1750 = vmatprep.subr.bf16.mxu0 0
      %1751 = vmatpush1.bf16.msra.mxu0 %v1738
      %1752 = vmatprep.subr.bf16.mxu0 0
      %1753 = vmatpush1.bf16.msra.mxu0 %v1739
      %1754 = vmatprep.subr.bf16.mxu0 0
      %1755 = vmatpush1.bf16.msra.mxu0 %v1740
      %1756 = vmatprep.subr.bf16.mxu0 0
      %1757 = vmatpush1.bf16.msra.mxu0 0
      %1758 = vmatprep.subr.bf16.mxu0 0
      %1759 = vmatpush1.bf16.msra.mxu0 0
      %1760 = vmatprep.subr.bf16.mxu0 0
      %1761 = vmatpush1.bf16.msra.mxu0 0
      %1762 = vmatprep.subr.bf16.mxu0 0
      %1763 = vmatpush1.bf16.msra.mxu0 0
      %1764 = vmatprep.subr.bf16.mxu0 0
      %1765 = vmatpush1.bf16.msra.mxu0 0
      %1766 = vmatprep.subr.bf16.mxu0 0
      %1767 = vmatpush1.bf16.msra.mxu0 0
      %1768 = vmatprep.subr.bf16.mxu0 0
      %1769 = vmatpush1.bf16.msra.mxu0 0
      %1770 = vmatprep.subr.bf16.mxu0 0
      %1771 = vmatpush1.bf16.msra.mxu0 0
      %1772 = vmatprep.subr.bf16.mxu0 0
      %1773 = vmatpush1.bf16.msra.mxu0 0
      %1774 = vmatprep.subr.bf16.mxu0 0
      %1775 = vmatpush1.bf16.msra.mxu0 0
      %1776 = vmatprep.subr.bf16.mxu0 0
      %1777 = vmatpush1.bf16.msra.mxu0 0
      %1778 = vmatprep.subr.bf16.mxu0 0
      %1779 = vmatpush1.bf16.msra.mxu0 0
      %1780 = vmatprep.mubr.bf16.mxu0 0
      %1781 = vmatmul.mubr.bf16.gmra.mrb[0].mxu0 %v1746
      %v1782 = vpop.f32.mrb[0].mxu0
      %v1783 = vadd.f32 %v1716, %v1782
      %v1784 = vpop.f32.mrb[0].mxu0
      %v1785 = vpop.f32.mrb[0].mxu0
      %v1786 = vpop.f32.mrb[0].mxu0
      %1787 = vdwg.mxu0
      %v1788 = vpack.c.bf16 %v1783, %v1783
      %vm1789 = vcmp.gt.bf16.partialorder %v1788, 0
      %v1790 = vmul.bf16 %v1788, 1045249613
      %v1791 = vsel %vm1789, %v1788, %v1790
      %v1792 = vld [vmem:[%s7] sm:$0xf]
      %1794 = vrot.lane.b32.xlu0 %v1791, 1
      %v1795 = vpop.permute.xlu0 %1794
      %v1797 = vsel %vm534, 0, %v1795
      %1798 = vrot.lane.b32.xlu0 %v1791, 127
      %v1799 = vpop.permute.xlu0 %1798
      %vm1800 = vcmask 515072
      %v1802 = vsel %vm1800, %v1799, 0
      %v1803 = vrot.slane %v1791, 4
      %v1805 = vsel %vm557, %v1797, %v1803
      %1806 = vrot.lane.b32.xlu0 %v1791, 65
      %v1807 = vpop.permute.xlu0 %1806
      %v1809 = vsel %vm534, 0, %v1807
      %1810 = vrot.lane.b32.xlu0 %v1791, 63
      %v1811 = vpop.permute.xlu0 %1810
      %v1813 = vsel %vm1800, %v1811, 0
      %1814 = vrot.lane.b32.xlu0 %v1803, 64
      %v1815 = vpop.permute.xlu0 %1814
      %v1817 = vsel %vm557, %v1809, %v1815
      %1820 = vrot.lane.b32.xlu0 %v1817, 64
      %v1821 = vpop.permute.xlu0 %1820
      %1822 = vrot.lane.b32.xlu0 %v1813, 64
      %v1823 = vpop.permute.xlu0 %1822
      %v1825 = vsel %vm1677, %v1805, %v1821
      %v1828 = vsel %vm1677, %v1802, %v1823
      %vm1829 = vcmask 195584
      %v1831 = vsel %vm1829, %v1792, 0
      %v1833 = vsel %vm557, %v1828, 0
      %1835 = vmatprep.subr.bf16.mxu0 0
      %1836 = vmatpush1.bf16.msra.mxu0 %v1825
      %1837 = vmatprep.subr.bf16.mxu0 0
      %1838 = vmatpush1.bf16.msra.mxu0 %v1833
      %1839 = vmatprep.subr.bf16.mxu0 0
      %1840 = vmatpush1.bf16.msra.mxu0 0
      %1841 = vmatprep.subr.bf16.mxu0 0
      %1842 = vmatpush1.bf16.msra.mxu0 0
      %1843 = vmatprep.subr.bf16.mxu0 0
      %1844 = vmatpush1.bf16.msra.mxu0 0
      %1845 = vmatprep.subr.bf16.mxu0 0
      %1846 = vmatpush1.bf16.msra.mxu0 0
      %1847 = vmatprep.subr.bf16.mxu0 0
      %1848 = vmatpush1.bf16.msra.mxu0 0
      %1849 = vmatprep.subr.bf16.mxu0 0
      %1850 = vmatpush1.bf16.msra.mxu0 0
      %1851 = vmatprep.subr.bf16.mxu0 0
      %1852 = vmatpush1.bf16.msra.mxu0 0
      %1853 = vmatprep.subr.bf16.mxu0 0
      %1854 = vmatpush1.bf16.msra.mxu0 0
      %1855 = vmatprep.subr.bf16.mxu0 0
      %1856 = vmatpush1.bf16.msra.mxu0 0
      %1857 = vmatprep.subr.bf16.mxu0 0
      %1858 = vmatpush1.bf16.msra.mxu0 0
      %1859 = vmatprep.subr.bf16.mxu0 0
      %1860 = vmatpush1.bf16.msra.mxu0 0
      %1861 = vmatprep.subr.bf16.mxu0 0
      %1862 = vmatpush1.bf16.msra.mxu0 0
      %1863 = vmatprep.subr.bf16.mxu0 0
      %1864 = vmatpush1.bf16.msra.mxu0 0
      %1865 = vmatprep.subr.bf16.mxu0 0
      %1866 = vmatpush1.bf16.msra.mxu0 0
      %1867 = vmatprep.mubr.bf16.mxu0 0
      %1868 = vmatmul.mubr.bf16.gmra.mrb[0].mxu0 %v1831
      %v1869 = vpop.f32.mrb[0].mxu0
      %v1870 = vadd.f32 0.0, %v1869
      %v1871 = vpop.f32.mrb[0].mxu0
      %v1872 = vpop.f32.mrb[0].mxu0
      %v1873 = vpop.f32.mrb[0].mxu0
      %1874 = vdwg.mxu0
      %vm1875 = vcmp.gt.f32.partialorder %v1870, 0.0
      %v1876 = vmul.f32 %v1870, 0.2
      %v1877 = vsel %vm1875, %v1870, %v1876
      %v1878 = vpack.c.bf16 %v1877, %v1877
      %s1879 = scalar_lea.vmem %s7, 4
      %v1880 = vld [vmem:[%s1879] sm:$0xf]
      %1882 = vrot.lane.b32.xlu0 %v1878, 1
      %v1883 = vpop.permute.xlu0 %1882
      %v1885 = vsel %vm534, 0, %v1883
      %1886 = vrot.lane.b32.xlu0 %v1878, 127
      %v1887 = vpop.permute.xlu0 %1886
      %v1889 = vsel %vm1800, %v1887, 0
      %v1890 = vrot.slane %v1878, 4
      %v1892 = vsel %vm557, %v1885, %v1890
      %1893 = vrot.lane.b32.xlu0 %v1878, 65
      %v1894 = vpop.permute.xlu0 %1893
      %v1896 = vsel %vm534, 0, %v1894
      %1897 = vrot.lane.b32.xlu0 %v1878, 63
      %v1898 = vpop.permute.xlu0 %1897
      %v1900 = vsel %vm1800, %v1898, 0
      %1901 = vrot.lane.b32.xlu0 %v1890, 64
      %v1902 = vpop.permute.xlu0 %1901
      %v1904 = vsel %vm557, %v1896, %v1902
      %1907 = vrot.lane.b32.xlu0 %v1904, 64
      %v1908 = vpop.permute.xlu0 %1907
      %1909 = vrot.lane.b32.xlu0 %v1900, 64
      %v1910 = vpop.permute.xlu0 %1909
      %v1912 = vsel %vm1677, %v1892, %v1908
      %v1915 = vsel %vm1677, %v1889, %v1910
      %v1917 = vsel %vm1829, %v1880, 0
      %v1919 = vsel %vm557, %v1915, 0
      %1921 = vmatprep.subr.bf16.mxu0 0
      %1922 = vmatpush1.bf16.msra.mxu0 %v1912
      %1923 = vmatprep.subr.bf16.mxu0 0
      %1924 = vmatpush1.bf16.msra.mxu0 %v1919
      %1925 = vmatprep.subr.bf16.mxu0 0
      %1926 = vmatpush1.bf16.msra.mxu0 0
      %1927 = vmatprep.subr.bf16.mxu0 0
      %1928 = vmatpush1.bf16.msra.mxu0 0
      %1929 = vmatprep.subr.bf16.mxu0 0
      %1930 = vmatpush1.bf16.msra.mxu0 0
      %1931 = vmatprep.subr.bf16.mxu0 0
      %1932 = vmatpush1.bf16.msra.mxu0 0
      %1933 = vmatprep.subr.bf16.mxu0 0
      %1934 = vmatpush1.bf16.msra.mxu0 0
      %1935 = vmatprep.subr.bf16.mxu0 0
      %1936 = vmatpush1.bf16.msra.mxu0 0
      %1937 = vmatprep.subr.bf16.mxu0 0
      %1938 = vmatpush1.bf16.msra.mxu0 0
      %1939 = vmatprep.subr.bf16.mxu0 0
      %1940 = vmatpush1.bf16.msra.mxu0 0
      %1941 = vmatprep.subr.bf16.mxu0 0
      %1942 = vmatpush1.bf16.msra.mxu0 0
      %1943 = vmatprep.subr.bf16.mxu0 0
      %1944 = vmatpush1.bf16.msra.mxu0 0
      %1945 = vmatprep.subr.bf16.mxu0 0
      %1946 = vmatpush1.bf16.msra.mxu0 0
      %1947 = vmatprep.subr.bf16.mxu0 0
      %1948 = vmatpush1.bf16.msra.mxu0 0
      %1949 = vmatprep.subr.bf16.mxu0 0
      %1950 = vmatpush1.bf16.msra.mxu0 0
      %1951 = vmatprep.subr.bf16.mxu0 0
      %1952 = vmatpush1.bf16.msra.mxu0 0
      %1953 = vmatprep.mubr.bf16.mxu0 0
      %1954 = vmatmul.mubr.bf16.gmra.mrb[0].mxu0 %v1917
      %v1955 = vpop.f32.mrb[0].mxu0
      %v1956 = vadd.f32 0.0, %v1955
      %v1957 = vpop.f32.mrb[0].mxu0
      %v1958 = vpop.f32.mrb[0].mxu0
      %v1959 = vpop.f32.mrb[0].mxu0
      %1960 = vdwg.mxu0
      %v1961 = vpack.c.bf16 %v1956, %v1956
      %v1962 = vadd.bf16 %v1788, %v1961
      %vm1963 = vcmp.gt.bf16.partialorder %v1962, 0
      %v1964 = vmul.bf16 %v1962, 1045249613
      %v1965 = vsel %vm1963, %v1962, %v1964
      %s1966 = scalar_lea.vmem %s7, 8
      %v1967 = vld [vmem:[%s1966] sm:$0xf]
      %1969 = vrot.lane.b32.xlu0 %v1965, 3
      %v1970 = vpop.permute.xlu0 %1969
      %v1972 = vsel %vm523, 0, %v1970
      %1973 = vrot.lane.b32.xlu0 %v1965, 125
      %v1974 = vpop.permute.xlu0 %1973
      %vm1975 = vcmask 498688
      %v1977 = vsel %vm1975, %v1974, 0
      %v1978 = vrot.slane %v1965, 4
      %v1980 = vsel %vm557, %v1972, %v1978
      %1981 = vrot.lane.b32.xlu0 %v1965, 67
      %v1982 = vpop.permute.xlu0 %1981
      %v1984 = vsel %vm523, 0, %v1982
      %1985 = vrot.lane.b32.xlu0 %v1965, 61
      %v1986 = vpop.permute.xlu0 %1985
      %v1988 = vsel %vm1975, %v1986, 0
      %1989 = vrot.lane.b32.xlu0 %v1978, 64
      %v1990 = vpop.permute.xlu0 %1989
      %v1992 = vsel %vm557, %v1984, %v1990
      %1995 = vrot.lane.b32.xlu0 %v1992, 64
      %v1996 = vpop.permute.xlu0 %1995
      %1997 = vrot.lane.b32.xlu0 %v1988, 64
      %v1998 = vpop.permute.xlu0 %1997
      %v2000 = vsel %vm1677, %v1980, %v1996
      %v2003 = vsel %vm1677, %v1977, %v1998
      %v2005 = vsel %vm1829, %v1967, 0
      %v2007 = vsel %vm557, %v2003, 0
      %2009 = vmatprep.subr.bf16.mxu0 0
      %2010 = vmatpush1.bf16.msra.mxu0 %v2000
      %2011 = vmatprep.subr.bf16.mxu0 0
      %2012 = vmatpush1.bf16.msra.mxu0 %v2007
      %2013 = vmatprep.subr.bf16.mxu0 0
      %2014 = vmatpush1.bf16.msra.mxu0 0
      %2015 = vmatprep.subr.bf16.mxu0 0
      %2016 = vmatpush1.bf16.msra.mxu0 0
      %2017 = vmatprep.subr.bf16.mxu0 0
      %2018 = vmatpush1.bf16.msra.mxu0 0
      %2019 = vmatprep.subr.bf16.mxu0 0
      %2020 = vmatpush1.bf16.msra.mxu0 0
      %2021 = vmatprep.subr.bf16.mxu0 0
      %2022 = vmatpush1.bf16.msra.mxu0 0
      %2023 = vmatprep.subr.bf16.mxu0 0
      %2024 = vmatpush1.bf16.msra.mxu0 0
      %2025 = vmatprep.subr.bf16.mxu0 0
      %2026 = vmatpush1.bf16.msra.mxu0 0
      %2027 = vmatprep.subr.bf16.mxu0 0
      %2028 = vmatpush1.bf16.msra.mxu0 0
      %2029 = vmatprep.subr.bf16.mxu0 0
      %2030 = vmatpush1.bf16.msra.mxu0 0
      %2031 = vmatprep.subr.bf16.mxu0 0
      %2032 = vmatpush1.bf16.msra.mxu0 0
      %2033 = vmatprep.subr.bf16.mxu0 0
      %2034 = vmatpush1.bf16.msra.mxu0 0
      %2035 = vmatprep.subr.bf16.mxu0 0
      %2036 = vmatpush1.bf16.msra.mxu0 0
      %2037 = vmatprep.subr.bf16.mxu0 0
      %2038 = vmatpush1.bf16.msra.mxu0 0
      %2039 = vmatprep.subr.bf16.mxu0 0
      %2040 = vmatpush1.bf16.msra.mxu0 0
      %2041 = vmatprep.mubr.bf16.mxu0 0
      %2042 = vmatmul.mubr.bf16.gmra.mrb[0].mxu0 %v2005
      %v2043 = vpop.f32.mrb[0].mxu0
      %v2044 = vadd.f32 0.0, %v2043
      %v2045 = vpop.f32.mrb[0].mxu0
      %v2046 = vpop.f32.mrb[0].mxu0
      %v2047 = vpop.f32.mrb[0].mxu0
      %2048 = vdwg.mxu0
      %vm2049 = vcmp.gt.f32.partialorder %v2044, 0.0
      %v2050 = vmul.f32 %v2044, 0.2
      %v2051 = vsel %vm2049, %v2044, %v2050
      %v2052 = vpack.c.bf16 %v2051, %v2051
      %s2053 = scalar_lea.vmem %s7, 12
      %v2054 = vld [vmem:[%s2053] sm:$0xf]
      %2056 = vrot.lane.b32.xlu0 %v2052, 1
      %v2057 = vpop.permute.xlu0 %2056
      %v2059 = vsel %vm534, 0, %v2057
      %2060 = vrot.lane.b32.xlu0 %v2052, 127
      %v2061 = vpop.permute.xlu0 %2060
      %v2063 = vsel %vm1800, %v2061, 0
      %v2064 = vrot.slane %v2052, 4
      %v2066 = vsel %vm557, %v2059, %v2064
      %2067 = vrot.lane.b32.xlu0 %v2052, 65
      %v2068 = vpop.permute.xlu0 %2067
      %v2070 = vsel %vm534, 0, %v2068
      %2071 = vrot.lane.b32.xlu0 %v2052, 63
      %v2072 = vpop.permute.xlu0 %2071
      %v2074 = vsel %vm1800, %v2072, 0
      %2075 = vrot.lane.b32.xlu0 %v2064, 64
      %v2076 = vpop.permute.xlu0 %2075
      %v2078 = vsel %vm557, %v2070, %v2076
      %2081 = vrot.lane.b32.xlu0 %v2078, 64
      %v2082 = vpop.permute.xlu0 %2081
      %2083 = vrot.lane.b32.xlu0 %v2074, 64
      %v2084 = vpop.permute.xlu0 %2083
      %v2086 = vsel %vm1677, %v2066, %v2082
      %v2089 = vsel %vm1677, %v2063, %v2084
      %v2091 = vsel %vm1829, %v2054, 0
      %v2093 = vsel %vm557, %v2089, 0
      %2095 = vmatprep.subr.bf16.mxu0 0
      %2096 = vmatpush1.bf16.msra.mxu0 %v2086
      %2097 = vmatprep.subr.bf16.mxu0 0
      %2098 = vmatpush1.bf16.msra.mxu0 %v2093
      %2099 = vmatprep.subr.bf16.mxu0 0
      %2100 = vmatpush1.bf16.msra.mxu0 0
      %2101 = vmatprep.subr.bf16.mxu0 0
      %2102 = vmatpush1.bf16.msra.mxu0 0
      %2103 = vmatprep.subr.bf16.mxu0 0
      %2104 = vmatpush1.bf16.msra.mxu0 0
      %2105 = vmatprep.subr.bf16.mxu0 0
      %2106 = vmatpush1.bf16.msra.mxu0 0
      %2107 = vmatprep.subr.bf16.mxu0 0
      %2108 = vmatpush1.bf16.msra.mxu0 0
      %2109 = vmatprep.subr.bf16.mxu0 0
      %2110 = vmatpush1.bf16.msra.mxu0 0
      %2111 = vmatprep.subr.bf16.mxu0 0
      %2112 = vmatpush1.bf16.msra.mxu0 0
      %2113 = vmatprep.subr.bf16.mxu0 0
      %2114 = vmatpush1.bf16.msra.mxu0 0
      %2115 = vmatprep.subr.bf16.mxu0 0
      %2116 = vmatpush1.bf16.msra.mxu0 0
      %2117 = vmatprep.subr.bf16.mxu0 0
      %2118 = vmatpush1.bf16.msra.mxu0 0
      %2119 = vmatprep.subr.bf16.mxu0 0
      %2120 = vmatpush1.bf16.msra.mxu0 0
      %2121 = vmatprep.subr.bf16.mxu0 0
      %2122 = vmatpush1.bf16.msra.mxu0 0
      %2123 = vmatprep.subr.bf16.mxu0 0
      %2124 = vmatpush1.bf16.msra.mxu0 0
      %2125 = vmatprep.subr.bf16.mxu0 0
      %2126 = vmatpush1.bf16.msra.mxu0 0
      %2127 = vmatprep.mubr.bf16.mxu0 0
      %2128 = vmatmul.mubr.bf16.gmra.mrb[0].mxu0 %v2091
      %v2129 = vpop.f32.mrb[0].mxu0
      %v2130 = vadd.f32 0.0, %v2129
      %v2131 = vpop.f32.mrb[0].mxu0
      %v2132 = vpop.f32.mrb[0].mxu0
      %v2133 = vpop.f32.mrb[0].mxu0
      %2134 = vdwg.mxu0
      %v2135 = vpack.c.bf16 %v2130, %v2130
      %v2136 = vadd.bf16 %v1962, %v2135
      %vm2137 = vcmp.gt.bf16.partialorder %v2136, 0
      %v2138 = vmul.bf16 %v2136, 1045249613
      %v2139 = vsel %vm2137, %v2136, %v2138
      %s2140 = scalar_lea.vmem %s7, 16
      %v2141 = vld [vmem:[%s2140] sm:$0xf]
      %2143 = vrot.lane.b32.xlu0 %v2139, 9
      %v2144 = vpop.permute.xlu0 %2143
      %v2146 = vsel %vm1359, 0, %v2144
      %2147 = vrot.lane.b32.xlu0 %v2139, 119
      %v2148 = vpop.permute.xlu0 %2147
      %vm2149 = vcmask 449536
      %v2151 = vsel %vm2149, %v2148, 0
      %v2152 = vrot.slane %v2139, 4
      %v2154 = vsel %vm557, %v2146, %v2152
      %2155 = vrot.lane.b32.xlu0 %v2139, 73
      %v2156 = vpop.permute.xlu0 %2155
      %v2158 = vsel %vm1359, 0, %v2156
      %2159 = vrot.lane.b32.xlu0 %v2139, 55
      %v2160 = vpop.permute.xlu0 %2159
      %v2162 = vsel %vm2149, %v2160, 0
      %2163 = vrot.lane.b32.xlu0 %v2152, 64
      %v2164 = vpop.permute.xlu0 %2163
      %v2166 = vsel %vm557, %v2158, %v2164
      %2169 = vrot.lane.b32.xlu0 %v2166, 64
      %v2170 = vpop.permute.xlu0 %2169
      %2171 = vrot.lane.b32.xlu0 %v2162, 64
      %v2172 = vpop.permute.xlu0 %2171
      %v2174 = vsel %vm1677, %v2154, %v2170
      %v2177 = vsel %vm1677, %v2151, %v2172
      %v2179 = vsel %vm1829, %v2141, 0
      %v2181 = vsel %vm557, %v2177, 0
      %2183 = vmatprep.subr.bf16.mxu0 0
      %2184 = vmatpush1.bf16.msra.mxu0 %v2174
      %2185 = vmatprep.subr.bf16.mxu0 0
      %2186 = vmatpush1.bf16.msra.mxu0 %v2181
      %2187 = vmatprep.subr.bf16.mxu0 0
      %2188 = vmatpush1.bf16.msra.mxu0 0
      %2189 = vmatprep.subr.bf16.mxu0 0
      %2190 = vmatpush1.bf16.msra.mxu0 0
      %2191 = vmatprep.subr.bf16.mxu0 0
      %2192 = vmatpush1.bf16.msra.mxu0 0
      %2193 = vmatprep.subr.bf16.mxu0 0
      %2194 = vmatpush1.bf16.msra.mxu0 0
      %2195 = vmatprep.subr.bf16.mxu0 0
      %2196 = vmatpush1.bf16.msra.mxu0 0
      %2197 = vmatprep.subr.bf16.mxu0 0
      %2198 = vmatpush1.bf16.msra.mxu0 0
      %2199 = vmatprep.subr.bf16.mxu0 0
      %2200 = vmatpush1.bf16.msra.mxu0 0
      %2201 = vmatprep.subr.bf16.mxu0 0
      %2202 = vmatpush1.bf16.msra.mxu0 0
      %2203 = vmatprep.subr.bf16.mxu0 0
      %2204 = vmatpush1.bf16.msra.mxu0 0
      %2205 = vmatprep.subr.bf16.mxu0 0
      %2206 = vmatpush1.bf16.msra.mxu0 0
      %2207 = vmatprep.subr.bf16.mxu0 0
      %2208 = vmatpush1.bf16.msra.mxu0 0
      %2209 = vmatprep.subr.bf16.mxu0 0
      %2210 = vmatpush1.bf16.msra.mxu0 0
      %2211 = vmatprep.subr.bf16.mxu0 0
      %2212 = vmatpush1.bf16.msra.mxu0 0
      %2213 = vmatprep.subr.bf16.mxu0 0
      %2214 = vmatpush1.bf16.msra.mxu0 0
      %2215 = vmatprep.mubr.bf16.mxu0 0
      %2216 = vmatmul.mubr.bf16.gmra.mrb[0].mxu0 %v2179
      %v2217 = vpop.f32.mrb[0].mxu0
      %v2218 = vadd.f32 0.0, %v2217
      %v2219 = vpop.f32.mrb[0].mxu0
      %v2220 = vpop.f32.mrb[0].mxu0
      %v2221 = vpop.f32.mrb[0].mxu0
      %2222 = vdwg.mxu0
      %vm2223 = vcmp.gt.f32.partialorder %v2218, 0.0
      %v2224 = vmul.f32 %v2218, 0.2
      %v2225 = vsel %vm2223, %v2218, %v2224
      %v2226 = vpack.c.bf16 %v2225, %v2225
      %s2227 = scalar_lea.vmem %s7, 20
      %v2228 = vld [vmem:[%s2227] sm:$0xf]
      %2230 = vrot.lane.b32.xlu0 %v2226, 1
      %v2231 = vpop.permute.xlu0 %2230
      %v2233 = vsel %vm534, 0, %v2231
      %2234 = vrot.lane.b32.xlu0 %v2226, 127
      %v2235 = vpop.permute.xlu0 %2234
      %v2237 = vsel %vm1800, %v2235, 0
      %v2238 = vrot.slane %v2226, 4
      %v2240 = vsel %vm557, %v2233, %v2238
      %2241 = vrot.lane.b32.xlu0 %v2226, 65
      %v2242 = vpop.permute.xlu0 %2241
      %v2244 = vsel %vm534, 0, %v2242
      %2245 = vrot.lane.b32.xlu0 %v2226, 63
      %v2246 = vpop.permute.xlu0 %2245
      %v2248 = vsel %vm1800, %v2246, 0
      %2249 = vrot.lane.b32.xlu0 %v2238, 64
      %v2250 = vpop.permute.xlu0 %2249
      %v2252 = vsel %vm557, %v2244, %v2250
      %2255 = vrot.lane.b32.xlu0 %v2252, 64
      %v2256 = vpop.permute.xlu0 %2255
      %2257 = vrot.lane.b32.xlu0 %v2248, 64
      %v2258 = vpop.permute.xlu0 %2257
      %v2260 = vsel %vm1677, %v2240, %v2256
      %v2263 = vsel %vm1677, %v2237, %v2258
      %v2265 = vsel %vm1829, %v2228, 0
      %v2267 = vsel %vm557, %v2263, 0
      %2269 = vmatprep.subr.bf16.mxu0 0
      %2270 = vmatpush1.bf16.msra.mxu0 %v2260
      %2271 = vmatprep.subr.bf16.mxu0 0
      %2272 = vmatpush1.bf16.msra.mxu0 %v2267
      %2273 = vmatprep.subr.bf16.mxu0 0
      %2274 = vmatpush1.bf16.msra.mxu0 0
      %2275 = vmatprep.subr.bf16.mxu0 0
      %2276 = vmatpush1.bf16.msra.mxu0 0
      %2277 = vmatprep.subr.bf16.mxu0 0
      %2278 = vmatpush1.bf16.msra.mxu0 0
      %2279 = vmatprep.subr.bf16.mxu0 0
      %2280 = vmatpush1.bf16.msra.mxu0 0
      %2281 = vmatprep.subr.bf16.mxu0 0
      %2282 = vmatpush1.bf16.msra.mxu0 0
      %2283 = vmatprep.subr.bf16.mxu0 0
      %2284 = vmatpush1.bf16.msra.mxu0 0
      %2285 = vmatprep.subr.bf16.mxu0 0
      %2286 = vmatpush1.bf16.msra.mxu0 0
      %2287 = vmatprep.subr.bf16.mxu0 0
      %2288 = vmatpush1.bf16.msra.mxu0 0
      %2289 = vmatprep.subr.bf16.mxu0 0
      %2290 = vmatpush1.bf16.msra.mxu0 0
      %2291 = vmatprep.subr.bf16.mxu0 0
      %2292 = vmatpush1.bf16.msra.mxu0 0
      %2293 = vmatprep.subr.bf16.mxu0 0
      %2294 = vmatpush1.bf16.msra.mxu0 0
      %2295 = vmatprep.subr.bf16.mxu0 0
      %2296 = vmatpush1.bf16.msra.mxu0 0
      %2297 = vmatprep.subr.bf16.mxu0 0
      %2298 = vmatpush1.bf16.msra.mxu0 0
      %2299 = vmatprep.subr.bf16.mxu0 0
      %2300 = vmatpush1.bf16.msra.mxu0 0
      %2301 = vmatprep.mubr.bf16.mxu0 0
      %2302 = vmatmul.mubr.bf16.gmra.mrb[0].mxu0 %v2265
      %v2303 = vpop.f32.mrb[0].mxu0
      %v2304 = vadd.f32 0.0, %v2303
      %v2305 = vpop.f32.mrb[0].mxu0
      %v2306 = vpop.f32.mrb[0].mxu0
      %v2307 = vpop.f32.mrb[0].mxu0
      %2308 = vdwg.mxu0
      %v2309 = vpack.c.bf16 %v2304, %v2304
      %v2310 = vadd.bf16 %v2136, %v2309
      %v2311 = vld [vmem:[%s8] sm:$0xf]
      %v2312 = vld [vmem:[%s8 + $0x4] sm:$0x1]
      %2314 = vrot.lane.b32.xlu0 %v2310, 3
      %v2315 = vpop.permute.xlu0 %2314
      %v2317 = vsel %vm523, 0, %v2315
      %2318 = vrot.lane.b32.xlu0 %v2310, 2
      %v2319 = vpop.permute.xlu0 %2318
      %v2321 = vsel %vm529, 0, %v2319
      %2322 = vrot.lane.b32.xlu0 %v2310, 1
      %v2323 = vpop.permute.xlu0 %2322
      %v2325 = vsel %vm534, 0, %v2323
      %2326 = vrot.lane.b32.xlu0 %v2310, 127
      %v2327 = vpop.permute.xlu0 %2326
      %v2329 = vsel %vm1800, %v2327, 0
      %2330 = vrot.lane.b32.xlu0 %v2310, 126
      %v2331 = vpop.permute.xlu0 %2330
      %vm2332 = vcmask 506880
      %v2334 = vsel %vm2332, %v2331, 0
      %2335 = vrot.lane.b32.xlu0 %v2310, 125
      %v2336 = vpop.permute.xlu0 %2335
      %v2338 = vsel %vm1975, %v2336, 0
      %v2340 = vrot.slane %v2321, 4
      %v2341 = vrot.slane %v2310, 4
      %v2343 = vrot.slane %v2334, 4
      %v2345 = vsel %vm557, %v2317, %v2340
      %v2347 = vsel %vm557, %v2325, %v2341
      %v2349 = vsel %vm557, %v2329, %v2343
      %2350 = vrot.lane.b32.xlu0 %v2310, 67
      %v2351 = vpop.permute.xlu0 %2350
      %v2353 = vsel %vm523, 0, %v2351
      %2354 = vrot.lane.b32.xlu0 %v2310, 66
      %v2355 = vpop.permute.xlu0 %2354
      %v2357 = vsel %vm529, 0, %v2355
      %2358 = vrot.lane.b32.xlu0 %v2310, 65
      %v2359 = vpop.permute.xlu0 %2358
      %v2361 = vsel %vm534, 0, %v2359
      %2362 = vrot.lane.b32.xlu0 %v2310, 63
      %v2363 = vpop.permute.xlu0 %2362
      %v2365 = vsel %vm1800, %v2363, 0
      %2366 = vrot.lane.b32.xlu0 %v2310, 62
      %v2367 = vpop.permute.xlu0 %2366
      %v2369 = vsel %vm2332, %v2367, 0
      %2370 = vrot.lane.b32.xlu0 %v2310, 61
      %v2371 = vpop.permute.xlu0 %2370
      %v2373 = vsel %vm1975, %v2371, 0
      %v2375 = vrot.slane %v2357, 4
      %2376 = vrot.lane.b32.xlu0 %v2341, 64
      %v2377 = vpop.permute.xlu0 %2376
      %v2379 = vrot.slane %v2369, 4
      %v2381 = vsel %vm557, %v2353, %v2375
      %v2383 = vsel %vm557, %v2361, %v2377
      %v2385 = vsel %vm557, %v2365, %v2379
      %2390 = vrot.lane.b32.xlu0 %v2381, 64
      %v2391 = vpop.permute.xlu0 %2390
      %2392 = vrot.lane.b32.xlu0 %v2383, 64
      %v2393 = vpop.permute.xlu0 %2392
      %2394 = vrot.lane.b32.xlu0 %v2385, 64
      %v2395 = vpop.permute.xlu0 %2394
      %2396 = vrot.lane.b32.xlu0 %v2373, 64
      %v2397 = vpop.permute.xlu0 %2396
      %v2399 = vsel %vm1677, %v2345, %v2391
      %v2402 = vsel %vm1677, %v2347, %v2393
      %v2405 = vsel %vm1677, %v2349, %v2395
      %v2408 = vsel %vm1677, %v2338, %v2397
      %v2411 = vunpack.c.l.b16 %v2311
      %v2412 = vunpack.c.l.b16 %v2312
      %v2413 = vpack.c.b16 %v2412, %v2411
      %v2415 = vsel %vm633, %v2413, 0
      %v2417 = vsel %vm557, %v2408, 0
      %2419 = vmatprep.subr.bf16.mxu0 0
      %2420 = vmatpush1.bf16.msra.mxu0 %v2399
      %2421 = vmatprep.subr.bf16.mxu0 0
      %2422 = vmatpush1.bf16.msra.mxu0 %v2402
      %2423 = vmatprep.subr.bf16.mxu0 0
      %2424 = vmatpush1.bf16.msra.mxu0 %v2405
      %2425 = vmatprep.subr.bf16.mxu0 0
      %2426 = vmatpush1.bf16.msra.mxu0 %v2417
      %2427 = vmatprep.subr.bf16.mxu0 0
      %2428 = vmatpush1.bf16.msra.mxu0 0
      %2429 = vmatprep.subr.bf16.mxu0 0
      %2430 = vmatpush1.bf16.msra.mxu0 0
      %2431 = vmatprep.subr.bf16.mxu0 0
      %2432 = vmatpush1.bf16.msra.mxu0 0
      %2433 = vmatprep.subr.bf16.mxu0 0
      %2434 = vmatpush1.bf16.msra.mxu0 0
      %2435 = vmatprep.subr.bf16.mxu0 0
      %2436 = vmatpush1.bf16.msra.mxu0 0
      %2437 = vmatprep.subr.bf16.mxu0 0
      %2438 = vmatpush1.bf16.msra.mxu0 0
      %2439 = vmatprep.subr.bf16.mxu0 0
      %2440 = vmatpush1.bf16.msra.mxu0 0
      %2441 = vmatprep.subr.bf16.mxu0 0
      %2442 = vmatpush1.bf16.msra.mxu0 0
      %2443 = vmatprep.subr.bf16.mxu0 0
      %2444 = vmatpush1.bf16.msra.mxu0 0
      %2445 = vmatprep.subr.bf16.mxu0 0
      %2446 = vmatpush1.bf16.msra.mxu0 0
      %2447 = vmatprep.subr.bf16.mxu0 0
      %2448 = vmatpush1.bf16.msra.mxu0 0
      %2449 = vmatprep.subr.bf16.mxu0 0
      %2450 = vmatpush1.bf16.msra.mxu0 0
      %2451 = vmatprep.mubr.bf16.mxu0 0
      %2452 = vmatmul.mubr.bf16.gmra.mrb[0].mxu0 %v2415
      %v2453 = vpop.f32.mrb[0].mxu0
      %v2454 = vadd.f32 0.0, %v2453
      %v2455 = vpop.f32.mrb[0].mxu0
      %v2456 = vpop.f32.mrb[0].mxu0
      %v2457 = vadd.f32 0.0, %v2456
      %v2458 = vpop.f32.mrb[0].mxu0
      %2459 = vdwg.mxu0
      %v2460 = vtanh.pop %v2454
      %v2461 = vmin.f32 %v2454, 0.0
      %v2462 = vand.u32 2147483647, %v2454
      %v2463 = vsub.f32 0.0, %v2462
      %v2464 = vmul.f32 %v2463, 1.442695
      %v2465 = vpow.pop %v2464
      %v2466 = vadd.f32 %v2465, 1.0
      %v2467 = vlog2.pop %v2466
      %v2468 = vmul.f32 %v2467, 0.6931472
      %v2469 = vsub.f32 %v2461, %v2468
      %v2470 = vmul.f32 %v2469, 2.3
      %v2471 = vmul.f32 %v2470, 1.442695
      %v2472 = vpow.pop %v2471
      %v2473 = vmul.f32 %v2472, 2.0
      %v2474 = vadd.f32 %v2473, 1e-07
      %v2476 = vrot.slane %v2474, 1
      %v2478 = vmul.f32 %v2460, %v2476
      %2479 = vst [vmem:[%s499] sm:$0x1] %v2478
      %v2480 = vpack.c.bf16 %v2457, %v2454
      %v2481 = vld [vmem:[%s9] sm:$0xf]
      %v2482 = vld [vmem:[%s9 + $0x4] sm:$0xf]
      %v2483 = vld [vmem:[%s9 + $0x8] sm:$0xf]
      %v2484 = vld [vmem:[%s9 + $0xc] sm:$0xf]
      %v2485 = vld [vmem:[%s9 + $0x10] sm:$0xf]
      %v2486 = vld [vmem:[%s9 + $0x14] sm:$0xf]
      %v2487 = vld [vmem:[%s9 + $0x18] sm:$0xf]
      %v2488 = vld [vmem:[%s9 + $0x1c] sm:$0xf]
      %v2489 = vld [vmem:[%s9 + $0x20] sm:$0xf]
      %v2490 = vld [vmem:[%s9 + $0x24] sm:$0xf]
      %v2491 = vld [vmem:[%s9 + $0x28] sm:$0xf]
      %v2492 = vld [vmem:[%s9 + $0x2c] sm:$0xf]
      %v2493 = vld [vmem:[%s9 + $0x30] sm:$0xf]
      %v2494 = vld [vmem:[%s9 + $0x34] sm:$0xf]
      %v2495 = vld [vmem:[%s9 + $0x38] sm:$0xf]
      %v2496 = vld [vmem:[%s9 + $0x3c] sm:$0xf]
      %v2497 = vld [vmem:[%s12] sm:$0xff]
      %2499 = vset.pattern.permute.xlu0 0
      %2500 = vperm.xlu0 %2499, %v2497
      %v2501 = vpop.permute.xlu0 %2500
      %v2504 = vrot.slane %v2480, 1
      %v2522 = vunpack.c.l.b16 %v2481
      %v2523 = vunpack.c.l.b16 %v2482
      %v2524 = vunpack.c.l.b16 %v2483
      %v2525 = vunpack.c.l.b16 %v2484
      %v2526 = vunpack.c.l.b16 %v2485
      %v2527 = vunpack.c.l.b16 %v2486
      %v2528 = vunpack.c.l.b16 %v2487
      %v2529 = vunpack.c.l.b16 %v2488
      %v2530 = vunpack.c.l.b16 %v2489
      %v2531 = vunpack.c.l.b16 %v2490
      %v2532 = vunpack.c.l.b16 %v2491
      %v2533 = vunpack.c.l.b16 %v2492
      %v2534 = vunpack.c.l.b16 %v2493
      %v2535 = vunpack.c.l.b16 %v2494
      %v2536 = vunpack.c.l.b16 %v2495
      %v2537 = vunpack.c.l.b16 %v2496
      %v2538 = vpack.c.b16 %v2523, %v2522
      %v2539 = vpack.c.b16 %v2525, %v2524
      %v2540 = vpack.c.b16 %v2527, %v2526
      %v2541 = vpack.c.b16 %v2529, %v2528
      %v2542 = vpack.c.b16 %v2531, %v2530
      %v2543 = vpack.c.b16 %v2533, %v2532
      %v2544 = vpack.c.b16 %v2535, %v2534
      %v2545 = vpack.c.b16 %v2537, %v2536
      %2554 = vmatprep.subr.bf16.mxu0 0
      %2555 = vmatpush1.bf16.msra.mxu0 %v2538
      %2556 = vmatprep.subr.bf16.mxu0 0
      %2557 = vmatpush1.bf16.msra.mxu0 %v2539
      %2558 = vmatprep.subr.bf16.mxu0 0
      %2559 = vmatpush1.bf16.msra.mxu0 %v2540
      %2560 = vmatprep.subr.bf16.mxu0 0
      %2561 = vmatpush1.bf16.msra.mxu0 %v2541
      %2562 = vmatprep.subr.bf16.mxu0 0
      %2563 = vmatpush1.bf16.msra.mxu0 %v2542
      %2564 = vmatprep.subr.bf16.mxu0 0
      %2565 = vmatpush1.bf16.msra.mxu0 %v2543
      %2566 = vmatprep.subr.bf16.mxu0 0
      %2567 = vmatpush1.bf16.msra.mxu0 %v2544
      %2568 = vmatprep.subr.bf16.mxu0 0
      %2569 = vmatpush1.bf16.msra.mxu0 %v2545
      %2570 = vmatprep.subr.bf16.mxu0 0
      %2571 = vmatpush1.bf16.msra.mxu0 0
      %2572 = vmatprep.subr.bf16.mxu0 0
      %2573 = vmatpush1.bf16.msra.mxu0 0
      %2574 = vmatprep.subr.bf16.mxu0 0
      %2575 = vmatpush1.bf16.msra.mxu0 0
      %2576 = vmatprep.subr.bf16.mxu0 0
      %2577 = vmatpush1.bf16.msra.mxu0 0
      %2578 = vmatprep.subr.bf16.mxu0 0
      %2579 = vmatpush1.bf16.msra.mxu0 0
      %2580 = vmatprep.subr.bf16.mxu0 0
      %2581 = vmatpush1.bf16.msra.mxu0 0
      %2582 = vmatprep.subr.bf16.mxu0 0
      %2583 = vmatpush1.bf16.msra.mxu0 0
      %2584 = vmatprep.subr.bf16.mxu0 0
      %2585 = vmatpush1.bf16.msra.mxu0 0
      %2586 = vmatprep.mubr.bf16.mxu0 0
      %2587 = vmatmul.mubr.bf16.gmra.mrb[0].mxu0 %v2504
      %v2588 = vpop.f32.mrb[0].mxu0
      %v2589 = vadd.f32 %v2501, %v2588
      %v2590 = vpop.f32.mrb[0].mxu0
      %v2591 = vpop.f32.mrb[0].mxu0
      %v2592 = vpop.f32.mrb[0].mxu0
      %2593 = vdwg.mxu0
      %vm2594 = vcmp.gt.f32.partialorder %v2589, 0.0
      %v2595 = vmul.f32 %v2589, 0.2
      %v2596 = vsel %vm2594, %v2589, %v2595
      %v2597 = vpack.c.bf16 %v2596, %v2596
      %v2598 = vld [vmem:[%s10] sm:$0x3]
      %2600 = vrot.lane.b32.xlu0 %v2597, 1
      %v2601 = vpop.permute.xlu0 %2600
      %v2603 = vsel %vm534, 0, %v2601
      %v2604 = vrot.slane %v2597, 4
      %2605 = vrot.lane.b32.xlu0 %v2597, 127
      %v2606 = vpop.permute.xlu0 %2605
      %v2608 = vsel %vm557, %v2603, %v2604
      %2609 = vrot.lane.b32.xlu0 %v2597, 97
      %v2610 = vpop.permute.xlu0 %2609
      %v2612 = vsel %vm534, 0, %v2610
      %2613 = vrot.lane.b32.xlu0 %v2604, 96
      %v2614 = vpop.permute.xlu0 %2613
      %2615 = vrot.lane.b32.xlu0 %v2597, 95
      %v2616 = vpop.permute.xlu0 %2615
      %v2618 = vsel %vm557, %v2612, %v2614
      %2620 = vrot.lane.b32.xlu0 %v2618, 31
      %v2621 = vpop.permute.xlu0 %2620
      %2622 = vrot.lane.b32.xlu0 %v2616, 31
      %v2623 = vpop.permute.xlu0 %2622
      %v2625 = vsel %vm980, %v2608, %v2621
      %v2629 = vsel %vm980, %v2606, %v2623
      %v2631 = vsel %vm1829, %v2598, 0
      %v2633 = vsel %vm557, %v2629, 0
      %2635 = vmatprep.subr.bf16.mxu0 0
      %2636 = vmatpush1.bf16.msra.mxu0 %v2625
      %2637 = vmatprep.subr.bf16.mxu0 0
      %2638 = vmatpush1.bf16.msra.mxu0 %v2633
      %2639 = vmatprep.subr.bf16.mxu0 0
      %2640 = vmatpush1.bf16.msra.mxu0 0
      %2641 = vmatprep.subr.bf16.mxu0 0
      %2642 = vmatpush1.bf16.msra.mxu0 0
      %2643 = vmatprep.subr.bf16.mxu0 0
      %2644 = vmatpush1.bf16.msra.mxu0 0
      %2645 = vmatprep.subr.bf16.mxu0 0
      %2646 = vmatpush1.bf16.msra.mxu0 0
      %2647 = vmatprep.subr.bf16.mxu0 0
      %2648 = vmatpush1.bf16.msra.mxu0 0
      %2649 = vmatprep.subr.bf16.mxu0 0
      %2650 = vmatpush1.bf16.msra.mxu0 0
      %2651 = vmatprep.subr.bf16.mxu0 0
      %2652 = vmatpush1.bf16.msra.mxu0 0
      %2653 = vmatprep.subr.bf16.mxu0 0
      %2654 = vmatpush1.bf16.msra.mxu0 0
      %2655 = vmatprep.subr.bf16.mxu0 0
      %2656 = vmatpush1.bf16.msra.mxu0 0
      %2657 = vmatprep.subr.bf16.mxu0 0
      %2658 = vmatpush1.bf16.msra.mxu0 0
      %2659 = vmatprep.subr.bf16.mxu0 0
      %2660 = vmatpush1.bf16.msra.mxu0 0
      %2661 = vmatprep.subr.bf16.mxu0 0
      %2662 = vmatpush1.bf16.msra.mxu0 0
      %2663 = vmatprep.subr.bf16.mxu0 0
      %2664 = vmatpush1.bf16.msra.mxu0 0
      %2665 = vmatprep.subr.bf16.mxu0 0
      %2666 = vmatpush1.bf16.msra.mxu0 0
      %2667 = vmatprep.mubr.bf16.mxu0 0
      %2668 = vmatmul.mubr.bf16.gmra.mrb[0].mxu0 %v2631
      %v2669 = vpop.f32.mrb[0].mxu0
      %v2670 = vadd.f32 0.0, %v2669
      %v2671 = vpop.f32.mrb[0].mxu0
      %v2672 = vpop.f32.mrb[0].mxu0
      %v2673 = vpop.f32.mrb[0].mxu0
      %2674 = vdwg.mxu0
      %v2675 = vpack.c.bf16 %v2670, %v2670
      %v2676 = vld [vmem:[%s11] sm:$0xf]
      %v2677 = vld [vmem:[%s11 + $0x4] sm:$0xf]
      %v2678 = vld [vmem:[%s11 + $0x8] sm:$0xf]
      %v2679 = vld [vmem:[%s11 + $0xc] sm:$0xf]
      %v2680 = vld [vmem:[%s11 + $0x10] sm:$0xf]
      %v2681 = vld [vmem:[%s11 + $0x14] sm:$0xf]
      %v2682 = vld [vmem:[%s11 + $0x18] sm:$0xf]
      %v2683 = vld [vmem:[%s11 + $0x1c] sm:$0x7]
      %v2684 = vld [vmem:[%s13] sm:$0x7]
      %2686 = vset.pattern.permute.xlu0 0
      %2687 = vperm.xlu0 %2686, %v2684
      %v2688 = vpop.permute.xlu0 %2687
      %v2698 = vunpack.c.l.b16 %v2676
      %v2699 = vunpack.c.l.b16 %v2677
      %v2700 = vunpack.c.l.b16 %v2678
      %v2701 = vunpack.c.l.b16 %v2679
      %v2702 = vunpack.c.l.b16 %v2680
      %v2703 = vunpack.c.l.b16 %v2681
      %v2704 = vunpack.c.l.b16 %v2682
      %v2705 = vunpack.c.l.b16 %v2683
      %v2706 = vpack.c.b16 %v2699, %v2698
      %v2707 = vpack.c.b16 %v2701, %v2700
      %v2708 = vpack.c.b16 %v2703, %v2702
      %v2709 = vpack.c.b16 %v2705, %v2704
      %v2714 = vsel %vm2332, %v2675, 0
      %vm2716 = vcmask 1046528
      %v2718 = vsel %vm2716, %v2709, 0
      %2720 = vmatprep.subr.bf16.mxu0 0
      %2721 = vmatpush1.bf16.msra.mxu0 %v2706
      %2722 = vmatprep.subr.bf16.mxu0 0
      %2723 = vmatpush1.bf16.msra.mxu0 %v2707
      %2724 = vmatprep.subr.bf16.mxu0 0
      %2725 = vmatpush1.bf16.msra.mxu0 %v2708
      %2726 = vmatprep.subr.bf16.mxu0 0
      %2727 = vmatpush1.bf16.msra.mxu0 %v2718
      %2728 = vmatprep.subr.bf16.mxu0 0
      %2729 = vmatpush1.bf16.msra.mxu0 0
      %2730 = vmatprep.subr.bf16.mxu0 0
      %2731 = vmatpush1.bf16.msra.mxu0 0
      %2732 = vmatprep.subr.bf16.mxu0 0
      %2733 = vmatpush1.bf16.msra.mxu0 0
      %2734 = vmatprep.subr.bf16.mxu0 0
      %2735 = vmatpush1.bf16.msra.mxu0 0
      %2736 = vmatprep.subr.bf16.mxu0 0
      %2737 = vmatpush1.bf16.msra.mxu0 0
      %2738 = vmatprep.subr.bf16.mxu0 0
      %2739 = vmatpush1.bf16.msra.mxu0 0
      %2740 = vmatprep.subr.bf16.mxu0 0
      %2741 = vmatpush1.bf16.msra.mxu0 0
      %2742 = vmatprep.subr.bf16.mxu0 0
      %2743 = vmatpush1.bf16.msra.mxu0 0
      %2744 = vmatprep.subr.bf16.mxu0 0
      %2745 = vmatpush1.bf16.msra.mxu0 0
      %2746 = vmatprep.subr.bf16.mxu0 0
      %2747 = vmatpush1.bf16.msra.mxu0 0
      %2748 = vmatprep.subr.bf16.mxu0 0
      %2749 = vmatpush1.bf16.msra.mxu0 0
      %2750 = vmatprep.subr.bf16.mxu0 0
      %2751 = vmatpush1.bf16.msra.mxu0 0
      %2752 = vmatprep.mubr.bf16.mxu0 0
      %2753 = vmatmul.mubr.bf16.gmra.mrb[0].mxu0 %v2714
      %v2754 = vpop.f32.mrb[0].mxu0
      %v2755 = vadd.f32 %v2688, %v2754
      %v2756 = vpop.f32.mrb[0].mxu0
      %v2757 = vpop.f32.mrb[0].mxu0
      %v2758 = vpop.f32.mrb[0].mxu0
      %2759 = vdwg.mxu0
      %v2760 = vsub.f32 %v2755, 5.0
      %v2761 = vmin.f32 %v2760, 0.0
      %v2762 = vand.u32 2147483647, %v2760
      %v2763 = vsub.f32 0.0, %v2762
      %v2764 = vmul.f32 %v2763, 1.442695
      %v2765 = vpow.pop %v2764
      %v2766 = vadd.f32 %v2765, 1.0
      %v2767 = vlog2.pop %v2766
      %v2768 = vmul.f32 %v2767, 0.6931472
      %v2769 = vsub.f32 %v2761, %v2768
      %v2770 = vmul.f32 %v2769, 2.3
      %v2771 = vmul.f32 %v2770, 1.442695
      %v2772 = vpow.pop %v2771
      %v2773 = vmul.f32 %v2772, 2.0
      %v2774 = vadd.f32 %v2773, 1e-07
      %vm2775 = vcmask 256000
      %2776 = vst.msk [vmem:[%s503] sm:$0x7] %vm2775, %v2774
      %p2777 = scmp.lt.s32.totalorder %s27, 1
      %s2778 = scalar_select %p2777, %s27, 1
      %s2779 = scalar_lea.vmem %s14, %s2778
      %p2780 = scmp.lt.s32.totalorder %s27, 1
      %s2781 = scalar_select %p2780, %s27, 1
      %s2782 = smul.addr %s2781, 4
      %s2783 = scalar_lea.vmem %s15, %s2782
      // Predicated region
      $region77: #{generator_forward.1} parent=75 // pred_check
        %p2784 = pneg %p344
      $region78: #{generator_forward.1} parent=75 // pred_check_branch
        %2786 = sbr.rel (%p2784) target = $region80
      $region79: #{generator_forward.1} parent=75 // pred_region
        _
      $region80: #{generator_forward.1} parent=75 // pred_fallthru
        _
      // Predicated region
      $region81: #{generator_forward.1} parent=75 // pred_check
        %p2787 = pneg %p370
      $region82: #{generator_forward.1} parent=75 // pred_check_branch
        %2789 = sbr.rel (%p2787) target = $region84
      $region83: #{generator_forward.1} parent=75 // pred_region
        _
      $region84: #{generator_forward.1} parent=75 // pred_fallthru
        _
    $region76: #{generator_forward.1} parent=5 // pred_fallthru
      _
    %p2790 = scmp.le.s32.totalorder 2, %s22
    // Predicated region
    $region85: #{generator_forward.1} parent=5 // pred_check
      %p2791 = pneg %p2790
    $region86: #{generator_forward.1} parent=5 // pred_check_branch
      %2793 = sbr.rel (%p2791) target = $region88
    $region87: #{generator_forward.1} parent=5 // pred_region
      %s2794 = ssub.s32 %s22, 2
      // Predicated region
      $region89: #{generator_forward.1} parent=87 // pred_check
        %p2795 = pneg %p350
      $region90: #{generator_forward.1} parent=87 // pred_check_branch
        %2797 = sbr.rel (%p2795) target = $region92
      $region91: #{generator_forward.1} parent=87 // pred_region
        %p2798 = scmp.lt.s32.totalorder %s28, 1
        %s2799 = scalar_select %p2798, %s28, 1
        %s2800 = scalar_lea.vmem %s14, %s2799
      $region92: #{generator_forward.1} parent=87 // pred_fallthru
        _
      // Predicated region
      $region93: #{generator_forward.1} parent=87 // pred_check
        %p2801 = pneg %p376
      $region94: #{generator_forward.1} parent=87 // pred_check_branch
        %2803 = sbr.rel (%p2801) target = $region96
      $region95: #{generator_forward.1} parent=87 // pred_region
        %p2804 = scmp.lt.s32.totalorder %s28, 1
        %s2805 = scalar_select %p2804, %s28, 1
        %s2806 = smul.addr %s2805, 4
        %s2807 = scalar_lea.vmem %s15, %s2806
      $region96: #{generator_forward.1} parent=87 // pred_fallthru
        _
    $region88: #{generator_forward.1} parent=5 // pred_fallthru
      _
  $region6: #{generator_forward.1} parent=0 // loop_footer
    %s26 = sadd.s32 1, %s22
  $region7: #{generator_forward.1} parent=0 // loop_footer_branch
    %21 = sbr.rel target = $region3
  $region8: #{generator_forward.1} parent=0 // loop_exit
    _

</llo_original>
